<compile_context>
chip_gen: v7x
topology: tpu7x:2x2x1
jax: 0.10.0
libtpu: 0.0.40
codegen_flags: <defaults>
</compile_context>

<pallas_src>
import functools

import jax
import jax.numpy as jnp
from jax.experimental import pallas as pl
from jax.experimental.pallas import tpu as pltpu

HIDDEN = 32          # hidden size H  (4H = 128 -> one full lane tile)
BATCH = 8            # N              (8 -> one full f32 sublane tile)
SEQ_LEN = 8          # L
FUTURE = 4           # autoregressive continuation steps


# ----------------------------- Pallas kernel ---------------------------------
def _lstm_kernel(x_ref, wih1_ref, whh1_ref, b1_ref, wih2_ref, whh2_ref,
                 b2_ref, wfb_ref, bfb_ref, wlin_ref, blin_ref, o_ref,
                 *, hidden, seq_len, total_steps):
    H = hidden
    N = o_ref.shape[0]
    f32 = jnp.float32

    # Weights are tiny (~20 vregs total): load once, keep live across the
    # unrolled time loop.
    wih1 = wih1_ref[...]      # (1, 4H)   LSTMCell(1,H) input weight row
    whh1 = whh1_ref[...]      # (H, 4H)   layer-1 recurrent weights^T
    b1 = b1_ref[...]          # (1, 4H)   b_ih1 + b_hh1
    wih2 = wih2_ref[...]      # (H, 4H)   layer-2 input weights^T
    whh2 = whh2_ref[...]      # (H, 4H)   layer-2 recurrent weights^T
    b2 = b2_ref[...]          # (1, 4H)   b_ih2 + b_hh2
    wfb = wfb_ref[...]        # (H, 4H)   Linear head folded into layer-1 input
    bfb = bfb_ref[...]        # (1, 4H)   b1 + blin * wih1
    wlin = wlin_ref[...]      # (1, H)    Linear weight row
    blin = blin_ref[...]      # (1, 1)    Linear bias

    # Gate layout (PyTorch order) along the 4H lane axis: [i | f | g | o].
    lane = jax.lax.broadcasted_iota(jnp.int32, (1, 4 * H), 1)
    is_g = (lane >= 2 * H) & (lane < 3 * H)
    # sigmoid(x) = 0.5 * tanh(x / 2) + 0.5  (exact identity) -> a single EUP
    # tanh pass covers all four gate blocks.
    pre = jnp.where(is_g, 1.0, 0.5).astype(f32)       # pre-scale (g: 1, else .5)
    post_add = jnp.where(is_g, 0.0, 0.5).astype(f32)  # affine fix-up for non-g

    def lstm_cell(gates, c):
        t = jnp.tanh(gates * pre)            # one full-vreg EUP pass
        act = t * pre + post_add             # g lanes: tanh(x); others: sigmoid(x)
        i = act[:, 0:H]
        f = act[:, H:2 * H]
        g = act[:, 2 * H:3 * H]
        o = act[:, 3 * H:4 * H]
        c_new = f * c + i * g
        h_new = o * jnp.tanh(c_new)
        return h_new, c_new

    # Teacher-forced input pre-activations hoisted out of the recurrence:
    # g1_in[t] = x[:, t] * wih1 + b1  (off the serial critical path).
    x_all = x_ref[...]                                              # (N, L)
    g1_in = [x_all[:, t:t + 1] * wih1 + b1 for t in range(seq_len)]

    zeros = jnp.zeros((N, H), f32)
    h1, c1, h2, c2 = zeros, zeros, zeros, zeros

    lane_t = jax.lax.broadcasted_iota(jnp.int32, (N, total_steps), 1)
    out_acc = jnp.zeros((N, total_steps), f32)        # register-resident output

    for t in range(total_steps):
        # Layer-2 recurrent half: depends only on h2_{t-1}, so its MXU latency
        # hides under layer-1's gate work.
        r2 = jnp.dot(h2, whh2, preferred_element_type=f32)          # (N, 4H)

        if t < seq_len:
            # Teacher-forced step: input pre-activation is ready.
            g1 = g1_in[t] + jnp.dot(h1, whh1, preferred_element_type=f32)
        else:
            # Autoregressive step: Linear head folded into layer-1's input:
            #   x_t = h2 @ wlin^T + blin  =>  x_t * wih1 = h2 @ wfb + blin*wih1
            g1 = (jnp.dot(h1, whh1, preferred_element_type=f32)
                  + jnp.dot(h2, wfb, preferred_element_type=f32)
                  + bfb)
        h1, c1 = lstm_cell(g1, c1)

        # Layer-2 input half (the only matmul gated on h1_t).
        g2 = jnp.dot(h1, wih2, preferred_element_type=f32) + r2 + b2
        h2, c2 = lstm_cell(g2, c2)

        # Output head: VPU mul + cross-lane reduce, OFF the recurrence path
        # (the feedback above never consumes `out`).
        out = jnp.sum(h2 * wlin, axis=1, keepdims=True) + blin      # (N, 1)
        out_acc = jnp.where(lane_t == t, out, out_acc)

    o_ref[...] = out_acc   # single coalesced store


def lstm_forward(x, params, future_preds=0):
    """x: (N, L) float32 -> (N, L + future_preds) float32."""
    N, L = x.shape
    H = params["w_hh1"].shape[1]
    T_total = L + future_preds

    # Weight prep (tiny; const-folded by XLA): right-multiply form, summed
    # biases, and the folded autoregressive-feedback matrix/bias.
    wih1_t = jnp.transpose(params["w_ih1"])                         # (1, 4H)
    whh1_t = jnp.transpose(params["w_hh1"])                         # (H, 4H)
    b1 = (params["b_ih1"] + params["b_hh1"]).reshape(1, 4 * H)
    wih2_t = jnp.transpose(params["w_ih2"])                         # (H, 4H)
    whh2_t = jnp.transpose(params["w_hh2"])                         # (H, 4H)
    b2 = (params["b_ih2"] + params["b_hh2"]).reshape(1, 4 * H)
    wlin = params["w_lin"].reshape(1, H)                            # (1, H)
    blin = params["b_lin"].reshape(1, 1)                            # (1, 1)
    w_fb = jnp.transpose(wlin) @ wih1_t                             # (H, 4H)
    b_fb = b1 + blin * wih1_t                                       # (1, 4H)

    kernel = functools.partial(_lstm_kernel, hidden=H, seq_len=L,
                               total_steps=T_total)

    vmem = pl.BlockSpec(memory_space=pltpu.MemorySpace.VMEM)
    out = pl.pallas_call(
        kernel,
        out_shape=jax.ShapeDtypeStruct((N, T_total), jnp.float32),
        in_specs=[vmem] * 11,
        out_specs=vmem,
    )(x.astype(jnp.float32), wih1_t, whh1_t, b1, wih2_t, whh2_t, b2,
      w_fb, b_fb, wlin, blin)
    return out                                                      # (N, L+future)


lstm_forward_jit = jax.jit(lstm_forward, static_argnames=("future_preds",))


# --------------------------- pure-JAX reference -------------------------------
def _cell_ref(x_t, h, c, w_ih, w_hh, b_ih, b_hh):
    g = x_t @ w_ih.T + b_ih + h @ w_hh.T + b_hh
    i, f, gg, o = jnp.split(g, 4, axis=1)
    c = jax.nn.sigmoid(f) * c + jax.nn.sigmoid(i) * jnp.tanh(gg)
    h = jax.nn.sigmoid(o) * jnp.tanh(c)
    return h, c


def ref_forward(x, p, future_preds=0):
    N, L = x.shape
    H = p["w_hh1"].shape[1]
    h1 = c1 = h2 = c2 = jnp.zeros((N, H), jnp.float32)
    outs, out = [], None
    for t in range(L):
        x_t = x[:, t:t + 1]
        h1, c1 = _cell_ref(x_t, h1, c1, p["w_ih1"], p["w_hh1"], p["b_ih1"], p["b_hh1"])
        h2, c2 = _cell_ref(h1, h2, c2, p["w_ih2"], p["w_hh2"], p["b_ih2"], p["b_hh2"])
        out = h2 @ p["w_lin"].T + p["b_lin"]
        outs.append(out)
    for _ in range(future_preds):
        h1, c1 = _cell_ref(out, h1, c1, p["w_ih1"], p["w_hh1"], p["b_ih1"], p["b_hh1"])
        h2, c2 = _cell_ref(h1, h2, c2, p["w_ih2"], p["w_hh2"], p["b_ih2"], p["b_hh2"])
        out = h2 @ p["w_lin"].T + p["b_lin"]
        outs.append(out)
    return jnp.concatenate(outs, axis=1)


# --------------------------------- main ---------------------------------------
def init_params(key, hidden):
    # PyTorch init: U(-1/sqrt(H), 1/sqrt(H)) for every LSTMCell / Linear tensor.
    k = 1.0 / jnp.sqrt(hidden)
    shapes = {
        "w_ih1": (4 * hidden, 1), "w_hh1": (4 * hidden, hidden),
        "b_ih1": (4 * hidden,),   "b_hh1": (4 * hidden,),
        "w_ih2": (4 * hidden, hidden), "w_hh2": (4 * hidden, hidden),
        "b_ih2": (4 * hidden,),   "b_hh2": (4 * hidden,),
        "w_lin": (1, hidden),     "b_lin": (1,),
    }
    params = {}
    for name, shape in shapes.items():
        key, sub = jax.random.split(key)
        params[name] = jax.random.uniform(sub, shape, jnp.float32, -k, k)
    return params


if __name__ == "__main__":
    key = jax.random.PRNGKey(0)
    k_x, k_p = jax.random.split(key)

    # synthetic sine-like input, matching x.shape = (N, L) in the original script
    t_grid = jnp.arange(SEQ_LEN, dtype=jnp.float32)
    phase = jax.random.uniform(k_x, (BATCH, 1), jnp.float32, 0.0, 6.0)
    x = jnp.sin((t_grid[None, :] + phase) / 4.0).astype(jnp.float32)   # (N, L)

    params = init_params(k_p, HIDDEN)

    out = lstm_forward_jit(x, params, future_preds=FUTURE)
    out = jax.block_until_ready(out)

    ref = ref_forward(x, params, future_preds=FUTURE)
    assert out.shape == (BATCH, SEQ_LEN + FUTURE), out.shape
    # Slightly looser atol than 1e-5 to absorb the (exact-in-math) tanh-sigmoid
    # identity and the folded rank-1 feedback re-association (few-ULP drift).
    assert jnp.allclose(out, ref, rtol=1e-5, atol=2e-5), float(jnp.max(jnp.abs(out - ref)))

    print("KERNEL_OK")
</pallas_src>

<mosaic_0001>
module attributes {stable_mosaic.version = 11 : i64} {
  func.func @_lstm_kernel(%arg0: memref<8x8xf32, #tpu.memory_space<vmem>>, %arg1: memref<1x128xf32, #tpu.memory_space<vmem>>, %arg2: memref<32x128xf32, #tpu.memory_space<vmem>>, %arg3: memref<1x128xf32, #tpu.memory_space<vmem>>, %arg4: memref<32x128xf32, #tpu.memory_space<vmem>>, %arg5: memref<32x128xf32, #tpu.memory_space<vmem>>, %arg6: memref<1x128xf32, #tpu.memory_space<vmem>>, %arg7: memref<32x128xf32, #tpu.memory_space<vmem>>, %arg8: memref<1x128xf32, #tpu.memory_space<vmem>>, %arg9: memref<1x32xf32, #tpu.memory_space<vmem>>, %arg10: memref<1x1xf32, #tpu.memory_space<vmem>>, %arg11: memref<8x12xf32, #tpu.memory_space<vmem>>) attributes {dimension_semantics = [], scalar_prefetch = 0 : i64, scratch_operands = 0 : i64, tpu.core_type = #tpu.core_type<tc>} {
    %c0 = arith.constant 0 : index
    %c0_0 = arith.constant 0 : index
    %0 = vector.load %arg1[%c0, %c0_0] : memref<1x128xf32, #tpu.memory_space<vmem>>, vector<1x128xf32>
    %c0_1 = arith.constant 0 : index
    %c0_2 = arith.constant 0 : index
    %1 = vector.load %arg2[%c0_1, %c0_2] : memref<32x128xf32, #tpu.memory_space<vmem>>, vector<32x128xf32>
    %c0_3 = arith.constant 0 : index
    %c0_4 = arith.constant 0 : index
    %2 = vector.load %arg3[%c0_3, %c0_4] : memref<1x128xf32, #tpu.memory_space<vmem>>, vector<1x128xf32>
    %c0_5 = arith.constant 0 : index
    %c0_6 = arith.constant 0 : index
    %3 = vector.load %arg4[%c0_5, %c0_6] : memref<32x128xf32, #tpu.memory_space<vmem>>, vector<32x128xf32>
    %c0_7 = arith.constant 0 : index
    %c0_8 = arith.constant 0 : index
    %4 = vector.load %arg5[%c0_7, %c0_8] : memref<32x128xf32, #tpu.memory_space<vmem>>, vector<32x128xf32>
    %c0_9 = arith.constant 0 : index
    %c0_10 = arith.constant 0 : index
    %5 = vector.load %arg6[%c0_9, %c0_10] : memref<1x128xf32, #tpu.memory_space<vmem>>, vector<1x128xf32>
    %c0_11 = arith.constant 0 : index
    %c0_12 = arith.constant 0 : index
    %6 = vector.load %arg7[%c0_11, %c0_12] : memref<32x128xf32, #tpu.memory_space<vmem>>, vector<32x128xf32>
    %c0_13 = arith.constant 0 : index
    %c0_14 = arith.constant 0 : index
    %7 = vector.load %arg8[%c0_13, %c0_14] : memref<1x128xf32, #tpu.memory_space<vmem>>, vector<1x128xf32>
    %c0_15 = arith.constant 0 : index
    %c0_16 = arith.constant 0 : index
    %8 = vector.load %arg9[%c0_15, %c0_16] : memref<1x32xf32, #tpu.memory_space<vmem>>, vector<1x32xf32>
    %c0_17 = arith.constant 0 : index
    %c0_18 = arith.constant 0 : index
    %9 = vector.load %arg10[%c0_17, %c0_18] : memref<1x1xf32, #tpu.memory_space<vmem>>, vector<1x1xf32>
    %10 = tpu.iota {dimensions = array<i32: 1>} : vector<1x128xi32>
    %c64_i32 = arith.constant 64 : i32
    %11 = vector.broadcast %c64_i32 : i32 to vector<1x128xi32>
    %12 = arith.cmpi sge, %10, %11 : vector<1x128xi32>
    %c96_i32 = arith.constant 96 : i32
    %13 = vector.broadcast %c96_i32 : i32 to vector<1x128xi32>
    %14 = arith.cmpi slt, %10, %13 : vector<1x128xi32>
    %15 = arith.andi %12, %14 : vector<1x128xi1>
    %cst = arith.constant 1.000000e+00 : f32
    %cst_19 = arith.constant 5.000000e-01 : f32
    %16 = vector.broadcast %cst : f32 to vector<1x128xf32>
    %17 = vector.broadcast %cst_19 : f32 to vector<1x128xf32>
    %18 = arith.select %15, %16, %17 : vector<1x128xi1>, vector<1x128xf32>
    %cst_20 = arith.constant 0.000000e+00 : f32
    %cst_21 = arith.constant 5.000000e-01 : f32
    %19 = vector.broadcast %cst_20 : f32 to vector<1x128xf32>
    %20 = vector.broadcast %cst_21 : f32 to vector<1x128xf32>
    %21 = arith.select %15, %19, %20 : vector<1x128xi1>, vector<1x128xf32>
    %c0_22 = arith.constant 0 : index
    %c0_23 = arith.constant 0 : index
    %22 = vector.load %arg0[%c0_22, %c0_23] : memref<8x8xf32, #tpu.memory_space<vmem>>, vector<8x8xf32>
    %23 = vector.extract_strided_slice %22 {offsets = [0, 0], sizes = [8, 1], strides = [1, 1]} : vector<8x8xf32> to vector<8x1xf32>
    %24 = vector.broadcast %23 : vector<8x1xf32> to vector<8x128xf32>
    %25 = vector.broadcast %0 : vector<1x128xf32> to vector<8x128xf32>
    %26 = arith.mulf %24, %25 : vector<8x128xf32>
    %27 = vector.broadcast %2 : vector<1x128xf32> to vector<8x128xf32>
    %28 = arith.addf %26, %27 : vector<8x128xf32>
    %29 = vector.extract_strided_slice %22 {offsets = [0, 1], sizes = [8, 1], strides = [1, 1]} : vector<8x8xf32> to vector<8x1xf32>
    %30 = vector.broadcast %29 : vector<8x1xf32> to vector<8x128xf32>
    %31 = vector.broadcast %0 : vector<1x128xf32> to vector<8x128xf32>
    %32 = arith.mulf %30, %31 : vector<8x128xf32>
    %33 = vector.broadcast %2 : vector<1x128xf32> to vector<8x128xf32>
    %34 = arith.addf %32, %33 : vector<8x128xf32>
    %35 = vector.extract_strided_slice %22 {offsets = [0, 2], sizes = [8, 1], strides = [1, 1]} : vector<8x8xf32> to vector<8x1xf32>
    %36 = vector.broadcast %35 : vector<8x1xf32> to vector<8x128xf32>
    %37 = vector.broadcast %0 : vector<1x128xf32> to vector<8x128xf32>
    %38 = arith.mulf %36, %37 : vector<8x128xf32>
    %39 = vector.broadcast %2 : vector<1x128xf32> to vector<8x128xf32>
    %40 = arith.addf %38, %39 : vector<8x128xf32>
    %41 = vector.extract_strided_slice %22 {offsets = [0, 3], sizes = [8, 1], strides = [1, 1]} : vector<8x8xf32> to vector<8x1xf32>
    %42 = vector.broadcast %41 : vector<8x1xf32> to vector<8x128xf32>
    %43 = vector.broadcast %0 : vector<1x128xf32> to vector<8x128xf32>
    %44 = arith.mulf %42, %43 : vector<8x128xf32>
    %45 = vector.broadcast %2 : vector<1x128xf32> to vector<8x128xf32>
    %46 = arith.addf %44, %45 : vector<8x128xf32>
    %47 = vector.extract_strided_slice %22 {offsets = [0, 4], sizes = [8, 1], strides = [1, 1]} : vector<8x8xf32> to vector<8x1xf32>
    %48 = vector.broadcast %47 : vector<8x1xf32> to vector<8x128xf32>
    %49 = vector.broadcast %0 : vector<1x128xf32> to vector<8x128xf32>
    %50 = arith.mulf %48, %49 : vector<8x128xf32>
    %51 = vector.broadcast %2 : vector<1x128xf32> to vector<8x128xf32>
    %52 = arith.addf %50, %51 : vector<8x128xf32>
    %53 = vector.extract_strided_slice %22 {offsets = [0, 5], sizes = [8, 1], strides = [1, 1]} : vector<8x8xf32> to vector<8x1xf32>
    %54 = vector.broadcast %53 : vector<8x1xf32> to vector<8x128xf32>
    %55 = vector.broadcast %0 : vector<1x128xf32> to vector<8x128xf32>
    %56 = arith.mulf %54, %55 : vector<8x128xf32>
    %57 = vector.broadcast %2 : vector<1x128xf32> to vector<8x128xf32>
    %58 = arith.addf %56, %57 : vector<8x128xf32>
    %59 = vector.extract_strided_slice %22 {offsets = [0, 6], sizes = [8, 1], strides = [1, 1]} : vector<8x8xf32> to vector<8x1xf32>
    %60 = vector.broadcast %59 : vector<8x1xf32> to vector<8x128xf32>
    %61 = vector.broadcast %0 : vector<1x128xf32> to vector<8x128xf32>
    %62 = arith.mulf %60, %61 : vector<8x128xf32>
    %63 = vector.broadcast %2 : vector<1x128xf32> to vector<8x128xf32>
    %64 = arith.addf %62, %63 : vector<8x128xf32>
    %65 = vector.extract_strided_slice %22 {offsets = [0, 7], sizes = [8, 1], strides = [1, 1]} : vector<8x8xf32> to vector<8x1xf32>
    %66 = vector.broadcast %65 : vector<8x1xf32> to vector<8x128xf32>
    %67 = vector.broadcast %0 : vector<1x128xf32> to vector<8x128xf32>
    %68 = arith.mulf %66, %67 : vector<8x128xf32>
    %69 = vector.broadcast %2 : vector<1x128xf32> to vector<8x128xf32>
    %70 = arith.addf %68, %69 : vector<8x128xf32>
    %cst_24 = arith.constant 0.000000e+00 : f32
    %71 = vector.broadcast %cst_24 : f32 to vector<8x32xf32>
    %72 = tpu.iota {dimensions = array<i32: 1>} : vector<8x12xi32>
    %cst_25 = arith.constant 0.000000e+00 : f32
    %73 = vector.broadcast %cst_25 : f32 to vector<8x12xf32>
    %cst_26 = arith.constant dense<0.000000e+00> : vector<8x128xf32>
    %74 = tpu.matmul %71, %4, %cst_26 {dimension_numbers = #tpu.dot_dimension_numbers<[1], [0], [0], [1], [0, 0, 1, 1], [], []>} : vector<8x32xf32>, vector<32x128xf32>, vector<8x128xf32> -> vector<8x128xf32>
    %cst_27 = arith.constant dense<0.000000e+00> : vector<8x128xf32>
    %75 = tpu.matmul %71, %1, %cst_27 {dimension_numbers = #tpu.dot_dimension_numbers<[1], [0], [0], [1], [0, 0, 1, 1], [], []>} : vector<8x32xf32>, vector<32x128xf32>, vector<8x128xf32> -> vector<8x128xf32>
    %76 = arith.addf %28, %75 : vector<8x128xf32>
    %77 = vector.broadcast %18 : vector<1x128xf32> to vector<8x128xf32>
    %78 = arith.mulf %76, %77 : vector<8x128xf32>
    %79 = math.tanh %78 : vector<8x128xf32>
    %80 = vector.broadcast %18 : vector<1x128xf32> to vector<8x128xf32>
    %81 = arith.mulf %79, %80 : vector<8x128xf32>
    %82 = vector.broadcast %21 : vector<1x128xf32> to vector<8x128xf32>
    %83 = arith.addf %81, %82 : vector<8x128xf32>
    %84 = vector.extract_strided_slice %83 {offsets = [0, 0], sizes = [8, 32], strides = [1, 1]} : vector<8x128xf32> to vector<8x32xf32>
    %85 = vector.extract_strided_slice %83 {offsets = [0, 32], sizes = [8, 32], strides = [1, 1]} : vector<8x128xf32> to vector<8x32xf32>
    %86 = vector.extract_strided_slice %83 {offsets = [0, 64], sizes = [8, 32], strides = [1, 1]} : vector<8x128xf32> to vector<8x32xf32>
    %87 = vector.extract_strided_slice %83 {offsets = [0, 96], sizes = [8, 32], strides = [1, 1]} : vector<8x128xf32> to vector<8x32xf32>
    %88 = arith.mulf %85, %71 : vector<8x32xf32>
    %89 = arith.mulf %84, %86 : vector<8x32xf32>
    %90 = arith.addf %88, %89 : vector<8x32xf32>
    %91 = math.tanh %90 : vector<8x32xf32>
    %92 = arith.mulf %87, %91 : vector<8x32xf32>
    %cst_28 = arith.constant dense<0.000000e+00> : vector<8x128xf32>
    %93 = tpu.matmul %92, %3, %cst_28 {dimension_numbers = #tpu.dot_dimension_numbers<[1], [0], [0], [1], [0, 0, 1, 1], [], []>} : vector<8x32xf32>, vector<32x128xf32>, vector<8x128xf32> -> vector<8x128xf32>
    %94 = arith.addf %93, %74 : vector<8x128xf32>
    %95 = vector.broadcast %5 : vector<1x128xf32> to vector<8x128xf32>
    %96 = arith.addf %94, %95 : vector<8x128xf32>
    %97 = vector.broadcast %18 : vector<1x128xf32> to vector<8x128xf32>
    %98 = arith.mulf %96, %97 : vector<8x128xf32>
    %99 = math.tanh %98 : vector<8x128xf32>
    %100 = vector.broadcast %18 : vector<1x128xf32> to vector<8x128xf32>
    %101 = arith.mulf %99, %100 : vector<8x128xf32>
    %102 = vector.broadcast %21 : vector<1x128xf32> to vector<8x128xf32>
    %103 = arith.addf %101, %102 : vector<8x128xf32>
    %104 = vector.extract_strided_slice %103 {offsets = [0, 0], sizes = [8, 32], strides = [1, 1]} : vector<8x128xf32> to vector<8x32xf32>
    %105 = vector.extract_strided_slice %103 {offsets = [0, 32], sizes = [8, 32], strides = [1, 1]} : vector<8x128xf32> to vector<8x32xf32>
    %106 = vector.extract_strided_slice %103 {offsets = [0, 64], sizes = [8, 32], strides = [1, 1]} : vector<8x128xf32> to vector<8x32xf32>
    %107 = vector.extract_strided_slice %103 {offsets = [0, 96], sizes = [8, 32], strides = [1, 1]} : vector<8x128xf32> to vector<8x32xf32>
    %108 = arith.mulf %105, %71 : vector<8x32xf32>
    %109 = arith.mulf %104, %106 : vector<8x32xf32>
    %110 = arith.addf %108, %109 : vector<8x32xf32>
    %111 = math.tanh %110 : vector<8x32xf32>
    %112 = arith.mulf %107, %111 : vector<8x32xf32>
    %113 = vector.broadcast %8 : vector<1x32xf32> to vector<8x32xf32>
    %114 = arith.mulf %112, %113 : vector<8x32xf32>
    %cst_29 = arith.constant dense<0.000000e+00> : vector<8xf32>
    %115 = vector.multi_reduction <add>, %114, %cst_29 [1] : vector<8x32xf32> to vector<8xf32>
    %116 = vector.shape_cast %115 : vector<8xf32> to vector<8x1xf32>
    %117 = vector.broadcast %9 : vector<1x1xf32> to vector<8x1xf32>
    %118 = arith.addf %116, %117 : vector<8x1xf32>
    %c0_i32 = arith.constant 0 : i32
    %119 = vector.broadcast %c0_i32 : i32 to vector<8x12xi32>
    %120 = arith.cmpi eq, %72, %119 : vector<8x12xi32>
    %121 = vector.shape_cast %118 : vector<8x1xf32> to vector<8x1xf32>
    %122 = vector.broadcast %121 : vector<8x1xf32> to vector<8x12xf32>
    %123 = arith.select %120, %122, %73 : vector<8x12xi1>, vector<8x12xf32>
    %cst_30 = arith.constant dense<0.000000e+00> : vector<8x128xf32>
    %124 = tpu.matmul %112, %4, %cst_30 {dimension_numbers = #tpu.dot_dimension_numbers<[1], [0], [0], [1], [0, 0, 1, 1], [], []>} : vector<8x32xf32>, vector<32x128xf32>, vector<8x128xf32> -> vector<8x128xf32>
    %cst_31 = arith.constant dense<0.000000e+00> : vector<8x128xf32>
    %125 = tpu.matmul %92, %1, %cst_31 {dimension_numbers = #tpu.dot_dimension_numbers<[1], [0], [0], [1], [0, 0, 1, 1], [], []>} : vector<8x32xf32>, vector<32x128xf32>, vector<8x128xf32> -> vector<8x128xf32>
    %126 = arith.addf %34, %125 : vector<8x128xf32>
    %127 = vector.broadcast %18 : vector<1x128xf32> to vector<8x128xf32>
    %128 = arith.mulf %126, %127 : vector<8x128xf32>
    %129 = math.tanh %128 : vector<8x128xf32>
    %130 = vector.broadcast %18 : vector<1x128xf32> to vector<8x128xf32>
    %131 = arith.mulf %129, %130 : vector<8x128xf32>
    %132 = vector.broadcast %21 : vector<1x128xf32> to vector<8x128xf32>
    %133 = arith.addf %131, %132 : vector<8x128xf32>
    %134 = vector.extract_strided_slice %133 {offsets = [0, 0], sizes = [8, 32], strides = [1, 1]} : vector<8x128xf32> to vector<8x32xf32>
    %135 = vector.extract_strided_slice %133 {offsets = [0, 32], sizes = [8, 32], strides = [1, 1]} : vector<8x128xf32> to vector<8x32xf32>
    %136 = vector.extract_strided_slice %133 {offsets = [0, 64], sizes = [8, 32], strides = [1, 1]} : vector<8x128xf32> to vector<8x32xf32>
    %137 = vector.extract_strided_slice %133 {offsets = [0, 96], sizes = [8, 32], strides = [1, 1]} : vector<8x128xf32> to vector<8x32xf32>
    %138 = arith.mulf %135, %90 : vector<8x32xf32>
    %139 = arith.mulf %134, %136 : vector<8x32xf32>
    %140 = arith.addf %138, %139 : vector<8x32xf32>
    %141 = math.tanh %140 : vector<8x32xf32>
    %142 = arith.mulf %137, %141 : vector<8x32xf32>
    %cst_32 = arith.constant dense<0.000000e+00> : vector<8x128xf32>
    %143 = tpu.matmul %142, %3, %cst_32 {dimension_numbers = #tpu.dot_dimension_numbers<[1], [0], [0], [1], [0, 0, 1, 1], [], []>} : vector<8x32xf32>, vector<32x128xf32>, vector<8x128xf32> -> vector<8x128xf32>
    %144 = arith.addf %143, %124 : vector<8x128xf32>
    %145 = vector.broadcast %5 : vector<1x128xf32> to vector<8x128xf32>
    %146 = arith.addf %144, %145 : vector<8x128xf32>
    %147 = vector.broadcast %18 : vector<1x128xf32> to vector<8x128xf32>
    %148 = arith.mulf %146, %147 : vector<8x128xf32>
    %149 = math.tanh %148 : vector<8x128xf32>
    %150 = vector.broadcast %18 : vector<1x128xf32> to vector<8x128xf32>
    %151 = arith.mulf %149, %150 : vector<8x128xf32>
    %152 = vector.broadcast %21 : vector<1x128xf32> to vector<8x128xf32>
    %153 = arith.addf %151, %152 : vector<8x128xf32>
    %154 = vector.extract_strided_slice %153 {offsets = [0, 0], sizes = [8, 32], strides = [1, 1]} : vector<8x128xf32> to vector<8x32xf32>
    %155 = vector.extract_strided_slice %153 {offsets = [0, 32], sizes = [8, 32], strides = [1, 1]} : vector<8x128xf32> to vector<8x32xf32>
    %156 = vector.extract_strided_slice %153 {offsets = [0, 64], sizes = [8, 32], strides = [1, 1]} : vector<8x128xf32> to vector<8x32xf32>
    %157 = vector.extract_strided_slice %153 {offsets = [0, 96], sizes = [8, 32], strides = [1, 1]} : vector<8x128xf32> to vector<8x32xf32>
    %158 = arith.mulf %155, %110 : vector<8x32xf32>
    %159 = arith.mulf %154, %156 : vector<8x32xf32>
    %160 = arith.addf %158, %159 : vector<8x32xf32>
    %161 = math.tanh %160 : vector<8x32xf32>
    %162 = arith.mulf %157, %161 : vector<8x32xf32>
    %163 = vector.broadcast %8 : vector<1x32xf32> to vector<8x32xf32>
    %164 = arith.mulf %162, %163 : vector<8x32xf32>
    %cst_33 = arith.constant dense<0.000000e+00> : vector<8xf32>
    %165 = vector.multi_reduction <add>, %164, %cst_33 [1] : vector<8x32xf32> to vector<8xf32>
    %166 = vector.shape_cast %165 : vector<8xf32> to vector<8x1xf32>
    %167 = vector.broadcast %9 : vector<1x1xf32> to vector<8x1xf32>
    %168 = arith.addf %166, %167 : vector<8x1xf32>
    %c1_i32 = arith.constant 1 : i32
    %169 = vector.broadcast %c1_i32 : i32 to vector<8x12xi32>
    %170 = arith.cmpi eq, %72, %169 : vector<8x12xi32>
    %171 = vector.shape_cast %168 : vector<8x1xf32> to vector<8x1xf32>
    %172 = vector.broadcast %171 : vector<8x1xf32> to vector<8x12xf32>
    %173 = arith.select %170, %172, %123 : vector<8x12xi1>, vector<8x12xf32>
    %cst_34 = arith.constant dense<0.000000e+00> : vector<8x128xf32>
    %174 = tpu.matmul %162, %4, %cst_34 {dimension_numbers = #tpu.dot_dimension_numbers<[1], [0], [0], [1], [0, 0, 1, 1], [], []>} : vector<8x32xf32>, vector<32x128xf32>, vector<8x128xf32> -> vector<8x128xf32>
    %cst_35 = arith.constant dense<0.000000e+00> : vector<8x128xf32>
    %175 = tpu.matmul %142, %1, %cst_35 {dimension_numbers = #tpu.dot_dimension_numbers<[1], [0], [0], [1], [0, 0, 1, 1], [], []>} : vector<8x32xf32>, vector<32x128xf32>, vector<8x128xf32> -> vector<8x128xf32>
    %176 = arith.addf %40, %175 : vector<8x128xf32>
    %177 = vector.broadcast %18 : vector<1x128xf32> to vector<8x128xf32>
    %178 = arith.mulf %176, %177 : vector<8x128xf32>
    %179 = math.tanh %178 : vector<8x128xf32>
    %180 = vector.broadcast %18 : vector<1x128xf32> to vector<8x128xf32>
    %181 = arith.mulf %179, %180 : vector<8x128xf32>
    %182 = vector.broadcast %21 : vector<1x128xf32> to vector<8x128xf32>
    %183 = arith.addf %181, %182 : vector<8x128xf32>
    %184 = vector.extract_strided_slice %183 {offsets = [0, 0], sizes = [8, 32], strides = [1, 1]} : vector<8x128xf32> to vector<8x32xf32>
    %185 = vector.extract_strided_slice %183 {offsets = [0, 32], sizes = [8, 32], strides = [1, 1]} : vector<8x128xf32> to vector<8x32xf32>
    %186 = vector.extract_strided_slice %183 {offsets = [0, 64], sizes = [8, 32], strides = [1, 1]} : vector<8x128xf32> to vector<8x32xf32>
    %187 = vector.extract_strided_slice %183 {offsets = [0, 96], sizes = [8, 32], strides = [1, 1]} : vector<8x128xf32> to vector<8x32xf32>
    %188 = arith.mulf %185, %140 : vector<8x32xf32>
    %189 = arith.mulf %184, %186 : vector<8x32xf32>
    %190 = arith.addf %188, %189 : vector<8x32xf32>
    %191 = math.tanh %190 : vector<8x32xf32>
    %192 = arith.mulf %187, %191 : vector<8x32xf32>
    %cst_36 = arith.constant dense<0.000000e+00> : vector<8x128xf32>
    %193 = tpu.matmul %192, %3, %cst_36 {dimension_numbers = #tpu.dot_dimension_numbers<[1], [0], [0], [1], [0, 0, 1, 1], [], []>} : vector<8x32xf32>, vector<32x128xf32>, vector<8x128xf32> -> vector<8x128xf32>
    %194 = arith.addf %193, %174 : vector<8x128xf32>
    %195 = vector.broadcast %5 : vector<1x128xf32> to vector<8x128xf32>
    %196 = arith.addf %194, %195 : vector<8x128xf32>
    %197 = vector.broadcast %18 : vector<1x128xf32> to vector<8x128xf32>
    %198 = arith.mulf %196, %197 : vector<8x128xf32>
    %199 = math.tanh %198 : vector<8x128xf32>
    %200 = vector.broadcast %18 : vector<1x128xf32> to vector<8x128xf32>
    %201 = arith.mulf %199, %200 : vector<8x128xf32>
    %202 = vector.broadcast %21 : vector<1x128xf32> to vector<8x128xf32>
    %203 = arith.addf %201, %202 : vector<8x128xf32>
    %204 = vector.extract_strided_slice %203 {offsets = [0, 0], sizes = [8, 32], strides = [1, 1]} : vector<8x128xf32> to vector<8x32xf32>
    %205 = vector.extract_strided_slice %203 {offsets = [0, 32], sizes = [8, 32], strides = [1, 1]} : vector<8x128xf32> to vector<8x32xf32>
    %206 = vector.extract_strided_slice %203 {offsets = [0, 64], sizes = [8, 32], strides = [1, 1]} : vector<8x128xf32> to vector<8x32xf32>
    %207 = vector.extract_strided_slice %203 {offsets = [0, 96], sizes = [8, 32], strides = [1, 1]} : vector<8x128xf32> to vector<8x32xf32>
    %208 = arith.mulf %205, %160 : vector<8x32xf32>
    %209 = arith.mulf %204, %206 : vector<8x32xf32>
    %210 = arith.addf %208, %209 : vector<8x32xf32>
    %211 = math.tanh %210 : vector<8x32xf32>
    %212 = arith.mulf %207, %211 : vector<8x32xf32>
    %213 = vector.broadcast %8 : vector<1x32xf32> to vector<8x32xf32>
    %214 = arith.mulf %212, %213 : vector<8x32xf32>
    %cst_37 = arith.constant dense<0.000000e+00> : vector<8xf32>
    %215 = vector.multi_reduction <add>, %214, %cst_37 [1] : vector<8x32xf32> to vector<8xf32>
    %216 = vector.shape_cast %215 : vector<8xf32> to vector<8x1xf32>
    %217 = vector.broadcast %9 : vector<1x1xf32> to vector<8x1xf32>
    %218 = arith.addf %216, %217 : vector<8x1xf32>
    %c2_i32 = arith.constant 2 : i32
    %219 = vector.broadcast %c2_i32 : i32 to vector<8x12xi32>
    %220 = arith.cmpi eq, %72, %219 : vector<8x12xi32>
    %221 = vector.shape_cast %218 : vector<8x1xf32> to vector<8x1xf32>
    %222 = vector.broadcast %221 : vector<8x1xf32> to vector<8x12xf32>
    %223 = arith.select %220, %222, %173 : vector<8x12xi1>, vector<8x12xf32>
    %cst_38 = arith.constant dense<0.000000e+00> : vector<8x128xf32>
    %224 = tpu.matmul %212, %4, %cst_38 {dimension_numbers = #tpu.dot_dimension_numbers<[1], [0], [0], [1], [0, 0, 1, 1], [], []>} : vector<8x32xf32>, vector<32x128xf32>, vector<8x128xf32> -> vector<8x128xf32>
    %cst_39 = arith.constant dense<0.000000e+00> : vector<8x128xf32>
    %225 = tpu.matmul %192, %1, %cst_39 {dimension_numbers = #tpu.dot_dimension_numbers<[1], [0], [0], [1], [0, 0, 1, 1], [], []>} : vector<8x32xf32>, vector<32x128xf32>, vector<8x128xf32> -> vector<8x128xf32>
    %226 = arith.addf %46, %225 : vector<8x128xf32>
    %227 = vector.broadcast %18 : vector<1x128xf32> to vector<8x128xf32>
    %228 = arith.mulf %226, %227 : vector<8x128xf32>
    %229 = math.tanh %228 : vector<8x128xf32>
    %230 = vector.broadcast %18 : vector<1x128xf32> to vector<8x128xf32>
    %231 = arith.mulf %229, %230 : vector<8x128xf32>
    %232 = vector.broadcast %21 : vector<1x128xf32> to vector<8x128xf32>
    %233 = arith.addf %231, %232 : vector<8x128xf32>
    %234 = vector.extract_strided_slice %233 {offsets = [0, 0], sizes = [8, 32], strides = [1, 1]} : vector<8x128xf32> to vector<8x32xf32>
    %235 = vector.extract_strided_slice %233 {offsets = [0, 32], sizes = [8, 32], strides = [1, 1]} : vector<8x128xf32> to vector<8x32xf32>
    %236 = vector.extract_strided_slice %233 {offsets = [0, 64], sizes = [8, 32], strides = [1, 1]} : vector<8x128xf32> to vector<8x32xf32>
    %237 = vector.extract_strided_slice %233 {offsets = [0, 96], sizes = [8, 32], strides = [1, 1]} : vector<8x128xf32> to vector<8x32xf32>
    %238 = arith.mulf %235, %190 : vector<8x32xf32>
    %239 = arith.mulf %234, %236 : vector<8x32xf32>
    %240 = arith.addf %238, %239 : vector<8x32xf32>
    %241 = math.tanh %240 : vector<8x32xf32>
    %242 = arith.mulf %237, %241 : vector<8x32xf32>
    %cst_40 = arith.constant dense<0.000000e+00> : vector<8x128xf32>
    %243 = tpu.matmul %242, %3, %cst_40 {dimension_numbers = #tpu.dot_dimension_numbers<[1], [0], [0], [1], [0, 0, 1, 1], [], []>} : vector<8x32xf32>, vector<32x128xf32>, vector<8x128xf32> -> vector<8x128xf32>
    %244 = arith.addf %243, %224 : vector<8x128xf32>
    %245 = vector.broadcast %5 : vector<1x128xf32> to vector<8x128xf32>
    %246 = arith.addf %244, %245 : vector<8x128xf32>
    %247 = vector.broadcast %18 : vector<1x128xf32> to vector<8x128xf32>
    %248 = arith.mulf %246, %247 : vector<8x128xf32>
    %249 = math.tanh %248 : vector<8x128xf32>
    %250 = vector.broadcast %18 : vector<1x128xf32> to vector<8x128xf32>
    %251 = arith.mulf %249, %250 : vector<8x128xf32>
    %252 = vector.broadcast %21 : vector<1x128xf32> to vector<8x128xf32>
    %253 = arith.addf %251, %252 : vector<8x128xf32>
    %254 = vector.extract_strided_slice %253 {offsets = [0, 0], sizes = [8, 32], strides = [1, 1]} : vector<8x128xf32> to vector<8x32xf32>
    %255 = vector.extract_strided_slice %253 {offsets = [0, 32], sizes = [8, 32], strides = [1, 1]} : vector<8x128xf32> to vector<8x32xf32>
    %256 = vector.extract_strided_slice %253 {offsets = [0, 64], sizes = [8, 32], strides = [1, 1]} : vector<8x128xf32> to vector<8x32xf32>
    %257 = vector.extract_strided_slice %253 {offsets = [0, 96], sizes = [8, 32], strides = [1, 1]} : vector<8x128xf32> to vector<8x32xf32>
    %258 = arith.mulf %255, %210 : vector<8x32xf32>
    %259 = arith.mulf %254, %256 : vector<8x32xf32>
    %260 = arith.addf %258, %259 : vector<8x32xf32>
    %261 = math.tanh %260 : vector<8x32xf32>
    %262 = arith.mulf %257, %261 : vector<8x32xf32>
    %263 = vector.broadcast %8 : vector<1x32xf32> to vector<8x32xf32>
    %264 = arith.mulf %262, %263 : vector<8x32xf32>
    %cst_41 = arith.constant dense<0.000000e+00> : vector<8xf32>
    %265 = vector.multi_reduction <add>, %264, %cst_41 [1] : vector<8x32xf32> to vector<8xf32>
    %266 = vector.shape_cast %265 : vector<8xf32> to vector<8x1xf32>
    %267 = vector.broadcast %9 : vector<1x1xf32> to vector<8x1xf32>
    %268 = arith.addf %266, %267 : vector<8x1xf32>
    %c3_i32 = arith.constant 3 : i32
    %269 = vector.broadcast %c3_i32 : i32 to vector<8x12xi32>
    %270 = arith.cmpi eq, %72, %269 : vector<8x12xi32>
    %271 = vector.shape_cast %268 : vector<8x1xf32> to vector<8x1xf32>
    %272 = vector.broadcast %271 : vector<8x1xf32> to vector<8x12xf32>
    %273 = arith.select %270, %272, %223 : vector<8x12xi1>, vector<8x12xf32>
    %cst_42 = arith.constant dense<0.000000e+00> : vector<8x128xf32>
    %274 = tpu.matmul %262, %4, %cst_42 {dimension_numbers = #tpu.dot_dimension_numbers<[1], [0], [0], [1], [0, 0, 1, 1], [], []>} : vector<8x32xf32>, vector<32x128xf32>, vector<8x128xf32> -> vector<8x128xf32>
    %cst_43 = arith.constant dense<0.000000e+00> : vector<8x128xf32>
    %275 = tpu.matmul %242, %1, %cst_43 {dimension_numbers = #tpu.dot_dimension_numbers<[1], [0], [0], [1], [0, 0, 1, 1], [], []>} : vector<8x32xf32>, vector<32x128xf32>, vector<8x128xf32> -> vector<8x128xf32>
    %276 = arith.addf %52, %275 : vector<8x128xf32>
    %277 = vector.broadcast %18 : vector<1x128xf32> to vector<8x128xf32>
    %278 = arith.mulf %276, %277 : vector<8x128xf32>
    %279 = math.tanh %278 : vector<8x128xf32>
    %280 = vector.broadcast %18 : vector<1x128xf32> to vector<8x128xf32>
    %281 = arith.mulf %279, %280 : vector<8x128xf32>
    %282 = vector.broadcast %21 : vector<1x128xf32> to vector<8x128xf32>
    %283 = arith.addf %281, %282 : vector<8x128xf32>
    %284 = vector.extract_strided_slice %283 {offsets = [0, 0], sizes = [8, 32], strides = [1, 1]} : vector<8x128xf32> to vector<8x32xf32>
    %285 = vector.extract_strided_slice %283 {offsets = [0, 32], sizes = [8, 32], strides = [1, 1]} : vector<8x128xf32> to vector<8x32xf32>
    %286 = vector.extract_strided_slice %283 {offsets = [0, 64], sizes = [8, 32], strides = [1, 1]} : vector<8x128xf32> to vector<8x32xf32>
    %287 = vector.extract_strided_slice %283 {offsets = [0, 96], sizes = [8, 32], strides = [1, 1]} : vector<8x128xf32> to vector<8x32xf32>
    %288 = arith.mulf %285, %240 : vector<8x32xf32>
    %289 = arith.mulf %284, %286 : vector<8x32xf32>
    %290 = arith.addf %288, %289 : vector<8x32xf32>
    %291 = math.tanh %290 : vector<8x32xf32>
    %292 = arith.mulf %287, %291 : vector<8x32xf32>
    %cst_44 = arith.constant dense<0.000000e+00> : vector<8x128xf32>
    %293 = tpu.matmul %292, %3, %cst_44 {dimension_numbers = #tpu.dot_dimension_numbers<[1], [0], [0], [1], [0, 0, 1, 1], [], []>} : vector<8x32xf32>, vector<32x128xf32>, vector<8x128xf32> -> vector<8x128xf32>
    %294 = arith.addf %293, %274 : vector<8x128xf32>
    %295 = vector.broadcast %5 : vector<1x128xf32> to vector<8x128xf32>
    %296 = arith.addf %294, %295 : vector<8x128xf32>
    %297 = vector.broadcast %18 : vector<1x128xf32> to vector<8x128xf32>
    %298 = arith.mulf %296, %297 : vector<8x128xf32>
    %299 = math.tanh %298 : vector<8x128xf32>
    %300 = vector.broadcast %18 : vector<1x128xf32> to vector<8x128xf32>
    %301 = arith.mulf %299, %300 : vector<8x128xf32>
    %302 = vector.broadcast %21 : vector<1x128xf32> to vector<8x128xf32>
    %303 = arith.addf %301, %302 : vector<8x128xf32>
    %304 = vector.extract_strided_slice %303 {offsets = [0, 0], sizes = [8, 32], strides = [1, 1]} : vector<8x128xf32> to vector<8x32xf32>
    %305 = vector.extract_strided_slice %303 {offsets = [0, 32], sizes = [8, 32], strides = [1, 1]} : vector<8x128xf32> to vector<8x32xf32>
    %306 = vector.extract_strided_slice %303 {offsets = [0, 64], sizes = [8, 32], strides = [1, 1]} : vector<8x128xf32> to vector<8x32xf32>
    %307 = vector.extract_strided_slice %303 {offsets = [0, 96], sizes = [8, 32], strides = [1, 1]} : vector<8x128xf32> to vector<8x32xf32>
    %308 = arith.mulf %305, %260 : vector<8x32xf32>
    %309 = arith.mulf %304, %306 : vector<8x32xf32>
    %310 = arith.addf %308, %309 : vector<8x32xf32>
    %311 = math.tanh %310 : vector<8x32xf32>
    %312 = arith.mulf %307, %311 : vector<8x32xf32>
    %313 = vector.broadcast %8 : vector<1x32xf32> to vector<8x32xf32>
    %314 = arith.mulf %312, %313 : vector<8x32xf32>
    %cst_45 = arith.constant dense<0.000000e+00> : vector<8xf32>
    %315 = vector.multi_reduction <add>, %314, %cst_45 [1] : vector<8x32xf32> to vector<8xf32>
    %316 = vector.shape_cast %315 : vector<8xf32> to vector<8x1xf32>
    %317 = vector.broadcast %9 : vector<1x1xf32> to vector<8x1xf32>
    %318 = arith.addf %316, %317 : vector<8x1xf32>
    %c4_i32 = arith.constant 4 : i32
    %319 = vector.broadcast %c4_i32 : i32 to vector<8x12xi32>
    %320 = arith.cmpi eq, %72, %319 : vector<8x12xi32>
    %321 = vector.shape_cast %318 : vector<8x1xf32> to vector<8x1xf32>
    %322 = vector.broadcast %321 : vector<8x1xf32> to vector<8x12xf32>
    %323 = arith.select %320, %322, %273 : vector<8x12xi1>, vector<8x12xf32>
    %cst_46 = arith.constant dense<0.000000e+00> : vector<8x128xf32>
    %324 = tpu.matmul %312, %4, %cst_46 {dimension_numbers = #tpu.dot_dimension_numbers<[1], [0], [0], [1], [0, 0, 1, 1], [], []>} : vector<8x32xf32>, vector<32x128xf32>, vector<8x128xf32> -> vector<8x128xf32>
    %cst_47 = arith.constant dense<0.000000e+00> : vector<8x128xf32>
    %325 = tpu.matmul %292, %1, %cst_47 {dimension_numbers = #tpu.dot_dimension_numbers<[1], [0], [0], [1], [0, 0, 1, 1], [], []>} : vector<8x32xf32>, vector<32x128xf32>, vector<8x128xf32> -> vector<8x128xf32>
    %326 = arith.addf %58, %325 : vector<8x128xf32>
    %327 = vector.broadcast %18 : vector<1x128xf32> to vector<8x128xf32>
    %328 = arith.mulf %326, %327 : vector<8x128xf32>
    %329 = math.tanh %328 : vector<8x128xf32>
    %330 = vector.broadcast %18 : vector<1x128xf32> to vector<8x128xf32>
    %331 = arith.mulf %329, %330 : vector<8x128xf32>
    %332 = vector.broadcast %21 : vector<1x128xf32> to vector<8x128xf32>
    %333 = arith.addf %331, %332 : vector<8x128xf32>
    %334 = vector.extract_strided_slice %333 {offsets = [0, 0], sizes = [8, 32], strides = [1, 1]} : vector<8x128xf32> to vector<8x32xf32>
    %335 = vector.extract_strided_slice %333 {offsets = [0, 32], sizes = [8, 32], strides = [1, 1]} : vector<8x128xf32> to vector<8x32xf32>
    %336 = vector.extract_strided_slice %333 {offsets = [0, 64], sizes = [8, 32], strides = [1, 1]} : vector<8x128xf32> to vector<8x32xf32>
    %337 = vector.extract_strided_slice %333 {offsets = [0, 96], sizes = [8, 32], strides = [1, 1]} : vector<8x128xf32> to vector<8x32xf32>
    %338 = arith.mulf %335, %290 : vector<8x32xf32>
    %339 = arith.mulf %334, %336 : vector<8x32xf32>
    %340 = arith.addf %338, %339 : vector<8x32xf32>
    %341 = math.tanh %340 : vector<8x32xf32>
    %342 = arith.mulf %337, %341 : vector<8x32xf32>
    %cst_48 = arith.constant dense<0.000000e+00> : vector<8x128xf32>
    %343 = tpu.matmul %342, %3, %cst_48 {dimension_numbers = #tpu.dot_dimension_numbers<[1], [0], [0], [1], [0, 0, 1, 1], [], []>} : vector<8x32xf32>, vector<32x128xf32>, vector<8x128xf32> -> vector<8x128xf32>
    %344 = arith.addf %343, %324 : vector<8x128xf32>
    %345 = vector.broadcast %5 : vector<1x128xf32> to vector<8x128xf32>
    %346 = arith.addf %344, %345 : vector<8x128xf32>
    %347 = vector.broadcast %18 : vector<1x128xf32> to vector<8x128xf32>
    %348 = arith.mulf %346, %347 : vector<8x128xf32>
    %349 = math.tanh %348 : vector<8x128xf32>
    %350 = vector.broadcast %18 : vector<1x128xf32> to vector<8x128xf32>
    %351 = arith.mulf %349, %350 : vector<8x128xf32>
    %352 = vector.broadcast %21 : vector<1x128xf32> to vector<8x128xf32>
    %353 = arith.addf %351, %352 : vector<8x128xf32>
    %354 = vector.extract_strided_slice %353 {offsets = [0, 0], sizes = [8, 32], strides = [1, 1]} : vector<8x128xf32> to vector<8x32xf32>
    %355 = vector.extract_strided_slice %353 {offsets = [0, 32], sizes = [8, 32], strides = [1, 1]} : vector<8x128xf32> to vector<8x32xf32>
    %356 = vector.extract_strided_slice %353 {offsets = [0, 64], sizes = [8, 32], strides = [1, 1]} : vector<8x128xf32> to vector<8x32xf32>
    %357 = vector.extract_strided_slice %353 {offsets = [0, 96], sizes = [8, 32], strides = [1, 1]} : vector<8x128xf32> to vector<8x32xf32>
    %358 = arith.mulf %355, %310 : vector<8x32xf32>
    %359 = arith.mulf %354, %356 : vector<8x32xf32>
    %360 = arith.addf %358, %359 : vector<8x32xf32>
    %361 = math.tanh %360 : vector<8x32xf32>
    %362 = arith.mulf %357, %361 : vector<8x32xf32>
    %363 = vector.broadcast %8 : vector<1x32xf32> to vector<8x32xf32>
    %364 = arith.mulf %362, %363 : vector<8x32xf32>
    %cst_49 = arith.constant dense<0.000000e+00> : vector<8xf32>
    %365 = vector.multi_reduction <add>, %364, %cst_49 [1] : vector<8x32xf32> to vector<8xf32>
    %366 = vector.shape_cast %365 : vector<8xf32> to vector<8x1xf32>
    %367 = vector.broadcast %9 : vector<1x1xf32> to vector<8x1xf32>
    %368 = arith.addf %366, %367 : vector<8x1xf32>
    %c5_i32 = arith.constant 5 : i32
    %369 = vector.broadcast %c5_i32 : i32 to vector<8x12xi32>
    %370 = arith.cmpi eq, %72, %369 : vector<8x12xi32>
    %371 = vector.shape_cast %368 : vector<8x1xf32> to vector<8x1xf32>
    %372 = vector.broadcast %371 : vector<8x1xf32> to vector<8x12xf32>
    %373 = arith.select %370, %372, %323 : vector<8x12xi1>, vector<8x12xf32>
    %cst_50 = arith.constant dense<0.000000e+00> : vector<8x128xf32>
    %374 = tpu.matmul %362, %4, %cst_50 {dimension_numbers = #tpu.dot_dimension_numbers<[1], [0], [0], [1], [0, 0, 1, 1], [], []>} : vector<8x32xf32>, vector<32x128xf32>, vector<8x128xf32> -> vector<8x128xf32>
    %cst_51 = arith.constant dense<0.000000e+00> : vector<8x128xf32>
    %375 = tpu.matmul %342, %1, %cst_51 {dimension_numbers = #tpu.dot_dimension_numbers<[1], [0], [0], [1], [0, 0, 1, 1], [], []>} : vector<8x32xf32>, vector<32x128xf32>, vector<8x128xf32> -> vector<8x128xf32>
    %376 = arith.addf %64, %375 : vector<8x128xf32>
    %377 = vector.broadcast %18 : vector<1x128xf32> to vector<8x128xf32>
    %378 = arith.mulf %376, %377 : vector<8x128xf32>
    %379 = math.tanh %378 : vector<8x128xf32>
    %380 = vector.broadcast %18 : vector<1x128xf32> to vector<8x128xf32>
    %381 = arith.mulf %379, %380 : vector<8x128xf32>
    %382 = vector.broadcast %21 : vector<1x128xf32> to vector<8x128xf32>
    %383 = arith.addf %381, %382 : vector<8x128xf32>
    %384 = vector.extract_strided_slice %383 {offsets = [0, 0], sizes = [8, 32], strides = [1, 1]} : vector<8x128xf32> to vector<8x32xf32>
    %385 = vector.extract_strided_slice %383 {offsets = [0, 32], sizes = [8, 32], strides = [1, 1]} : vector<8x128xf32> to vector<8x32xf32>
    %386 = vector.extract_strided_slice %383 {offsets = [0, 64], sizes = [8, 32], strides = [1, 1]} : vector<8x128xf32> to vector<8x32xf32>
    %387 = vector.extract_strided_slice %383 {offsets = [0, 96], sizes = [8, 32], strides = [1, 1]} : vector<8x128xf32> to vector<8x32xf32>
    %388 = arith.mulf %385, %340 : vector<8x32xf32>
    %389 = arith.mulf %384, %386 : vector<8x32xf32>
    %390 = arith.addf %388, %389 : vector<8x32xf32>
    %391 = math.tanh %390 : vector<8x32xf32>
    %392 = arith.mulf %387, %391 : vector<8x32xf32>
    %cst_52 = arith.constant dense<0.000000e+00> : vector<8x128xf32>
    %393 = tpu.matmul %392, %3, %cst_52 {dimension_numbers = #tpu.dot_dimension_numbers<[1], [0], [0], [1], [0, 0, 1, 1], [], []>} : vector<8x32xf32>, vector<32x128xf32>, vector<8x128xf32> -> vector<8x128xf32>
    %394 = arith.addf %393, %374 : vector<8x128xf32>
    %395 = vector.broadcast %5 : vector<1x128xf32> to vector<8x128xf32>
    %396 = arith.addf %394, %395 : vector<8x128xf32>
    %397 = vector.broadcast %18 : vector<1x128xf32> to vector<8x128xf32>
    %398 = arith.mulf %396, %397 : vector<8x128xf32>
    %399 = math.tanh %398 : vector<8x128xf32>
    %400 = vector.broadcast %18 : vector<1x128xf32> to vector<8x128xf32>
    %401 = arith.mulf %399, %400 : vector<8x128xf32>
    %402 = vector.broadcast %21 : vector<1x128xf32> to vector<8x128xf32>
    %403 = arith.addf %401, %402 : vector<8x128xf32>
    %404 = vector.extract_strided_slice %403 {offsets = [0, 0], sizes = [8, 32], strides = [1, 1]} : vector<8x128xf32> to vector<8x32xf32>
    %405 = vector.extract_strided_slice %403 {offsets = [0, 32], sizes = [8, 32], strides = [1, 1]} : vector<8x128xf32> to vector<8x32xf32>
    %406 = vector.extract_strided_slice %403 {offsets = [0, 64], sizes = [8, 32], strides = [1, 1]} : vector<8x128xf32> to vector<8x32xf32>
    %407 = vector.extract_strided_slice %403 {offsets = [0, 96], sizes = [8, 32], strides = [1, 1]} : vector<8x128xf32> to vector<8x32xf32>
    %408 = arith.mulf %405, %360 : vector<8x32xf32>
    %409 = arith.mulf %404, %406 : vector<8x32xf32>
    %410 = arith.addf %408, %409 : vector<8x32xf32>
    %411 = math.tanh %410 : vector<8x32xf32>
    %412 = arith.mulf %407, %411 : vector<8x32xf32>
    %413 = vector.broadcast %8 : vector<1x32xf32> to vector<8x32xf32>
    %414 = arith.mulf %412, %413 : vector<8x32xf32>
    %cst_53 = arith.constant dense<0.000000e+00> : vector<8xf32>
    %415 = vector.multi_reduction <add>, %414, %cst_53 [1] : vector<8x32xf32> to vector<8xf32>
    %416 = vector.shape_cast %415 : vector<8xf32> to vector<8x1xf32>
    %417 = vector.broadcast %9 : vector<1x1xf32> to vector<8x1xf32>
    %418 = arith.addf %416, %417 : vector<8x1xf32>
    %c6_i32 = arith.constant 6 : i32
    %419 = vector.broadcast %c6_i32 : i32 to vector<8x12xi32>
    %420 = arith.cmpi eq, %72, %419 : vector<8x12xi32>
    %421 = vector.shape_cast %418 : vector<8x1xf32> to vector<8x1xf32>
    %422 = vector.broadcast %421 : vector<8x1xf32> to vector<8x12xf32>
    %423 = arith.select %420, %422, %373 : vector<8x12xi1>, vector<8x12xf32>
    %cst_54 = arith.constant dense<0.000000e+00> : vector<8x128xf32>
    %424 = tpu.matmul %412, %4, %cst_54 {dimension_numbers = #tpu.dot_dimension_numbers<[1], [0], [0], [1], [0, 0, 1, 1], [], []>} : vector<8x32xf32>, vector<32x128xf32>, vector<8x128xf32> -> vector<8x128xf32>
    %cst_55 = arith.constant dense<0.000000e+00> : vector<8x128xf32>
    %425 = tpu.matmul %392, %1, %cst_55 {dimension_numbers = #tpu.dot_dimension_numbers<[1], [0], [0], [1], [0, 0, 1, 1], [], []>} : vector<8x32xf32>, vector<32x128xf32>, vector<8x128xf32> -> vector<8x128xf32>
    %426 = arith.addf %70, %425 : vector<8x128xf32>
    %427 = vector.broadcast %18 : vector<1x128xf32> to vector<8x128xf32>
    %428 = arith.mulf %426, %427 : vector<8x128xf32>
    %429 = math.tanh %428 : vector<8x128xf32>
    %430 = vector.broadcast %18 : vector<1x128xf32> to vector<8x128xf32>
    %431 = arith.mulf %429, %430 : vector<8x128xf32>
    %432 = vector.broadcast %21 : vector<1x128xf32> to vector<8x128xf32>
    %433 = arith.addf %431, %432 : vector<8x128xf32>
    %434 = vector.extract_strided_slice %433 {offsets = [0, 0], sizes = [8, 32], strides = [1, 1]} : vector<8x128xf32> to vector<8x32xf32>
    %435 = vector.extract_strided_slice %433 {offsets = [0, 32], sizes = [8, 32], strides = [1, 1]} : vector<8x128xf32> to vector<8x32xf32>
    %436 = vector.extract_strided_slice %433 {offsets = [0, 64], sizes = [8, 32], strides = [1, 1]} : vector<8x128xf32> to vector<8x32xf32>
    %437 = vector.extract_strided_slice %433 {offsets = [0, 96], sizes = [8, 32], strides = [1, 1]} : vector<8x128xf32> to vector<8x32xf32>
    %438 = arith.mulf %435, %390 : vector<8x32xf32>
    %439 = arith.mulf %434, %436 : vector<8x32xf32>
    %440 = arith.addf %438, %439 : vector<8x32xf32>
    %441 = math.tanh %440 : vector<8x32xf32>
    %442 = arith.mulf %437, %441 : vector<8x32xf32>
    %cst_56 = arith.constant dense<0.000000e+00> : vector<8x128xf32>
    %443 = tpu.matmul %442, %3, %cst_56 {dimension_numbers = #tpu.dot_dimension_numbers<[1], [0], [0], [1], [0, 0, 1, 1], [], []>} : vector<8x32xf32>, vector<32x128xf32>, vector<8x128xf32> -> vector<8x128xf32>
    %444 = arith.addf %443, %424 : vector<8x128xf32>
    %445 = vector.broadcast %5 : vector<1x128xf32> to vector<8x128xf32>
    %446 = arith.addf %444, %445 : vector<8x128xf32>
    %447 = vector.broadcast %18 : vector<1x128xf32> to vector<8x128xf32>
    %448 = arith.mulf %446, %447 : vector<8x128xf32>
    %449 = math.tanh %448 : vector<8x128xf32>
    %450 = vector.broadcast %18 : vector<1x128xf32> to vector<8x128xf32>
    %451 = arith.mulf %449, %450 : vector<8x128xf32>
    %452 = vector.broadcast %21 : vector<1x128xf32> to vector<8x128xf32>
    %453 = arith.addf %451, %452 : vector<8x128xf32>
    %454 = vector.extract_strided_slice %453 {offsets = [0, 0], sizes = [8, 32], strides = [1, 1]} : vector<8x128xf32> to vector<8x32xf32>
    %455 = vector.extract_strided_slice %453 {offsets = [0, 32], sizes = [8, 32], strides = [1, 1]} : vector<8x128xf32> to vector<8x32xf32>
    %456 = vector.extract_strided_slice %453 {offsets = [0, 64], sizes = [8, 32], strides = [1, 1]} : vector<8x128xf32> to vector<8x32xf32>
    %457 = vector.extract_strided_slice %453 {offsets = [0, 96], sizes = [8, 32], strides = [1, 1]} : vector<8x128xf32> to vector<8x32xf32>
    %458 = arith.mulf %455, %410 : vector<8x32xf32>
    %459 = arith.mulf %454, %456 : vector<8x32xf32>
    %460 = arith.addf %458, %459 : vector<8x32xf32>
    %461 = math.tanh %460 : vector<8x32xf32>
    %462 = arith.mulf %457, %461 : vector<8x32xf32>
    %463 = vector.broadcast %8 : vector<1x32xf32> to vector<8x32xf32>
    %464 = arith.mulf %462, %463 : vector<8x32xf32>
    %cst_57 = arith.constant dense<0.000000e+00> : vector<8xf32>
    %465 = vector.multi_reduction <add>, %464, %cst_57 [1] : vector<8x32xf32> to vector<8xf32>
    %466 = vector.shape_cast %465 : vector<8xf32> to vector<8x1xf32>
    %467 = vector.broadcast %9 : vector<1x1xf32> to vector<8x1xf32>
    %468 = arith.addf %466, %467 : vector<8x1xf32>
    %c7_i32 = arith.constant 7 : i32
    %469 = vector.broadcast %c7_i32 : i32 to vector<8x12xi32>
    %470 = arith.cmpi eq, %72, %469 : vector<8x12xi32>
    %471 = vector.shape_cast %468 : vector<8x1xf32> to vector<8x1xf32>
    %472 = vector.broadcast %471 : vector<8x1xf32> to vector<8x12xf32>
    %473 = arith.select %470, %472, %423 : vector<8x12xi1>, vector<8x12xf32>
    %cst_58 = arith.constant dense<0.000000e+00> : vector<8x128xf32>
    %474 = tpu.matmul %462, %4, %cst_58 {dimension_numbers = #tpu.dot_dimension_numbers<[1], [0], [0], [1], [0, 0, 1, 1], [], []>} : vector<8x32xf32>, vector<32x128xf32>, vector<8x128xf32> -> vector<8x128xf32>
    %cst_59 = arith.constant dense<0.000000e+00> : vector<8x128xf32>
    %475 = tpu.matmul %442, %1, %cst_59 {dimension_numbers = #tpu.dot_dimension_numbers<[1], [0], [0], [1], [0, 0, 1, 1], [], []>} : vector<8x32xf32>, vector<32x128xf32>, vector<8x128xf32> -> vector<8x128xf32>
    %cst_60 = arith.constant dense<0.000000e+00> : vector<8x128xf32>
    %476 = tpu.matmul %462, %6, %cst_60 {dimension_numbers = #tpu.dot_dimension_numbers<[1], [0], [0], [1], [0, 0, 1, 1], [], []>} : vector<8x32xf32>, vector<32x128xf32>, vector<8x128xf32> -> vector<8x128xf32>
    %477 = arith.addf %475, %476 : vector<8x128xf32>
    %478 = vector.broadcast %7 : vector<1x128xf32> to vector<8x128xf32>
    %479 = arith.addf %477, %478 : vector<8x128xf32>
    %480 = vector.broadcast %18 : vector<1x128xf32> to vector<8x128xf32>
    %481 = arith.mulf %479, %480 : vector<8x128xf32>
    %482 = math.tanh %481 : vector<8x128xf32>
    %483 = vector.broadcast %18 : vector<1x128xf32> to vector<8x128xf32>
    %484 = arith.mulf %482, %483 : vector<8x128xf32>
    %485 = vector.broadcast %21 : vector<1x128xf32> to vector<8x128xf32>
    %486 = arith.addf %484, %485 : vector<8x128xf32>
    %487 = vector.extract_strided_slice %486 {offsets = [0, 0], sizes = [8, 32], strides = [1, 1]} : vector<8x128xf32> to vector<8x32xf32>
    %488 = vector.extract_strided_slice %486 {offsets = [0, 32], sizes = [8, 32], strides = [1, 1]} : vector<8x128xf32> to vector<8x32xf32>
    %489 = vector.extract_strided_slice %486 {offsets = [0, 64], sizes = [8, 32], strides = [1, 1]} : vector<8x128xf32> to vector<8x32xf32>
    %490 = vector.extract_strided_slice %486 {offsets = [0, 96], sizes = [8, 32], strides = [1, 1]} : vector<8x128xf32> to vector<8x32xf32>
    %491 = arith.mulf %488, %440 : vector<8x32xf32>
    %492 = arith.mulf %487, %489 : vector<8x32xf32>
    %493 = arith.addf %491, %492 : vector<8x32xf32>
    %494 = math.tanh %493 : vector<8x32xf32>
    %495 = arith.mulf %490, %494 : vector<8x32xf32>
    %cst_61 = arith.constant dense<0.000000e+00> : vector<8x128xf32>
    %496 = tpu.matmul %495, %3, %cst_61 {dimension_numbers = #tpu.dot_dimension_numbers<[1], [0], [0], [1], [0, 0, 1, 1], [], []>} : vector<8x32xf32>, vector<32x128xf32>, vector<8x128xf32> -> vector<8x128xf32>
    %497 = arith.addf %496, %474 : vector<8x128xf32>
    %498 = vector.broadcast %5 : vector<1x128xf32> to vector<8x128xf32>
    %499 = arith.addf %497, %498 : vector<8x128xf32>
    %500 = vector.broadcast %18 : vector<1x128xf32> to vector<8x128xf32>
    %501 = arith.mulf %499, %500 : vector<8x128xf32>
    %502 = math.tanh %501 : vector<8x128xf32>
    %503 = vector.broadcast %18 : vector<1x128xf32> to vector<8x128xf32>
    %504 = arith.mulf %502, %503 : vector<8x128xf32>
    %505 = vector.broadcast %21 : vector<1x128xf32> to vector<8x128xf32>
    %506 = arith.addf %504, %505 : vector<8x128xf32>
    %507 = vector.extract_strided_slice %506 {offsets = [0, 0], sizes = [8, 32], strides = [1, 1]} : vector<8x128xf32> to vector<8x32xf32>
    %508 = vector.extract_strided_slice %506 {offsets = [0, 32], sizes = [8, 32], strides = [1, 1]} : vector<8x128xf32> to vector<8x32xf32>
    %509 = vector.extract_strided_slice %506 {offsets = [0, 64], sizes = [8, 32], strides = [1, 1]} : vector<8x128xf32> to vector<8x32xf32>
    %510 = vector.extract_strided_slice %506 {offsets = [0, 96], sizes = [8, 32], strides = [1, 1]} : vector<8x128xf32> to vector<8x32xf32>
    %511 = arith.mulf %508, %460 : vector<8x32xf32>
    %512 = arith.mulf %507, %509 : vector<8x32xf32>
    %513 = arith.addf %511, %512 : vector<8x32xf32>
    %514 = math.tanh %513 : vector<8x32xf32>
    %515 = arith.mulf %510, %514 : vector<8x32xf32>
    %516 = vector.broadcast %8 : vector<1x32xf32> to vector<8x32xf32>
    %517 = arith.mulf %515, %516 : vector<8x32xf32>
    %cst_62 = arith.constant dense<0.000000e+00> : vector<8xf32>
    %518 = vector.multi_reduction <add>, %517, %cst_62 [1] : vector<8x32xf32> to vector<8xf32>
    %519 = vector.shape_cast %518 : vector<8xf32> to vector<8x1xf32>
    %520 = vector.broadcast %9 : vector<1x1xf32> to vector<8x1xf32>
    %521 = arith.addf %519, %520 : vector<8x1xf32>
    %c8_i32 = arith.constant 8 : i32
    %522 = vector.broadcast %c8_i32 : i32 to vector<8x12xi32>
    %523 = arith.cmpi eq, %72, %522 : vector<8x12xi32>
    %524 = vector.shape_cast %521 : vector<8x1xf32> to vector<8x1xf32>
    %525 = vector.broadcast %524 : vector<8x1xf32> to vector<8x12xf32>
    %526 = arith.select %523, %525, %473 : vector<8x12xi1>, vector<8x12xf32>
    %cst_63 = arith.constant dense<0.000000e+00> : vector<8x128xf32>
    %527 = tpu.matmul %515, %4, %cst_63 {dimension_numbers = #tpu.dot_dimension_numbers<[1], [0], [0], [1], [0, 0, 1, 1], [], []>} : vector<8x32xf32>, vector<32x128xf32>, vector<8x128xf32> -> vector<8x128xf32>
    %cst_64 = arith.constant dense<0.000000e+00> : vector<8x128xf32>
    %528 = tpu.matmul %495, %1, %cst_64 {dimension_numbers = #tpu.dot_dimension_numbers<[1], [0], [0], [1], [0, 0, 1, 1], [], []>} : vector<8x32xf32>, vector<32x128xf32>, vector<8x128xf32> -> vector<8x128xf32>
    %cst_65 = arith.constant dense<0.000000e+00> : vector<8x128xf32>
    %529 = tpu.matmul %515, %6, %cst_65 {dimension_numbers = #tpu.dot_dimension_numbers<[1], [0], [0], [1], [0, 0, 1, 1], [], []>} : vector<8x32xf32>, vector<32x128xf32>, vector<8x128xf32> -> vector<8x128xf32>
    %530 = arith.addf %528, %529 : vector<8x128xf32>
    %531 = vector.broadcast %7 : vector<1x128xf32> to vector<8x128xf32>
    %532 = arith.addf %530, %531 : vector<8x128xf32>
    %533 = vector.broadcast %18 : vector<1x128xf32> to vector<8x128xf32>
    %534 = arith.mulf %532, %533 : vector<8x128xf32>
    %535 = math.tanh %534 : vector<8x128xf32>
    %536 = vector.broadcast %18 : vector<1x128xf32> to vector<8x128xf32>
    %537 = arith.mulf %535, %536 : vector<8x128xf32>
    %538 = vector.broadcast %21 : vector<1x128xf32> to vector<8x128xf32>
    %539 = arith.addf %537, %538 : vector<8x128xf32>
    %540 = vector.extract_strided_slice %539 {offsets = [0, 0], sizes = [8, 32], strides = [1, 1]} : vector<8x128xf32> to vector<8x32xf32>
    %541 = vector.extract_strided_slice %539 {offsets = [0, 32], sizes = [8, 32], strides = [1, 1]} : vector<8x128xf32> to vector<8x32xf32>
    %542 = vector.extract_strided_slice %539 {offsets = [0, 64], sizes = [8, 32], strides = [1, 1]} : vector<8x128xf32> to vector<8x32xf32>
    %543 = vector.extract_strided_slice %539 {offsets = [0, 96], sizes = [8, 32], strides = [1, 1]} : vector<8x128xf32> to vector<8x32xf32>
    %544 = arith.mulf %541, %493 : vector<8x32xf32>
    %545 = arith.mulf %540, %542 : vector<8x32xf32>
    %546 = arith.addf %544, %545 : vector<8x32xf32>
    %547 = math.tanh %546 : vector<8x32xf32>
    %548 = arith.mulf %543, %547 : vector<8x32xf32>
    %cst_66 = arith.constant dense<0.000000e+00> : vector<8x128xf32>
    %549 = tpu.matmul %548, %3, %cst_66 {dimension_numbers = #tpu.dot_dimension_numbers<[1], [0], [0], [1], [0, 0, 1, 1], [], []>} : vector<8x32xf32>, vector<32x128xf32>, vector<8x128xf32> -> vector<8x128xf32>
    %550 = arith.addf %549, %527 : vector<8x128xf32>
    %551 = vector.broadcast %5 : vector<1x128xf32> to vector<8x128xf32>
    %552 = arith.addf %550, %551 : vector<8x128xf32>
    %553 = vector.broadcast %18 : vector<1x128xf32> to vector<8x128xf32>
    %554 = arith.mulf %552, %553 : vector<8x128xf32>
    %555 = math.tanh %554 : vector<8x128xf32>
    %556 = vector.broadcast %18 : vector<1x128xf32> to vector<8x128xf32>
    %557 = arith.mulf %555, %556 : vector<8x128xf32>
    %558 = vector.broadcast %21 : vector<1x128xf32> to vector<8x128xf32>
    %559 = arith.addf %557, %558 : vector<8x128xf32>
    %560 = vector.extract_strided_slice %559 {offsets = [0, 0], sizes = [8, 32], strides = [1, 1]} : vector<8x128xf32> to vector<8x32xf32>
    %561 = vector.extract_strided_slice %559 {offsets = [0, 32], sizes = [8, 32], strides = [1, 1]} : vector<8x128xf32> to vector<8x32xf32>
    %562 = vector.extract_strided_slice %559 {offsets = [0, 64], sizes = [8, 32], strides = [1, 1]} : vector<8x128xf32> to vector<8x32xf32>
    %563 = vector.extract_strided_slice %559 {offsets = [0, 96], sizes = [8, 32], strides = [1, 1]} : vector<8x128xf32> to vector<8x32xf32>
    %564 = arith.mulf %561, %513 : vector<8x32xf32>
    %565 = arith.mulf %560, %562 : vector<8x32xf32>
    %566 = arith.addf %564, %565 : vector<8x32xf32>
    %567 = math.tanh %566 : vector<8x32xf32>
    %568 = arith.mulf %563, %567 : vector<8x32xf32>
    %569 = vector.broadcast %8 : vector<1x32xf32> to vector<8x32xf32>
    %570 = arith.mulf %568, %569 : vector<8x32xf32>
    %cst_67 = arith.constant dense<0.000000e+00> : vector<8xf32>
    %571 = vector.multi_reduction <add>, %570, %cst_67 [1] : vector<8x32xf32> to vector<8xf32>
    %572 = vector.shape_cast %571 : vector<8xf32> to vector<8x1xf32>
    %573 = vector.broadcast %9 : vector<1x1xf32> to vector<8x1xf32>
    %574 = arith.addf %572, %573 : vector<8x1xf32>
    %c9_i32 = arith.constant 9 : i32
    %575 = vector.broadcast %c9_i32 : i32 to vector<8x12xi32>
    %576 = arith.cmpi eq, %72, %575 : vector<8x12xi32>
    %577 = vector.shape_cast %574 : vector<8x1xf32> to vector<8x1xf32>
    %578 = vector.broadcast %577 : vector<8x1xf32> to vector<8x12xf32>
    %579 = arith.select %576, %578, %526 : vector<8x12xi1>, vector<8x12xf32>
    %cst_68 = arith.constant dense<0.000000e+00> : vector<8x128xf32>
    %580 = tpu.matmul %568, %4, %cst_68 {dimension_numbers = #tpu.dot_dimension_numbers<[1], [0], [0], [1], [0, 0, 1, 1], [], []>} : vector<8x32xf32>, vector<32x128xf32>, vector<8x128xf32> -> vector<8x128xf32>
    %cst_69 = arith.constant dense<0.000000e+00> : vector<8x128xf32>
    %581 = tpu.matmul %548, %1, %cst_69 {dimension_numbers = #tpu.dot_dimension_numbers<[1], [0], [0], [1], [0, 0, 1, 1], [], []>} : vector<8x32xf32>, vector<32x128xf32>, vector<8x128xf32> -> vector<8x128xf32>
    %cst_70 = arith.constant dense<0.000000e+00> : vector<8x128xf32>
    %582 = tpu.matmul %568, %6, %cst_70 {dimension_numbers = #tpu.dot_dimension_numbers<[1], [0], [0], [1], [0, 0, 1, 1], [], []>} : vector<8x32xf32>, vector<32x128xf32>, vector<8x128xf32> -> vector<8x128xf32>
    %583 = arith.addf %581, %582 : vector<8x128xf32>
    %584 = vector.broadcast %7 : vector<1x128xf32> to vector<8x128xf32>
    %585 = arith.addf %583, %584 : vector<8x128xf32>
    %586 = vector.broadcast %18 : vector<1x128xf32> to vector<8x128xf32>
    %587 = arith.mulf %585, %586 : vector<8x128xf32>
    %588 = math.tanh %587 : vector<8x128xf32>
    %589 = vector.broadcast %18 : vector<1x128xf32> to vector<8x128xf32>
    %590 = arith.mulf %588, %589 : vector<8x128xf32>
    %591 = vector.broadcast %21 : vector<1x128xf32> to vector<8x128xf32>
    %592 = arith.addf %590, %591 : vector<8x128xf32>
    %593 = vector.extract_strided_slice %592 {offsets = [0, 0], sizes = [8, 32], strides = [1, 1]} : vector<8x128xf32> to vector<8x32xf32>
    %594 = vector.extract_strided_slice %592 {offsets = [0, 32], sizes = [8, 32], strides = [1, 1]} : vector<8x128xf32> to vector<8x32xf32>
    %595 = vector.extract_strided_slice %592 {offsets = [0, 64], sizes = [8, 32], strides = [1, 1]} : vector<8x128xf32> to vector<8x32xf32>
    %596 = vector.extract_strided_slice %592 {offsets = [0, 96], sizes = [8, 32], strides = [1, 1]} : vector<8x128xf32> to vector<8x32xf32>
    %597 = arith.mulf %594, %546 : vector<8x32xf32>
    %598 = arith.mulf %593, %595 : vector<8x32xf32>
    %599 = arith.addf %597, %598 : vector<8x32xf32>
    %600 = math.tanh %599 : vector<8x32xf32>
    %601 = arith.mulf %596, %600 : vector<8x32xf32>
    %cst_71 = arith.constant dense<0.000000e+00> : vector<8x128xf32>
    %602 = tpu.matmul %601, %3, %cst_71 {dimension_numbers = #tpu.dot_dimension_numbers<[1], [0], [0], [1], [0, 0, 1, 1], [], []>} : vector<8x32xf32>, vector<32x128xf32>, vector<8x128xf32> -> vector<8x128xf32>
    %603 = arith.addf %602, %580 : vector<8x128xf32>
    %604 = vector.broadcast %5 : vector<1x128xf32> to vector<8x128xf32>
    %605 = arith.addf %603, %604 : vector<8x128xf32>
    %606 = vector.broadcast %18 : vector<1x128xf32> to vector<8x128xf32>
    %607 = arith.mulf %605, %606 : vector<8x128xf32>
    %608 = math.tanh %607 : vector<8x128xf32>
    %609 = vector.broadcast %18 : vector<1x128xf32> to vector<8x128xf32>
    %610 = arith.mulf %608, %609 : vector<8x128xf32>
    %611 = vector.broadcast %21 : vector<1x128xf32> to vector<8x128xf32>
    %612 = arith.addf %610, %611 : vector<8x128xf32>
    %613 = vector.extract_strided_slice %612 {offsets = [0, 0], sizes = [8, 32], strides = [1, 1]} : vector<8x128xf32> to vector<8x32xf32>
    %614 = vector.extract_strided_slice %612 {offsets = [0, 32], sizes = [8, 32], strides = [1, 1]} : vector<8x128xf32> to vector<8x32xf32>
    %615 = vector.extract_strided_slice %612 {offsets = [0, 64], sizes = [8, 32], strides = [1, 1]} : vector<8x128xf32> to vector<8x32xf32>
    %616 = vector.extract_strided_slice %612 {offsets = [0, 96], sizes = [8, 32], strides = [1, 1]} : vector<8x128xf32> to vector<8x32xf32>
    %617 = arith.mulf %614, %566 : vector<8x32xf32>
    %618 = arith.mulf %613, %615 : vector<8x32xf32>
    %619 = arith.addf %617, %618 : vector<8x32xf32>
    %620 = math.tanh %619 : vector<8x32xf32>
    %621 = arith.mulf %616, %620 : vector<8x32xf32>
    %622 = vector.broadcast %8 : vector<1x32xf32> to vector<8x32xf32>
    %623 = arith.mulf %621, %622 : vector<8x32xf32>
    %cst_72 = arith.constant dense<0.000000e+00> : vector<8xf32>
    %624 = vector.multi_reduction <add>, %623, %cst_72 [1] : vector<8x32xf32> to vector<8xf32>
    %625 = vector.shape_cast %624 : vector<8xf32> to vector<8x1xf32>
    %626 = vector.broadcast %9 : vector<1x1xf32> to vector<8x1xf32>
    %627 = arith.addf %625, %626 : vector<8x1xf32>
    %c10_i32 = arith.constant 10 : i32
    %628 = vector.broadcast %c10_i32 : i32 to vector<8x12xi32>
    %629 = arith.cmpi eq, %72, %628 : vector<8x12xi32>
    %630 = vector.shape_cast %627 : vector<8x1xf32> to vector<8x1xf32>
    %631 = vector.broadcast %630 : vector<8x1xf32> to vector<8x12xf32>
    %632 = arith.select %629, %631, %579 : vector<8x12xi1>, vector<8x12xf32>
    %cst_73 = arith.constant dense<0.000000e+00> : vector<8x128xf32>
    %633 = tpu.matmul %621, %4, %cst_73 {dimension_numbers = #tpu.dot_dimension_numbers<[1], [0], [0], [1], [0, 0, 1, 1], [], []>} : vector<8x32xf32>, vector<32x128xf32>, vector<8x128xf32> -> vector<8x128xf32>
    %cst_74 = arith.constant dense<0.000000e+00> : vector<8x128xf32>
    %634 = tpu.matmul %601, %1, %cst_74 {dimension_numbers = #tpu.dot_dimension_numbers<[1], [0], [0], [1], [0, 0, 1, 1], [], []>} : vector<8x32xf32>, vector<32x128xf32>, vector<8x128xf32> -> vector<8x128xf32>
    %cst_75 = arith.constant dense<0.000000e+00> : vector<8x128xf32>
    %635 = tpu.matmul %621, %6, %cst_75 {dimension_numbers = #tpu.dot_dimension_numbers<[1], [0], [0], [1], [0, 0, 1, 1], [], []>} : vector<8x32xf32>, vector<32x128xf32>, vector<8x128xf32> -> vector<8x128xf32>
    %636 = arith.addf %634, %635 : vector<8x128xf32>
    %637 = vector.broadcast %7 : vector<1x128xf32> to vector<8x128xf32>
    %638 = arith.addf %636, %637 : vector<8x128xf32>
    %639 = vector.broadcast %18 : vector<1x128xf32> to vector<8x128xf32>
    %640 = arith.mulf %638, %639 : vector<8x128xf32>
    %641 = math.tanh %640 : vector<8x128xf32>
    %642 = vector.broadcast %18 : vector<1x128xf32> to vector<8x128xf32>
    %643 = arith.mulf %641, %642 : vector<8x128xf32>
    %644 = vector.broadcast %21 : vector<1x128xf32> to vector<8x128xf32>
    %645 = arith.addf %643, %644 : vector<8x128xf32>
    %646 = vector.extract_strided_slice %645 {offsets = [0, 0], sizes = [8, 32], strides = [1, 1]} : vector<8x128xf32> to vector<8x32xf32>
    %647 = vector.extract_strided_slice %645 {offsets = [0, 32], sizes = [8, 32], strides = [1, 1]} : vector<8x128xf32> to vector<8x32xf32>
    %648 = vector.extract_strided_slice %645 {offsets = [0, 64], sizes = [8, 32], strides = [1, 1]} : vector<8x128xf32> to vector<8x32xf32>
    %649 = vector.extract_strided_slice %645 {offsets = [0, 96], sizes = [8, 32], strides = [1, 1]} : vector<8x128xf32> to vector<8x32xf32>
    %650 = arith.mulf %647, %599 : vector<8x32xf32>
    %651 = arith.mulf %646, %648 : vector<8x32xf32>
    %652 = arith.addf %650, %651 : vector<8x32xf32>
    %653 = math.tanh %652 : vector<8x32xf32>
    %654 = arith.mulf %649, %653 : vector<8x32xf32>
    %cst_76 = arith.constant dense<0.000000e+00> : vector<8x128xf32>
    %655 = tpu.matmul %654, %3, %cst_76 {dimension_numbers = #tpu.dot_dimension_numbers<[1], [0], [0], [1], [0, 0, 1, 1], [], []>} : vector<8x32xf32>, vector<32x128xf32>, vector<8x128xf32> -> vector<8x128xf32>
    %656 = arith.addf %655, %633 : vector<8x128xf32>
    %657 = vector.broadcast %5 : vector<1x128xf32> to vector<8x128xf32>
    %658 = arith.addf %656, %657 : vector<8x128xf32>
    %659 = vector.broadcast %18 : vector<1x128xf32> to vector<8x128xf32>
    %660 = arith.mulf %658, %659 : vector<8x128xf32>
    %661 = math.tanh %660 : vector<8x128xf32>
    %662 = vector.broadcast %18 : vector<1x128xf32> to vector<8x128xf32>
    %663 = arith.mulf %661, %662 : vector<8x128xf32>
    %664 = vector.broadcast %21 : vector<1x128xf32> to vector<8x128xf32>
    %665 = arith.addf %663, %664 : vector<8x128xf32>
    %666 = vector.extract_strided_slice %665 {offsets = [0, 0], sizes = [8, 32], strides = [1, 1]} : vector<8x128xf32> to vector<8x32xf32>
    %667 = vector.extract_strided_slice %665 {offsets = [0, 32], sizes = [8, 32], strides = [1, 1]} : vector<8x128xf32> to vector<8x32xf32>
    %668 = vector.extract_strided_slice %665 {offsets = [0, 64], sizes = [8, 32], strides = [1, 1]} : vector<8x128xf32> to vector<8x32xf32>
    %669 = vector.extract_strided_slice %665 {offsets = [0, 96], sizes = [8, 32], strides = [1, 1]} : vector<8x128xf32> to vector<8x32xf32>
    %670 = arith.mulf %667, %619 : vector<8x32xf32>
    %671 = arith.mulf %666, %668 : vector<8x32xf32>
    %672 = arith.addf %670, %671 : vector<8x32xf32>
    %673 = math.tanh %672 : vector<8x32xf32>
    %674 = arith.mulf %669, %673 : vector<8x32xf32>
    %675 = vector.broadcast %8 : vector<1x32xf32> to vector<8x32xf32>
    %676 = arith.mulf %674, %675 : vector<8x32xf32>
    %cst_77 = arith.constant dense<0.000000e+00> : vector<8xf32>
    %677 = vector.multi_reduction <add>, %676, %cst_77 [1] : vector<8x32xf32> to vector<8xf32>
    %678 = vector.shape_cast %677 : vector<8xf32> to vector<8x1xf32>
    %679 = vector.broadcast %9 : vector<1x1xf32> to vector<8x1xf32>
    %680 = arith.addf %678, %679 : vector<8x1xf32>
    %c11_i32 = arith.constant 11 : i32
    %681 = vector.broadcast %c11_i32 : i32 to vector<8x12xi32>
    %682 = arith.cmpi eq, %72, %681 : vector<8x12xi32>
    %683 = vector.shape_cast %680 : vector<8x1xf32> to vector<8x1xf32>
    %684 = vector.broadcast %683 : vector<8x1xf32> to vector<8x12xf32>
    %685 = arith.select %682, %684, %632 : vector<8x12xi1>, vector<8x12xf32>
    %c0_78 = arith.constant 0 : index
    %c0_79 = arith.constant 0 : index
    %686 = vector.load %arg11[%c0_78, %c0_79] : memref<8x12xf32, #tpu.memory_space<vmem>>, vector<8x12xf32>
    tpu.vector_store %arg11[%c0_78, %c0_79], %685 {strides = array<i32>} : memref<8x12xf32, #tpu.memory_space<vmem>>, vector<8x12xf32>,
    return
  }
}

</mosaic_0001>

<llo_original>
// kernel: lstm_forward.1
$region0: #{lstm_forward.1}
  #allocation0 [shape = 'u32[]', space=smem, size = 0x4, offset = 0x4, fixed_abs, tag = 'smem constant byte address 0x4 - core index']
  #allocation1 [shape = 'u32[144,128]{1,0:T(1,128)}', space=vmem, size = 0x12000, scoped, tag = 'internal scratch']
  #allocation2 [shape = 'f32[1,1]{1,0:T(1,128)S(1)}', space=vmem, size = 0x200, scoped, tag = 'scoped memory for lstm_forward.1']
  %s0 = inlined_call_operand.hbm [shape: f32[8,8], index: 0, kind: input, shape index: {}]
  %s1 = inlined_call_operand.vmem [shape: f32[1,128], index: 1, kind: input, shape index: {}]
  %s2 = inlined_call_operand.vmem [shape: f32[32,128], index: 2, kind: input, shape index: {}]
  %s3 = inlined_call_operand.vmem [shape: f32[1,128], index: 3, kind: input, shape index: {}]
  %s4 = inlined_call_operand.vmem [shape: f32[32,128], index: 4, kind: input, shape index: {}]
  %s5 = inlined_call_operand.vmem [shape: f32[32,128], index: 5, kind: input, shape index: {}]
  %s6 = inlined_call_operand.vmem [shape: f32[1,128], index: 6, kind: input, shape index: {}]
  %s7 = inlined_call_operand.vmem [shape: f32[32,128], index: 7, kind: input, shape index: {}]
  %s8 = inlined_call_operand.vmem [shape: f32[1,128], index: 8, kind: input, shape index: {}]
  %s9 = inlined_call_operand.vmem [shape: f32[1,32], index: 9, kind: input, shape index: {}]
  %s10 = inlined_call_operand.<no memory space> [shape: f32[1,1], index: 10, kind: input, shape index: {}]
  %s11 = inlined_call_operand.hbm [shape: f32[8,12], index: 11, kind: output, shape index: {}]
  %s12 = sld [smem:[#allocation0]]
  $region58: #{lstm_forward.1} parent=0
    _
  %s14 = ssub.s32 1, %s12
  %s15 = scalar_select 0, %s14, %s12
  %v16 = vstv %s10
  %17 = vst [vmem:[#allocation2] sm:$0x1] %v16
  $region1: #{lstm_forward.1} parent=0
    #allocation3 [shape = 'u8[4096]{0}', space=vmem, size = 0x1000, scoped, tag = 'input window, operand 0, single buffered']
    #allocation4 [shape = 's32[1]{0}', space=sflag, size = 0x4, scoped, tag = 'scoped memory for lstm_forward.1']
    #allocation5 [shape = 's32[1]{0}', space=sflag, size = 0x4, scoped, tag = 'scoped memory for lstm_forward.1']
    #allocation6 [shape = 'u8[4096]{0}', space=vmem, size = 0x1000, scoped, tag = 'output window, operand 0, single buffered']
    %18 = vsyncpa [#allocation4], 0
    %19 = vsyncpa [#allocation5], 0
    // Predicated region
    $region2: #{lstm_forward.1} parent=1 // pred_check
      _
    $region3: #{lstm_forward.1} parent=1 // pred_check_branch
      %21 = sbr.rel (0) target = $region5
    $region4: #{lstm_forward.1} parent=1 // pred_region
      %s23 = ssub.s32 128, 128
      %24 = vsyncadd [#allocation4], %s23
      %s26 = sshll.u32 [#allocation3], 4
      %s27 = int_to_ptr.vmem [resolvable:$true] %s26
      %29 = dma.hbm_to_vmem [thread:$0]  %s0, 128, %s27, [#allocation4]
    $region5: #{lstm_forward.1} parent=1 // pred_fallthru
      _
    // Predicated region
    $region6: #{lstm_forward.1} parent=1 // pred_check
      _
    $region7: #{lstm_forward.1} parent=1 // pred_check_branch
      %31 = sbr.rel (0) target = $region9
    $region8: #{lstm_forward.1} parent=1 // pred_region
      _
    $region9: #{lstm_forward.1} parent=1 // pred_fallthru
      _
    // Predicated region
    $region10: #{lstm_forward.1} parent=1 // pred_check
      _
    $region11: #{lstm_forward.1} parent=1 // pred_check_branch
      %33 = sbr.rel (0) target = $region13
    $region12: #{lstm_forward.1} parent=1 // pred_region
      _
    $region13: #{lstm_forward.1} parent=1 // pred_fallthru
      _
    // Predicated region
    $region14: #{lstm_forward.1} parent=1 // pred_check
      _
    $region15: #{lstm_forward.1} parent=1 // pred_check_branch
      %35 = sbr.rel (0) target = $region17
    $region16: #{lstm_forward.1} parent=1 // pred_region
      _
    $region17: #{lstm_forward.1} parent=1 // pred_fallthru
      _
    // Predicated region
    $region18: #{lstm_forward.1} parent=1 // pred_check
      _
    $region19: #{lstm_forward.1} parent=1 // pred_check_branch
      %37 = sbr.rel (0) target = $region21
    $region20: #{lstm_forward.1} parent=1 // pred_region
      _
    $region21: #{lstm_forward.1} parent=1 // pred_fallthru
      _
    // Predicated region
    $region22: #{lstm_forward.1} parent=1 // pred_check
      _
    $region23: #{lstm_forward.1} parent=1 // pred_check_branch
      %39 = sbr.rel (0) target = $region25
    $region24: #{lstm_forward.1} parent=1 // pred_region
      _
    $region25: #{lstm_forward.1} parent=1 // pred_fallthru
      _
    // Predicated region
    $region26: #{lstm_forward.1} parent=1 // pred_check
      _
    $region27: #{lstm_forward.1} parent=1 // pred_check_branch
      %41 = sbr.rel (0) target = $region29
    $region28: #{lstm_forward.1} parent=1 // pred_region
      _
    $region29: #{lstm_forward.1} parent=1 // pred_fallthru
      _
    // Predicated region
    $region30: #{lstm_forward.1} parent=1 // pred_check
      _
    $region31: #{lstm_forward.1} parent=1 // pred_check_branch
      %43 = sbr.rel (0) target = $region33
    $region32: #{lstm_forward.1} parent=1 // pred_region
      _
    $region33: #{lstm_forward.1} parent=1 // pred_fallthru
      _
    // Predicated region
    $region34: #{lstm_forward.1} parent=1 // pred_check
      _
    $region35: #{lstm_forward.1} parent=1 // pred_check_branch
      %45 = sbr.rel (0) target = $region37
    $region36: #{lstm_forward.1} parent=1 // pred_region
      _
    $region37: #{lstm_forward.1} parent=1 // pred_fallthru
      _
    // Predicated region
    $region38: #{lstm_forward.1} parent=1 // pred_check
      _
    $region39: #{lstm_forward.1} parent=1 // pred_check_branch
      %47 = sbr.rel (0) target = $region41
    $region40: #{lstm_forward.1} parent=1 // pred_region
      _
    $region41: #{lstm_forward.1} parent=1 // pred_fallthru
      _
    // Predicated region
    $region42: #{lstm_forward.1} parent=1 // pred_check
      _
    $region43: #{lstm_forward.1} parent=1 // pred_check_branch
      %49 = sbr.rel (0) target = $region45
    $region44: #{lstm_forward.1} parent=1 // pred_region
      _
    $region45: #{lstm_forward.1} parent=1 // pred_fallthru
      _
    // Predicated region
    $region46: #{lstm_forward.1} parent=1 // pred_check
      _
    $region47: #{lstm_forward.1} parent=1 // pred_check_branch
      %51 = sbr.rel (0) target = $region49
    $region48: #{lstm_forward.1} parent=1 // pred_region
      %52 = dma.done [#allocation4], 128
    $region49: #{lstm_forward.1} parent=1 // pred_fallthru
      _
    %v53 = vld [vmem:[%s1] sm:$0x1]
    %v54 = vld [vmem:[%s2] sm:$0xff]
    %v55 = vld [vmem:[%s2 + $0x8] sm:$0xff]
    %v56 = vld [vmem:[%s2 + $0x10] sm:$0xff]
    %v57 = vld [vmem:[%s2 + $0x18] sm:$0xff]
    %v58 = vld [vmem:[%s3] sm:$0x1]
    %v59 = vld [vmem:[%s4] sm:$0xff]
    %v60 = vld [vmem:[%s4 + $0x8] sm:$0xff]
    %v61 = vld [vmem:[%s4 + $0x10] sm:$0xff]
    %v62 = vld [vmem:[%s4 + $0x18] sm:$0xff]
    %v63 = vld [vmem:[%s5] sm:$0xff]
    %v64 = vld [vmem:[%s5 + $0x8] sm:$0xff]
    %v65 = vld [vmem:[%s5 + $0x10] sm:$0xff]
    %v66 = vld [vmem:[%s5 + $0x18] sm:$0xff]
    %v67 = vld [vmem:[%s6] sm:$0x1]
    %v68 = vld [vmem:[%s7] sm:$0xff]
    %v69 = vld [vmem:[%s7 + $0x8] sm:$0xff]
    %v70 = vld [vmem:[%s7 + $0x10] sm:$0xff]
    %v71 = vld [vmem:[%s7 + $0x18] sm:$0xff]
    %v72 = vld [vmem:[%s8] sm:$0x1]
    %v73 = vld [vmem:[%s9] sm:$0x1]
    %v74 = vld [vmem:[#allocation2] sm:$0x1]
    %v75 = vlaneseq
    %v76 = vand.u32 %v75, 127
    %vm77 = vcmp.ge.s32.totalorder %v76, 64
    %vm78 = vcmp.lt.s32.totalorder %v76, 96
    %vm79 = vmand %vm77, %vm78
    %v80 = vsel %vm79, 1.0, 0.5
    %v81 = vsel %vm79, 0.0, 0.5
    %v82 = vld [vmem:[#allocation3] sm:$0xff]
    %84 = vset.pattern.permute.xlu0 0
    %85 = vperm.xlu0 %84, %v82
    %v86 = vpop.permute.xlu0 %85
    %v89 = vlaneseq
    %v90 = vshrl.u32 %v89, 7
    %v91 = vsub.s32 0, %v90
    %v92 = vrot.slane %v53, %v91
    %v94 = vmul.f32 %v86, %v92
    %v96 = vlaneseq
    %v97 = vshrl.u32 %v96, 7
    %v98 = vsub.s32 0, %v97
    %v99 = vrot.slane %v58, %v98
    %v101 = vadd.f32 %v94, %v99
    %102 = vset.pattern.permute.xlu0 1
    %103 = vperm.xlu0 %102, %v82
    %v104 = vpop.permute.xlu0 %103
    %v106 = vmul.f32 %v104, %v92
    %v107 = vadd.f32 %v106, %v99
    %108 = vset.pattern.permute.xlu0 2
    %109 = vperm.xlu0 %108, %v82
    %v110 = vpop.permute.xlu0 %109
    %v112 = vmul.f32 %v110, %v92
    %v113 = vadd.f32 %v112, %v99
    %114 = vset.pattern.permute.xlu0 3
    %115 = vperm.xlu0 %114, %v82
    %v116 = vpop.permute.xlu0 %115
    %v118 = vmul.f32 %v116, %v92
    %v119 = vadd.f32 %v118, %v99
    %120 = vset.pattern.permute.xlu0 4
    %121 = vperm.xlu0 %120, %v82
    %v122 = vpop.permute.xlu0 %121
    %v124 = vmul.f32 %v122, %v92
    %v125 = vadd.f32 %v124, %v99
    %126 = vset.pattern.permute.xlu0 5
    %127 = vperm.xlu0 %126, %v82
    %v128 = vpop.permute.xlu0 %127
    %v130 = vmul.f32 %v128, %v92
    %v131 = vadd.f32 %v130, %v99
    %132 = vset.pattern.permute.xlu0 6
    %133 = vperm.xlu0 %132, %v82
    %v134 = vpop.permute.xlu0 %133
    %v136 = vmul.f32 %v134, %v92
    %v137 = vadd.f32 %v136, %v99
    %138 = vset.pattern.permute.xlu0 7
    %139 = vperm.xlu0 %138, %v82
    %v140 = vpop.permute.xlu0 %139
    %v142 = vmul.f32 %v140, %v92
    %v143 = vadd.f32 %v142, %v99
    %vm144 = vcmask 261120
    %v146 = vsel %vm144, 0.0, 0
    %148 = vmatprep.subr.mxu0 0.0
    %149 = vmatpush1.msra.mxu0 %v63
    %150 = vmatprep.subr.mxu0 0.0
    %151 = vmatpush1.msra.mxu0 %v64
    %152 = vmatprep.subr.mxu0 0.0
    %153 = vmatpush1.msra.mxu0 %v65
    %154 = vmatprep.subr.mxu0 0.0
    %155 = vmatpush1.msra.mxu0 %v66
    %156 = vmatprep.subr.mxu0 0.0
    %157 = vmatpush1.msra.mxu0 0.0
    %158 = vmatprep.subr.mxu0 0.0
    %159 = vmatpush1.msra.mxu0 0.0
    %160 = vmatprep.subr.mxu0 0.0
    %161 = vmatpush1.msra.mxu0 0.0
    %162 = vmatprep.subr.mxu0 0.0
    %163 = vmatpush1.msra.mxu0 0.0
    %164 = vmatprep.subr.mxu0 0.0
    %165 = vmatpush1.msra.mxu0 0.0
    %166 = vmatprep.subr.mxu0 0.0
    %167 = vmatpush1.msra.mxu0 0.0
    %168 = vmatprep.subr.mxu0 0.0
    %169 = vmatpush1.msra.mxu0 0.0
    %170 = vmatprep.subr.mxu0 0.0
    %171 = vmatpush1.msra.mxu0 0.0
    %172 = vmatprep.subr.mxu0 0.0
    %173 = vmatpush1.msra.mxu0 0.0
    %174 = vmatprep.subr.mxu0 0.0
    %175 = vmatpush1.msra.mxu0 0.0
    %176 = vmatprep.subr.mxu0 0.0
    %177 = vmatpush1.msra.mxu0 0.0
    %178 = vmatprep.subr.mxu0 0.0
    %179 = vmatpush1.msra.mxu0 0.0
    %180 = vmatprep.subr.mxu0 0.0
    %181 = vmatpush1.msra.mxu0 0.0
    %182 = vmatprep.subr.mxu0 0.0
    %183 = vmatpush1.msra.mxu0 0.0
    %184 = vmatprep.subr.mxu0 0.0
    %185 = vmatpush1.msra.mxu0 0.0
    %186 = vmatprep.subr.mxu0 0.0
    %187 = vmatpush1.msra.mxu0 0.0
    %188 = vmatprep.subr.mxu0 0.0
    %189 = vmatpush1.msra.mxu0 0.0
    %190 = vmatprep.subr.mxu0 0.0
    %191 = vmatpush1.msra.mxu0 0.0
    %192 = vmatprep.subr.mxu0 0.0
    %193 = vmatpush1.msra.mxu0 0.0
    %194 = vmatprep.subr.mxu0 0.0
    %195 = vmatpush1.msra.mxu0 0.0
    %196 = vmatprep.subr.mxu0 0.0
    %197 = vmatpush1.msra.mxu0 0.0
    %198 = vmatprep.subr.mxu0 0.0
    %199 = vmatpush1.msra.mxu0 0.0
    %200 = vmatprep.subr.mxu0 0.0
    %201 = vmatpush1.msra.mxu0 0.0
    %202 = vmatprep.subr.mxu0 0.0
    %203 = vmatpush1.msra.mxu0 0.0
    %204 = vmatprep.subr.mxu0 0.0
    %205 = vmatpush1.msra.mxu0 0.0
    %206 = vmatprep.subr.mxu0 0.0
    %207 = vmatpush1.msra.mxu0 0.0
    %208 = vmatprep.subr.mxu0 0.0
    %209 = vmatpush1.msra.mxu0 0.0
    %210 = vmatprep.subr.mxu0 0.0
    %211 = vmatpush1.msra.mxu0 0.0
    %212 = vmatprep.mubr.f32.mxu0 0.0
    %213 = vmatmul.mubr.f32.gmra.mrb[0].mxu0 %v146
    %v214 = vpop.f32.mrb[0].mxu0
    %v215 = vadd.f32 0.0, %v214
    %v216 = vpop.f32.mrb[0].mxu0
    %217 = vdwg.mxu0
    %218 = vmatprep.subr.mxu0 0.0
    %219 = vmatpush1.msra.mxu0 %v54
    %220 = vmatprep.subr.mxu0 0.0
    %221 = vmatpush1.msra.mxu0 %v55
    %222 = vmatprep.subr.mxu0 0.0
    %223 = vmatpush1.msra.mxu0 %v56
    %224 = vmatprep.subr.mxu0 0.0
    %225 = vmatpush1.msra.mxu0 %v57
    %226 = vmatprep.subr.mxu0 0.0
    %227 = vmatpush1.msra.mxu0 0.0
    %228 = vmatprep.subr.mxu0 0.0
    %229 = vmatpush1.msra.mxu0 0.0
    %230 = vmatprep.subr.mxu0 0.0
    %231 = vmatpush1.msra.mxu0 0.0
    %232 = vmatprep.subr.mxu0 0.0
    %233 = vmatpush1.msra.mxu0 0.0
    %234 = vmatprep.subr.mxu0 0.0
    %235 = vmatpush1.msra.mxu0 0.0
    %236 = vmatprep.subr.mxu0 0.0
    %237 = vmatpush1.msra.mxu0 0.0
    %238 = vmatprep.subr.mxu0 0.0
    %239 = vmatpush1.msra.mxu0 0.0
    %240 = vmatprep.subr.mxu0 0.0
    %241 = vmatpush1.msra.mxu0 0.0
    %242 = vmatprep.subr.mxu0 0.0
    %243 = vmatpush1.msra.mxu0 0.0
    %244 = vmatprep.subr.mxu0 0.0
    %245 = vmatpush1.msra.mxu0 0.0
    %246 = vmatprep.subr.mxu0 0.0
    %247 = vmatpush1.msra.mxu0 0.0
    %248 = vmatprep.subr.mxu0 0.0
    %249 = vmatpush1.msra.mxu0 0.0
    %250 = vmatprep.subr.mxu0 0.0
    %251 = vmatpush1.msra.mxu0 0.0
    %252 = vmatprep.subr.mxu0 0.0
    %253 = vmatpush1.msra.mxu0 0.0
    %254 = vmatprep.subr.mxu0 0.0
    %255 = vmatpush1.msra.mxu0 0.0
    %256 = vmatprep.subr.mxu0 0.0
    %257 = vmatpush1.msra.mxu0 0.0
    %258 = vmatprep.subr.mxu0 0.0
    %259 = vmatpush1.msra.mxu0 0.0
    %260 = vmatprep.subr.mxu0 0.0
    %261 = vmatpush1.msra.mxu0 0.0
    %262 = vmatprep.subr.mxu0 0.0
    %263 = vmatpush1.msra.mxu0 0.0
    %264 = vmatprep.subr.mxu0 0.0
    %265 = vmatpush1.msra.mxu0 0.0
    %266 = vmatprep.subr.mxu0 0.0
    %267 = vmatpush1.msra.mxu0 0.0
    %268 = vmatprep.subr.mxu0 0.0
    %269 = vmatpush1.msra.mxu0 0.0
    %270 = vmatprep.subr.mxu0 0.0
    %271 = vmatpush1.msra.mxu0 0.0
    %272 = vmatprep.subr.mxu0 0.0
    %273 = vmatpush1.msra.mxu0 0.0
    %274 = vmatprep.subr.mxu0 0.0
    %275 = vmatpush1.msra.mxu0 0.0
    %276 = vmatprep.subr.mxu0 0.0
    %277 = vmatpush1.msra.mxu0 0.0
    %278 = vmatprep.subr.mxu0 0.0
    %279 = vmatpush1.msra.mxu0 0.0
    %280 = vmatprep.subr.mxu0 0.0
    %281 = vmatpush1.msra.mxu0 0.0
    %282 = vmatprep.mubr.f32.mxu0 0.0
    %283 = vmatmul.mubr.f32.gmra.mrb[0].mxu0 %v146
    %v284 = vpop.f32.mrb[0].mxu0
    %v285 = vadd.f32 0.0, %v284
    %v286 = vpop.f32.mrb[0].mxu0
    %287 = vdwg.mxu0
    %v288 = vadd.f32 %v101, %v285
    %v289 = vmul.f32 %v288, %v80
    %v290 = vtanh.pop %v289
    %v291 = vmul.f32 %v290, %v80
    %v292 = vadd.f32 %v291, %v81
    %v293 = vmul.f32 %v292, 0.0
    %295 = vrot.lane.b32.xlu0 %v292, 64
    %v296 = vpop.permute.xlu0 %295
    %v298 = vmul.f32 %v292, %v296
    %300 = vrot.lane.b32.xlu0 %v298, 32
    %v301 = vpop.permute.xlu0 %300
    %v303 = vadd.f32 %v293, %v301
    %v304 = vtanh.pop %v303
    %306 = vrot.lane.b32.xlu0 %v304, 64
    %v307 = vpop.permute.xlu0 %306
    %v309 = vmul.f32 %v292, %v307
    %311 = vrot.lane.b32.xlu0 %v309, 32
    %v312 = vpop.permute.xlu0 %311
    %v313 = vsel %vm144, %v312, 0
    %315 = vmatprep.subr.mxu0 0.0
    %316 = vmatpush1.msra.mxu0 %v59
    %317 = vmatprep.subr.mxu0 0.0
    %318 = vmatpush1.msra.mxu0 %v60
    %319 = vmatprep.subr.mxu0 0.0
    %320 = vmatpush1.msra.mxu0 %v61
    %321 = vmatprep.subr.mxu0 0.0
    %322 = vmatpush1.msra.mxu0 %v62
    %323 = vmatprep.subr.mxu0 0.0
    %324 = vmatpush1.msra.mxu0 0.0
    %325 = vmatprep.subr.mxu0 0.0
    %326 = vmatpush1.msra.mxu0 0.0
    %327 = vmatprep.subr.mxu0 0.0
    %328 = vmatpush1.msra.mxu0 0.0
    %329 = vmatprep.subr.mxu0 0.0
    %330 = vmatpush1.msra.mxu0 0.0
    %331 = vmatprep.subr.mxu0 0.0
    %332 = vmatpush1.msra.mxu0 0.0
    %333 = vmatprep.subr.mxu0 0.0
    %334 = vmatpush1.msra.mxu0 0.0
    %335 = vmatprep.subr.mxu0 0.0
    %336 = vmatpush1.msra.mxu0 0.0
    %337 = vmatprep.subr.mxu0 0.0
    %338 = vmatpush1.msra.mxu0 0.0
    %339 = vmatprep.subr.mxu0 0.0
    %340 = vmatpush1.msra.mxu0 0.0
    %341 = vmatprep.subr.mxu0 0.0
    %342 = vmatpush1.msra.mxu0 0.0
    %343 = vmatprep.subr.mxu0 0.0
    %344 = vmatpush1.msra.mxu0 0.0
    %345 = vmatprep.subr.mxu0 0.0
    %346 = vmatpush1.msra.mxu0 0.0
    %347 = vmatprep.subr.mxu0 0.0
    %348 = vmatpush1.msra.mxu0 0.0
    %349 = vmatprep.subr.mxu0 0.0
    %350 = vmatpush1.msra.mxu0 0.0
    %351 = vmatprep.subr.mxu0 0.0
    %352 = vmatpush1.msra.mxu0 0.0
    %353 = vmatprep.subr.mxu0 0.0
    %354 = vmatpush1.msra.mxu0 0.0
    %355 = vmatprep.subr.mxu0 0.0
    %356 = vmatpush1.msra.mxu0 0.0
    %357 = vmatprep.subr.mxu0 0.0
    %358 = vmatpush1.msra.mxu0 0.0
    %359 = vmatprep.subr.mxu0 0.0
    %360 = vmatpush1.msra.mxu0 0.0
    %361 = vmatprep.subr.mxu0 0.0
    %362 = vmatpush1.msra.mxu0 0.0
    %363 = vmatprep.subr.mxu0 0.0
    %364 = vmatpush1.msra.mxu0 0.0
    %365 = vmatprep.subr.mxu0 0.0
    %366 = vmatpush1.msra.mxu0 0.0
    %367 = vmatprep.subr.mxu0 0.0
    %368 = vmatpush1.msra.mxu0 0.0
    %369 = vmatprep.subr.mxu0 0.0
    %370 = vmatpush1.msra.mxu0 0.0
    %371 = vmatprep.subr.mxu0 0.0
    %372 = vmatpush1.msra.mxu0 0.0
    %373 = vmatprep.subr.mxu0 0.0
    %374 = vmatpush1.msra.mxu0 0.0
    %375 = vmatprep.subr.mxu0 0.0
    %376 = vmatpush1.msra.mxu0 0.0
    %377 = vmatprep.subr.mxu0 0.0
    %378 = vmatpush1.msra.mxu0 0.0
    %379 = vmatprep.mubr.f32.mxu0 0.0
    %380 = vmatmul.mubr.f32.gmra.mrb[0].mxu0 %v313
    %v381 = vpop.f32.mrb[0].mxu0
    %v382 = vadd.f32 %v215, %v381
    %v383 = vpop.f32.mrb[0].mxu0
    %384 = vdwg.mxu0
    %v386 = vlaneseq
    %v387 = vshrl.u32 %v386, 7
    %v388 = vsub.s32 0, %v387
    %v389 = vrot.slane %v67, %v388
    %v391 = vadd.f32 %v382, %v389
    %v392 = vmul.f32 %v391, %v80
    %v393 = vtanh.pop %v392
    %v394 = vmul.f32 %v393, %v80
    %v395 = vadd.f32 %v394, %v81
    %v396 = vmul.f32 %v395, 0.0
    %398 = vrot.lane.b32.xlu0 %v395, 64
    %v399 = vpop.permute.xlu0 %398
    %v401 = vmul.f32 %v395, %v399
    %403 = vrot.lane.b32.xlu0 %v401, 32
    %v404 = vpop.permute.xlu0 %403
    %v406 = vadd.f32 %v396, %v404
    %v407 = vtanh.pop %v406
    %409 = vrot.lane.b32.xlu0 %v407, 64
    %v410 = vpop.permute.xlu0 %409
    %v412 = vmul.f32 %v395, %v410
    %v414 = vlaneseq
    %v415 = vshrl.u32 %v414, 7
    %v416 = vsub.s32 0, %v415
    %v417 = vrot.slane %v73, %v416
    %418 = vrot.lane.b32.xlu0 %v417, 96
    %v419 = vpop.permute.xlu0 %418
    %v421 = vmul.f32 %v412, %v419
    %423 = vrot.lane.b32.xlu0 %v421, 32
    %v424 = vpop.permute.xlu0 %423
    %v426 = vsel %vm144, %v424, 0.0
    %427 = vadd.xlane.f32.xlu0 %v426
    %v428 = vpop.xlane.xlu0 %427
    %v430 = vlaneseq
    %v431 = vshrl.u32 %v430, 7
    %v432 = vsub.s32 0, %v431
    %v433 = vrot.slane %v74, %v432
    %v435 = vadd.f32 %v428, %v433
    %vm436 = vcmp.eq.s32.totalorder %v76, 0
    %438 = vset.pattern.permute.xlu0 0
    %439 = vperm.xlu0 %438, %v435
    %v440 = vpop.permute.xlu0 %439
    %v442 = vsel %vm436, %v440, 0.0
    %444 = vrot.lane.b32.xlu0 %v412, 32
    %v445 = vpop.permute.xlu0 %444
    %v446 = vsel %vm144, %v445, 0
    %448 = vmatprep.subr.mxu0 0.0
    %449 = vmatpush1.msra.mxu0 %v63
    %450 = vmatprep.subr.mxu0 0.0
    %451 = vmatpush1.msra.mxu0 %v64
    %452 = vmatprep.subr.mxu0 0.0
    %453 = vmatpush1.msra.mxu0 %v65
    %454 = vmatprep.subr.mxu0 0.0
    %455 = vmatpush1.msra.mxu0 %v66
    %456 = vmatprep.subr.mxu0 0.0
    %457 = vmatpush1.msra.mxu0 0.0
    %458 = vmatprep.subr.mxu0 0.0
    %459 = vmatpush1.msra.mxu0 0.0
    %460 = vmatprep.subr.mxu0 0.0
    %461 = vmatpush1.msra.mxu0 0.0
    %462 = vmatprep.subr.mxu0 0.0
    %463 = vmatpush1.msra.mxu0 0.0
    %464 = vmatprep.subr.mxu0 0.0
    %465 = vmatpush1.msra.mxu0 0.0
    %466 = vmatprep.subr.mxu0 0.0
    %467 = vmatpush1.msra.mxu0 0.0
    %468 = vmatprep.subr.mxu0 0.0
    %469 = vmatpush1.msra.mxu0 0.0
    %470 = vmatprep.subr.mxu0 0.0
    %471 = vmatpush1.msra.mxu0 0.0
    %472 = vmatprep.subr.mxu0 0.0
    %473 = vmatpush1.msra.mxu0 0.0
    %474 = vmatprep.subr.mxu0 0.0
    %475 = vmatpush1.msra.mxu0 0.0
    %476 = vmatprep.subr.mxu0 0.0
    %477 = vmatpush1.msra.mxu0 0.0
    %478 = vmatprep.subr.mxu0 0.0
    %479 = vmatpush1.msra.mxu0 0.0
    %480 = vmatprep.subr.mxu0 0.0
    %481 = vmatpush1.msra.mxu0 0.0
    %482 = vmatprep.subr.mxu0 0.0
    %483 = vmatpush1.msra.mxu0 0.0
    %484 = vmatprep.subr.mxu0 0.0
    %485 = vmatpush1.msra.mxu0 0.0
    %486 = vmatprep.subr.mxu0 0.0
    %487 = vmatpush1.msra.mxu0 0.0
    %488 = vmatprep.subr.mxu0 0.0
    %489 = vmatpush1.msra.mxu0 0.0
    %490 = vmatprep.subr.mxu0 0.0
    %491 = vmatpush1.msra.mxu0 0.0
    %492 = vmatprep.subr.mxu0 0.0
    %493 = vmatpush1.msra.mxu0 0.0
    %494 = vmatprep.subr.mxu0 0.0
    %495 = vmatpush1.msra.mxu0 0.0
    %496 = vmatprep.subr.mxu0 0.0
    %497 = vmatpush1.msra.mxu0 0.0
    %498 = vmatprep.subr.mxu0 0.0
    %499 = vmatpush1.msra.mxu0 0.0
    %500 = vmatprep.subr.mxu0 0.0
    %501 = vmatpush1.msra.mxu0 0.0
    %502 = vmatprep.subr.mxu0 0.0
    %503 = vmatpush1.msra.mxu0 0.0
    %504 = vmatprep.subr.mxu0 0.0
    %505 = vmatpush1.msra.mxu0 0.0
    %506 = vmatprep.subr.mxu0 0.0
    %507 = vmatpush1.msra.mxu0 0.0
    %508 = vmatprep.subr.mxu0 0.0
    %509 = vmatpush1.msra.mxu0 0.0
    %510 = vmatprep.subr.mxu0 0.0
    %511 = vmatpush1.msra.mxu0 0.0
    %512 = vmatprep.mubr.f32.mxu0 0.0
    %513 = vmatmul.mubr.f32.gmra.mrb[0].mxu0 %v446
    %v514 = vpop.f32.mrb[0].mxu0
    %v515 = vadd.f32 0.0, %v514
    %v516 = vpop.f32.mrb[0].mxu0
    %517 = vdwg.mxu0
    %518 = vmatprep.subr.mxu0 0.0
    %519 = vmatpush1.msra.mxu0 %v54
    %520 = vmatprep.subr.mxu0 0.0
    %521 = vmatpush1.msra.mxu0 %v55
    %522 = vmatprep.subr.mxu0 0.0
    %523 = vmatpush1.msra.mxu0 %v56
    %524 = vmatprep.subr.mxu0 0.0
    %525 = vmatpush1.msra.mxu0 %v57
    %526 = vmatprep.subr.mxu0 0.0
    %527 = vmatpush1.msra.mxu0 0.0
    %528 = vmatprep.subr.mxu0 0.0
    %529 = vmatpush1.msra.mxu0 0.0
    %530 = vmatprep.subr.mxu0 0.0
    %531 = vmatpush1.msra.mxu0 0.0
    %532 = vmatprep.subr.mxu0 0.0
    %533 = vmatpush1.msra.mxu0 0.0
    %534 = vmatprep.subr.mxu0 0.0
    %535 = vmatpush1.msra.mxu0 0.0
    %536 = vmatprep.subr.mxu0 0.0
    %537 = vmatpush1.msra.mxu0 0.0
    %538 = vmatprep.subr.mxu0 0.0
    %539 = vmatpush1.msra.mxu0 0.0
    %540 = vmatprep.subr.mxu0 0.0
    %541 = vmatpush1.msra.mxu0 0.0
    %542 = vmatprep.subr.mxu0 0.0
    %543 = vmatpush1.msra.mxu0 0.0
    %544 = vmatprep.subr.mxu0 0.0
    %545 = vmatpush1.msra.mxu0 0.0
    %546 = vmatprep.subr.mxu0 0.0
    %547 = vmatpush1.msra.mxu0 0.0
    %548 = vmatprep.subr.mxu0 0.0
    %549 = vmatpush1.msra.mxu0 0.0
    %550 = vmatprep.subr.mxu0 0.0
    %551 = vmatpush1.msra.mxu0 0.0
    %552 = vmatprep.subr.mxu0 0.0
    %553 = vmatpush1.msra.mxu0 0.0
    %554 = vmatprep.subr.mxu0 0.0
    %555 = vmatpush1.msra.mxu0 0.0
    %556 = vmatprep.subr.mxu0 0.0
    %557 = vmatpush1.msra.mxu0 0.0
    %558 = vmatprep.subr.mxu0 0.0
    %559 = vmatpush1.msra.mxu0 0.0
    %560 = vmatprep.subr.mxu0 0.0
    %561 = vmatpush1.msra.mxu0 0.0
    %562 = vmatprep.subr.mxu0 0.0
    %563 = vmatpush1.msra.mxu0 0.0
    %564 = vmatprep.subr.mxu0 0.0
    %565 = vmatpush1.msra.mxu0 0.0
    %566 = vmatprep.subr.mxu0 0.0
    %567 = vmatpush1.msra.mxu0 0.0
    %568 = vmatprep.subr.mxu0 0.0
    %569 = vmatpush1.msra.mxu0 0.0
    %570 = vmatprep.subr.mxu0 0.0
    %571 = vmatpush1.msra.mxu0 0.0
    %572 = vmatprep.subr.mxu0 0.0
    %573 = vmatpush1.msra.mxu0 0.0
    %574 = vmatprep.subr.mxu0 0.0
    %575 = vmatpush1.msra.mxu0 0.0
    %576 = vmatprep.subr.mxu0 0.0
    %577 = vmatpush1.msra.mxu0 0.0
    %578 = vmatprep.subr.mxu0 0.0
    %579 = vmatpush1.msra.mxu0 0.0
    %580 = vmatprep.subr.mxu0 0.0
    %581 = vmatpush1.msra.mxu0 0.0
    %582 = vmatprep.mubr.f32.mxu0 0.0
    %583 = vmatmul.mubr.f32.gmra.mrb[0].mxu0 %v313
    %v584 = vpop.f32.mrb[0].mxu0
    %v585 = vadd.f32 0.0, %v584
    %v586 = vpop.f32.mrb[0].mxu0
    %587 = vdwg.mxu0
    %v588 = vadd.f32 %v107, %v585
    %v589 = vmul.f32 %v588, %v80
    %v590 = vtanh.pop %v589
    %v591 = vmul.f32 %v590, %v80
    %v592 = vadd.f32 %v591, %v81
    %v593 = vmul.f32 %v592, %v303
    %595 = vrot.lane.b32.xlu0 %v592, 64
    %v596 = vpop.permute.xlu0 %595
    %v598 = vmul.f32 %v592, %v596
    %600 = vrot.lane.b32.xlu0 %v598, 32
    %v601 = vpop.permute.xlu0 %600
    %v603 = vadd.f32 %v593, %v601
    %v604 = vtanh.pop %v603
    %606 = vrot.lane.b32.xlu0 %v604, 64
    %v607 = vpop.permute.xlu0 %606
    %v609 = vmul.f32 %v592, %v607
    %611 = vrot.lane.b32.xlu0 %v609, 32
    %v612 = vpop.permute.xlu0 %611
    %v613 = vsel %vm144, %v612, 0
    %615 = vmatprep.subr.mxu0 0.0
    %616 = vmatpush1.msra.mxu0 %v59
    %617 = vmatprep.subr.mxu0 0.0
    %618 = vmatpush1.msra.mxu0 %v60
    %619 = vmatprep.subr.mxu0 0.0
    %620 = vmatpush1.msra.mxu0 %v61
    %621 = vmatprep.subr.mxu0 0.0
    %622 = vmatpush1.msra.mxu0 %v62
    %623 = vmatprep.subr.mxu0 0.0
    %624 = vmatpush1.msra.mxu0 0.0
    %625 = vmatprep.subr.mxu0 0.0
    %626 = vmatpush1.msra.mxu0 0.0
    %627 = vmatprep.subr.mxu0 0.0
    %628 = vmatpush1.msra.mxu0 0.0
    %629 = vmatprep.subr.mxu0 0.0
    %630 = vmatpush1.msra.mxu0 0.0
    %631 = vmatprep.subr.mxu0 0.0
    %632 = vmatpush1.msra.mxu0 0.0
    %633 = vmatprep.subr.mxu0 0.0
    %634 = vmatpush1.msra.mxu0 0.0
    %635 = vmatprep.subr.mxu0 0.0
    %636 = vmatpush1.msra.mxu0 0.0
    %637 = vmatprep.subr.mxu0 0.0
    %638 = vmatpush1.msra.mxu0 0.0
    %639 = vmatprep.subr.mxu0 0.0
    %640 = vmatpush1.msra.mxu0 0.0
    %641 = vmatprep.subr.mxu0 0.0
    %642 = vmatpush1.msra.mxu0 0.0
    %643 = vmatprep.subr.mxu0 0.0
    %644 = vmatpush1.msra.mxu0 0.0
    %645 = vmatprep.subr.mxu0 0.0
    %646 = vmatpush1.msra.mxu0 0.0
    %647 = vmatprep.subr.mxu0 0.0
    %648 = vmatpush1.msra.mxu0 0.0
    %649 = vmatprep.subr.mxu0 0.0
    %650 = vmatpush1.msra.mxu0 0.0
    %651 = vmatprep.subr.mxu0 0.0
    %652 = vmatpush1.msra.mxu0 0.0
    %653 = vmatprep.subr.mxu0 0.0
    %654 = vmatpush1.msra.mxu0 0.0
    %655 = vmatprep.subr.mxu0 0.0
    %656 = vmatpush1.msra.mxu0 0.0
    %657 = vmatprep.subr.mxu0 0.0
    %658 = vmatpush1.msra.mxu0 0.0
    %659 = vmatprep.subr.mxu0 0.0
    %660 = vmatpush1.msra.mxu0 0.0
    %661 = vmatprep.subr.mxu0 0.0
    %662 = vmatpush1.msra.mxu0 0.0
    %663 = vmatprep.subr.mxu0 0.0
    %664 = vmatpush1.msra.mxu0 0.0
    %665 = vmatprep.subr.mxu0 0.0
    %666 = vmatpush1.msra.mxu0 0.0
    %667 = vmatprep.subr.mxu0 0.0
    %668 = vmatpush1.msra.mxu0 0.0
    %669 = vmatprep.subr.mxu0 0.0
    %670 = vmatpush1.msra.mxu0 0.0
    %671 = vmatprep.subr.mxu0 0.0
    %672 = vmatpush1.msra.mxu0 0.0
    %673 = vmatprep.subr.mxu0 0.0
    %674 = vmatpush1.msra.mxu0 0.0
    %675 = vmatprep.subr.mxu0 0.0
    %676 = vmatpush1.msra.mxu0 0.0
    %677 = vmatprep.subr.mxu0 0.0
    %678 = vmatpush1.msra.mxu0 0.0
    %679 = vmatprep.mubr.f32.mxu0 0.0
    %680 = vmatmul.mubr.f32.gmra.mrb[0].mxu0 %v613
    %v681 = vpop.f32.mrb[0].mxu0
    %v682 = vadd.f32 %v515, %v681
    %v683 = vpop.f32.mrb[0].mxu0
    %684 = vdwg.mxu0
    %v685 = vadd.f32 %v682, %v389
    %v686 = vmul.f32 %v685, %v80
    %v687 = vtanh.pop %v686
    %v688 = vmul.f32 %v687, %v80
    %v689 = vadd.f32 %v688, %v81
    %v690 = vmul.f32 %v689, %v406
    %692 = vrot.lane.b32.xlu0 %v689, 64
    %v693 = vpop.permute.xlu0 %692
    %v695 = vmul.f32 %v689, %v693
    %697 = vrot.lane.b32.xlu0 %v695, 32
    %v698 = vpop.permute.xlu0 %697
    %v700 = vadd.f32 %v690, %v698
    %v701 = vtanh.pop %v700
    %703 = vrot.lane.b32.xlu0 %v701, 64
    %v704 = vpop.permute.xlu0 %703
    %v706 = vmul.f32 %v689, %v704
    %v707 = vmul.f32 %v706, %v419
    %709 = vrot.lane.b32.xlu0 %v707, 32
    %v710 = vpop.permute.xlu0 %709
    %v712 = vsel %vm144, %v710, 0.0
    %713 = vadd.xlane.f32.xlu0 %v712
    %v714 = vpop.xlane.xlu0 %713
    %v715 = vadd.f32 %v714, %v433
    %vm716 = vcmp.eq.s32.totalorder %v76, 1
    %718 = vset.pattern.permute.xlu0 0
    %719 = vperm.xlu0 %718, %v715
    %v720 = vpop.permute.xlu0 %719
    %v722 = vsel %vm716, %v720, %v442
    %724 = vrot.lane.b32.xlu0 %v706, 32
    %v725 = vpop.permute.xlu0 %724
    %v726 = vsel %vm144, %v725, 0
    %728 = vmatprep.subr.mxu0 0.0
    %729 = vmatpush1.msra.mxu0 %v63
    %730 = vmatprep.subr.mxu0 0.0
    %731 = vmatpush1.msra.mxu0 %v64
    %732 = vmatprep.subr.mxu0 0.0
    %733 = vmatpush1.msra.mxu0 %v65
    %734 = vmatprep.subr.mxu0 0.0
    %735 = vmatpush1.msra.mxu0 %v66
    %736 = vmatprep.subr.mxu0 0.0
    %737 = vmatpush1.msra.mxu0 0.0
    %738 = vmatprep.subr.mxu0 0.0
    %739 = vmatpush1.msra.mxu0 0.0
    %740 = vmatprep.subr.mxu0 0.0
    %741 = vmatpush1.msra.mxu0 0.0
    %742 = vmatprep.subr.mxu0 0.0
    %743 = vmatpush1.msra.mxu0 0.0
    %744 = vmatprep.subr.mxu0 0.0
    %745 = vmatpush1.msra.mxu0 0.0
    %746 = vmatprep.subr.mxu0 0.0
    %747 = vmatpush1.msra.mxu0 0.0
    %748 = vmatprep.subr.mxu0 0.0
    %749 = vmatpush1.msra.mxu0 0.0
    %750 = vmatprep.subr.mxu0 0.0
    %751 = vmatpush1.msra.mxu0 0.0
    %752 = vmatprep.subr.mxu0 0.0
    %753 = vmatpush1.msra.mxu0 0.0
    %754 = vmatprep.subr.mxu0 0.0
    %755 = vmatpush1.msra.mxu0 0.0
    %756 = vmatprep.subr.mxu0 0.0
    %757 = vmatpush1.msra.mxu0 0.0
    %758 = vmatprep.subr.mxu0 0.0
    %759 = vmatpush1.msra.mxu0 0.0
    %760 = vmatprep.subr.mxu0 0.0
    %761 = vmatpush1.msra.mxu0 0.0
    %762 = vmatprep.subr.mxu0 0.0
    %763 = vmatpush1.msra.mxu0 0.0
    %764 = vmatprep.subr.mxu0 0.0
    %765 = vmatpush1.msra.mxu0 0.0
    %766 = vmatprep.subr.mxu0 0.0
    %767 = vmatpush1.msra.mxu0 0.0
    %768 = vmatprep.subr.mxu0 0.0
    %769 = vmatpush1.msra.mxu0 0.0
    %770 = vmatprep.subr.mxu0 0.0
    %771 = vmatpush1.msra.mxu0 0.0
    %772 = vmatprep.subr.mxu0 0.0
    %773 = vmatpush1.msra.mxu0 0.0
    %774 = vmatprep.subr.mxu0 0.0
    %775 = vmatpush1.msra.mxu0 0.0
    %776 = vmatprep.subr.mxu0 0.0
    %777 = vmatpush1.msra.mxu0 0.0
    %778 = vmatprep.subr.mxu0 0.0
    %779 = vmatpush1.msra.mxu0 0.0
    %780 = vmatprep.subr.mxu0 0.0
    %781 = vmatpush1.msra.mxu0 0.0
    %782 = vmatprep.subr.mxu0 0.0
    %783 = vmatpush1.msra.mxu0 0.0
    %784 = vmatprep.subr.mxu0 0.0
    %785 = vmatpush1.msra.mxu0 0.0
    %786 = vmatprep.subr.mxu0 0.0
    %787 = vmatpush1.msra.mxu0 0.0
    %788 = vmatprep.subr.mxu0 0.0
    %789 = vmatpush1.msra.mxu0 0.0
    %790 = vmatprep.subr.mxu0 0.0
    %791 = vmatpush1.msra.mxu0 0.0
    %792 = vmatprep.mubr.f32.mxu0 0.0
    %793 = vmatmul.mubr.f32.gmra.mrb[0].mxu0 %v726
    %v794 = vpop.f32.mrb[0].mxu0
    %v795 = vadd.f32 0.0, %v794
    %v796 = vpop.f32.mrb[0].mxu0
    %797 = vdwg.mxu0
    %798 = vmatprep.subr.mxu0 0.0
    %799 = vmatpush1.msra.mxu0 %v54
    %800 = vmatprep.subr.mxu0 0.0
    %801 = vmatpush1.msra.mxu0 %v55
    %802 = vmatprep.subr.mxu0 0.0
    %803 = vmatpush1.msra.mxu0 %v56
    %804 = vmatprep.subr.mxu0 0.0
    %805 = vmatpush1.msra.mxu0 %v57
    %806 = vmatprep.subr.mxu0 0.0
    %807 = vmatpush1.msra.mxu0 0.0
    %808 = vmatprep.subr.mxu0 0.0
    %809 = vmatpush1.msra.mxu0 0.0
    %810 = vmatprep.subr.mxu0 0.0
    %811 = vmatpush1.msra.mxu0 0.0
    %812 = vmatprep.subr.mxu0 0.0
    %813 = vmatpush1.msra.mxu0 0.0
    %814 = vmatprep.subr.mxu0 0.0
    %815 = vmatpush1.msra.mxu0 0.0
    %816 = vmatprep.subr.mxu0 0.0
    %817 = vmatpush1.msra.mxu0 0.0
    %818 = vmatprep.subr.mxu0 0.0
    %819 = vmatpush1.msra.mxu0 0.0
    %820 = vmatprep.subr.mxu0 0.0
    %821 = vmatpush1.msra.mxu0 0.0
    %822 = vmatprep.subr.mxu0 0.0
    %823 = vmatpush1.msra.mxu0 0.0
    %824 = vmatprep.subr.mxu0 0.0
    %825 = vmatpush1.msra.mxu0 0.0
    %826 = vmatprep.subr.mxu0 0.0
    %827 = vmatpush1.msra.mxu0 0.0
    %828 = vmatprep.subr.mxu0 0.0
    %829 = vmatpush1.msra.mxu0 0.0
    %830 = vmatprep.subr.mxu0 0.0
    %831 = vmatpush1.msra.mxu0 0.0
    %832 = vmatprep.subr.mxu0 0.0
    %833 = vmatpush1.msra.mxu0 0.0
    %834 = vmatprep.subr.mxu0 0.0
    %835 = vmatpush1.msra.mxu0 0.0
    %836 = vmatprep.subr.mxu0 0.0
    %837 = vmatpush1.msra.mxu0 0.0
    %838 = vmatprep.subr.mxu0 0.0
    %839 = vmatpush1.msra.mxu0 0.0
    %840 = vmatprep.subr.mxu0 0.0
    %841 = vmatpush1.msra.mxu0 0.0
    %842 = vmatprep.subr.mxu0 0.0
    %843 = vmatpush1.msra.mxu0 0.0
    %844 = vmatprep.subr.mxu0 0.0
    %845 = vmatpush1.msra.mxu0 0.0
    %846 = vmatprep.subr.mxu0 0.0
    %847 = vmatpush1.msra.mxu0 0.0
    %848 = vmatprep.subr.mxu0 0.0
    %849 = vmatpush1.msra.mxu0 0.0
    %850 = vmatprep.subr.mxu0 0.0
    %851 = vmatpush1.msra.mxu0 0.0
    %852 = vmatprep.subr.mxu0 0.0
    %853 = vmatpush1.msra.mxu0 0.0
    %854 = vmatprep.subr.mxu0 0.0
    %855 = vmatpush1.msra.mxu0 0.0
    %856 = vmatprep.subr.mxu0 0.0
    %857 = vmatpush1.msra.mxu0 0.0
    %858 = vmatprep.subr.mxu0 0.0
    %859 = vmatpush1.msra.mxu0 0.0
    %860 = vmatprep.subr.mxu0 0.0
    %861 = vmatpush1.msra.mxu0 0.0
    %862 = vmatprep.mubr.f32.mxu0 0.0
    %863 = vmatmul.mubr.f32.gmra.mrb[0].mxu0 %v613
    %v864 = vpop.f32.mrb[0].mxu0
    %v865 = vadd.f32 0.0, %v864
    %v866 = vpop.f32.mrb[0].mxu0
    %867 = vdwg.mxu0
    %v868 = vadd.f32 %v113, %v865
    %v869 = vmul.f32 %v868, %v80
    %v870 = vtanh.pop %v869
    %v871 = vmul.f32 %v870, %v80
    %v872 = vadd.f32 %v871, %v81
    %v873 = vmul.f32 %v872, %v603
    %875 = vrot.lane.b32.xlu0 %v872, 64
    %v876 = vpop.permute.xlu0 %875
    %v878 = vmul.f32 %v872, %v876
    %880 = vrot.lane.b32.xlu0 %v878, 32
    %v881 = vpop.permute.xlu0 %880
    %v883 = vadd.f32 %v873, %v881
    %v884 = vtanh.pop %v883
    %886 = vrot.lane.b32.xlu0 %v884, 64
    %v887 = vpop.permute.xlu0 %886
    %v889 = vmul.f32 %v872, %v887
    %891 = vrot.lane.b32.xlu0 %v889, 32
    %v892 = vpop.permute.xlu0 %891
    %v893 = vsel %vm144, %v892, 0
    %895 = vmatprep.subr.mxu0 0.0
    %896 = vmatpush1.msra.mxu0 %v59
    %897 = vmatprep.subr.mxu0 0.0
    %898 = vmatpush1.msra.mxu0 %v60
    %899 = vmatprep.subr.mxu0 0.0
    %900 = vmatpush1.msra.mxu0 %v61
    %901 = vmatprep.subr.mxu0 0.0
    %902 = vmatpush1.msra.mxu0 %v62
    %903 = vmatprep.subr.mxu0 0.0
    %904 = vmatpush1.msra.mxu0 0.0
    %905 = vmatprep.subr.mxu0 0.0
    %906 = vmatpush1.msra.mxu0 0.0
    %907 = vmatprep.subr.mxu0 0.0
    %908 = vmatpush1.msra.mxu0 0.0
    %909 = vmatprep.subr.mxu0 0.0
    %910 = vmatpush1.msra.mxu0 0.0
    %911 = vmatprep.subr.mxu0 0.0
    %912 = vmatpush1.msra.mxu0 0.0
    %913 = vmatprep.subr.mxu0 0.0
    %914 = vmatpush1.msra.mxu0 0.0
    %915 = vmatprep.subr.mxu0 0.0
    %916 = vmatpush1.msra.mxu0 0.0
    %917 = vmatprep.subr.mxu0 0.0
    %918 = vmatpush1.msra.mxu0 0.0
    %919 = vmatprep.subr.mxu0 0.0
    %920 = vmatpush1.msra.mxu0 0.0
    %921 = vmatprep.subr.mxu0 0.0
    %922 = vmatpush1.msra.mxu0 0.0
    %923 = vmatprep.subr.mxu0 0.0
    %924 = vmatpush1.msra.mxu0 0.0
    %925 = vmatprep.subr.mxu0 0.0
    %926 = vmatpush1.msra.mxu0 0.0
    %927 = vmatprep.subr.mxu0 0.0
    %928 = vmatpush1.msra.mxu0 0.0
    %929 = vmatprep.subr.mxu0 0.0
    %930 = vmatpush1.msra.mxu0 0.0
    %931 = vmatprep.subr.mxu0 0.0
    %932 = vmatpush1.msra.mxu0 0.0
    %933 = vmatprep.subr.mxu0 0.0
    %934 = vmatpush1.msra.mxu0 0.0
    %935 = vmatprep.subr.mxu0 0.0
    %936 = vmatpush1.msra.mxu0 0.0
    %937 = vmatprep.subr.mxu0 0.0
    %938 = vmatpush1.msra.mxu0 0.0
    %939 = vmatprep.subr.mxu0 0.0
    %940 = vmatpush1.msra.mxu0 0.0
    %941 = vmatprep.subr.mxu0 0.0
    %942 = vmatpush1.msra.mxu0 0.0
    %943 = vmatprep.subr.mxu0 0.0
    %944 = vmatpush1.msra.mxu0 0.0
    %945 = vmatprep.subr.mxu0 0.0
    %946 = vmatpush1.msra.mxu0 0.0
    %947 = vmatprep.subr.mxu0 0.0
    %948 = vmatpush1.msra.mxu0 0.0
    %949 = vmatprep.subr.mxu0 0.0
    %950 = vmatpush1.msra.mxu0 0.0
    %951 = vmatprep.subr.mxu0 0.0
    %952 = vmatpush1.msra.mxu0 0.0
    %953 = vmatprep.subr.mxu0 0.0
    %954 = vmatpush1.msra.mxu0 0.0
    %955 = vmatprep.subr.mxu0 0.0
    %956 = vmatpush1.msra.mxu0 0.0
    %957 = vmatprep.subr.mxu0 0.0
    %958 = vmatpush1.msra.mxu0 0.0
    %959 = vmatprep.mubr.f32.mxu0 0.0
    %960 = vmatmul.mubr.f32.gmra.mrb[0].mxu0 %v893
    %v961 = vpop.f32.mrb[0].mxu0
    %v962 = vadd.f32 %v795, %v961
    %v963 = vpop.f32.mrb[0].mxu0
    %964 = vdwg.mxu0
    %v965 = vadd.f32 %v962, %v389
    %v966 = vmul.f32 %v965, %v80
    %v967 = vtanh.pop %v966
    %v968 = vmul.f32 %v967, %v80
    %v969 = vadd.f32 %v968, %v81
    %v970 = vmul.f32 %v969, %v700
    %972 = vrot.lane.b32.xlu0 %v969, 64
    %v973 = vpop.permute.xlu0 %972
    %v975 = vmul.f32 %v969, %v973
    %977 = vrot.lane.b32.xlu0 %v975, 32
    %v978 = vpop.permute.xlu0 %977
    %v980 = vadd.f32 %v970, %v978
    %v981 = vtanh.pop %v980
    %983 = vrot.lane.b32.xlu0 %v981, 64
    %v984 = vpop.permute.xlu0 %983
    %v986 = vmul.f32 %v969, %v984
    %v987 = vmul.f32 %v986, %v419
    %989 = vrot.lane.b32.xlu0 %v987, 32
    %v990 = vpop.permute.xlu0 %989
    %v992 = vsel %vm144, %v990, 0.0
    %993 = vadd.xlane.f32.xlu0 %v992
    %v994 = vpop.xlane.xlu0 %993
    %v995 = vadd.f32 %v994, %v433
    %vm996 = vcmp.eq.s32.totalorder %v76, 2
    %998 = vset.pattern.permute.xlu0 0
    %999 = vperm.xlu0 %998, %v995
    %v1000 = vpop.permute.xlu0 %999
    %v1002 = vsel %vm996, %v1000, %v722
    %1004 = vrot.lane.b32.xlu0 %v986, 32
    %v1005 = vpop.permute.xlu0 %1004
    %v1006 = vsel %vm144, %v1005, 0
    %1008 = vmatprep.subr.mxu0 0.0
    %1009 = vmatpush1.msra.mxu0 %v63
    %1010 = vmatprep.subr.mxu0 0.0
    %1011 = vmatpush1.msra.mxu0 %v64
    %1012 = vmatprep.subr.mxu0 0.0
    %1013 = vmatpush1.msra.mxu0 %v65
    %1014 = vmatprep.subr.mxu0 0.0
    %1015 = vmatpush1.msra.mxu0 %v66
    %1016 = vmatprep.subr.mxu0 0.0
    %1017 = vmatpush1.msra.mxu0 0.0
    %1018 = vmatprep.subr.mxu0 0.0
    %1019 = vmatpush1.msra.mxu0 0.0
    %1020 = vmatprep.subr.mxu0 0.0
    %1021 = vmatpush1.msra.mxu0 0.0
    %1022 = vmatprep.subr.mxu0 0.0
    %1023 = vmatpush1.msra.mxu0 0.0
    %1024 = vmatprep.subr.mxu0 0.0
    %1025 = vmatpush1.msra.mxu0 0.0
    %1026 = vmatprep.subr.mxu0 0.0
    %1027 = vmatpush1.msra.mxu0 0.0
    %1028 = vmatprep.subr.mxu0 0.0
    %1029 = vmatpush1.msra.mxu0 0.0
    %1030 = vmatprep.subr.mxu0 0.0
    %1031 = vmatpush1.msra.mxu0 0.0
    %1032 = vmatprep.subr.mxu0 0.0
    %1033 = vmatpush1.msra.mxu0 0.0
    %1034 = vmatprep.subr.mxu0 0.0
    %1035 = vmatpush1.msra.mxu0 0.0
    %1036 = vmatprep.subr.mxu0 0.0
    %1037 = vmatpush1.msra.mxu0 0.0
    %1038 = vmatprep.subr.mxu0 0.0
    %1039 = vmatpush1.msra.mxu0 0.0
    %1040 = vmatprep.subr.mxu0 0.0
    %1041 = vmatpush1.msra.mxu0 0.0
    %1042 = vmatprep.subr.mxu0 0.0
    %1043 = vmatpush1.msra.mxu0 0.0
    %1044 = vmatprep.subr.mxu0 0.0
    %1045 = vmatpush1.msra.mxu0 0.0
    %1046 = vmatprep.subr.mxu0 0.0
    %1047 = vmatpush1.msra.mxu0 0.0
    %1048 = vmatprep.subr.mxu0 0.0
    %1049 = vmatpush1.msra.mxu0 0.0
    %1050 = vmatprep.subr.mxu0 0.0
    %1051 = vmatpush1.msra.mxu0 0.0
    %1052 = vmatprep.subr.mxu0 0.0
    %1053 = vmatpush1.msra.mxu0 0.0
    %1054 = vmatprep.subr.mxu0 0.0
    %1055 = vmatpush1.msra.mxu0 0.0
    %1056 = vmatprep.subr.mxu0 0.0
    %1057 = vmatpush1.msra.mxu0 0.0
    %1058 = vmatprep.subr.mxu0 0.0
    %1059 = vmatpush1.msra.mxu0 0.0
    %1060 = vmatprep.subr.mxu0 0.0
    %1061 = vmatpush1.msra.mxu0 0.0
    %1062 = vmatprep.subr.mxu0 0.0
    %1063 = vmatpush1.msra.mxu0 0.0
    %1064 = vmatprep.subr.mxu0 0.0
    %1065 = vmatpush1.msra.mxu0 0.0
    %1066 = vmatprep.subr.mxu0 0.0
    %1067 = vmatpush1.msra.mxu0 0.0
    %1068 = vmatprep.subr.mxu0 0.0
    %1069 = vmatpush1.msra.mxu0 0.0
    %1070 = vmatprep.subr.mxu0 0.0
    %1071 = vmatpush1.msra.mxu0 0.0
    %1072 = vmatprep.mubr.f32.mxu0 0.0
    %1073 = vmatmul.mubr.f32.gmra.mrb[0].mxu0 %v1006
    %v1074 = vpop.f32.mrb[0].mxu0
    %v1075 = vadd.f32 0.0, %v1074
    %v1076 = vpop.f32.mrb[0].mxu0
    %1077 = vdwg.mxu0
    %1078 = vmatprep.subr.mxu0 0.0
    %1079 = vmatpush1.msra.mxu0 %v54
    %1080 = vmatprep.subr.mxu0 0.0
    %1081 = vmatpush1.msra.mxu0 %v55
    %1082 = vmatprep.subr.mxu0 0.0
    %1083 = vmatpush1.msra.mxu0 %v56
    %1084 = vmatprep.subr.mxu0 0.0
    %1085 = vmatpush1.msra.mxu0 %v57
    %1086 = vmatprep.subr.mxu0 0.0
    %1087 = vmatpush1.msra.mxu0 0.0
    %1088 = vmatprep.subr.mxu0 0.0
    %1089 = vmatpush1.msra.mxu0 0.0
    %1090 = vmatprep.subr.mxu0 0.0
    %1091 = vmatpush1.msra.mxu0 0.0
    %1092 = vmatprep.subr.mxu0 0.0
    %1093 = vmatpush1.msra.mxu0 0.0
    %1094 = vmatprep.subr.mxu0 0.0
    %1095 = vmatpush1.msra.mxu0 0.0
    %1096 = vmatprep.subr.mxu0 0.0
    %1097 = vmatpush1.msra.mxu0 0.0
    %1098 = vmatprep.subr.mxu0 0.0
    %1099 = vmatpush1.msra.mxu0 0.0
    %1100 = vmatprep.subr.mxu0 0.0
    %1101 = vmatpush1.msra.mxu0 0.0
    %1102 = vmatprep.subr.mxu0 0.0
    %1103 = vmatpush1.msra.mxu0 0.0
    %1104 = vmatprep.subr.mxu0 0.0
    %1105 = vmatpush1.msra.mxu0 0.0
    %1106 = vmatprep.subr.mxu0 0.0
    %1107 = vmatpush1.msra.mxu0 0.0
    %1108 = vmatprep.subr.mxu0 0.0
    %1109 = vmatpush1.msra.mxu0 0.0
    %1110 = vmatprep.subr.mxu0 0.0
    %1111 = vmatpush1.msra.mxu0 0.0
    %1112 = vmatprep.subr.mxu0 0.0
    %1113 = vmatpush1.msra.mxu0 0.0
    %1114 = vmatprep.subr.mxu0 0.0
    %1115 = vmatpush1.msra.mxu0 0.0
    %1116 = vmatprep.subr.mxu0 0.0
    %1117 = vmatpush1.msra.mxu0 0.0
    %1118 = vmatprep.subr.mxu0 0.0
    %1119 = vmatpush1.msra.mxu0 0.0
    %1120 = vmatprep.subr.mxu0 0.0
    %1121 = vmatpush1.msra.mxu0 0.0
    %1122 = vmatprep.subr.mxu0 0.0
    %1123 = vmatpush1.msra.mxu0 0.0
    %1124 = vmatprep.subr.mxu0 0.0
    %1125 = vmatpush1.msra.mxu0 0.0
    %1126 = vmatprep.subr.mxu0 0.0
    %1127 = vmatpush1.msra.mxu0 0.0
    %1128 = vmatprep.subr.mxu0 0.0
    %1129 = vmatpush1.msra.mxu0 0.0
    %1130 = vmatprep.subr.mxu0 0.0
    %1131 = vmatpush1.msra.mxu0 0.0
    %1132 = vmatprep.subr.mxu0 0.0
    %1133 = vmatpush1.msra.mxu0 0.0
    %1134 = vmatprep.subr.mxu0 0.0
    %1135 = vmatpush1.msra.mxu0 0.0
    %1136 = vmatprep.subr.mxu0 0.0
    %1137 = vmatpush1.msra.mxu0 0.0
    %1138 = vmatprep.subr.mxu0 0.0
    %1139 = vmatpush1.msra.mxu0 0.0
    %1140 = vmatprep.subr.mxu0 0.0
    %1141 = vmatpush1.msra.mxu0 0.0
    %1142 = vmatprep.mubr.f32.mxu0 0.0
    %1143 = vmatmul.mubr.f32.gmra.mrb[0].mxu0 %v893
    %v1144 = vpop.f32.mrb[0].mxu0
    %v1145 = vadd.f32 0.0, %v1144
    %v1146 = vpop.f32.mrb[0].mxu0
    %1147 = vdwg.mxu0
    %v1148 = vadd.f32 %v119, %v1145
    %v1149 = vmul.f32 %v1148, %v80
    %v1150 = vtanh.pop %v1149
    %v1151 = vmul.f32 %v1150, %v80
    %v1152 = vadd.f32 %v1151, %v81
    %v1153 = vmul.f32 %v1152, %v883
    %1155 = vrot.lane.b32.xlu0 %v1152, 64
    %v1156 = vpop.permute.xlu0 %1155
    %v1158 = vmul.f32 %v1152, %v1156
    %1160 = vrot.lane.b32.xlu0 %v1158, 32
    %v1161 = vpop.permute.xlu0 %1160
    %v1163 = vadd.f32 %v1153, %v1161
    %v1164 = vtanh.pop %v1163
    %1166 = vrot.lane.b32.xlu0 %v1164, 64
    %v1167 = vpop.permute.xlu0 %1166
    %v1169 = vmul.f32 %v1152, %v1167
    %1171 = vrot.lane.b32.xlu0 %v1169, 32
    %v1172 = vpop.permute.xlu0 %1171
    %v1173 = vsel %vm144, %v1172, 0
    %1175 = vmatprep.subr.mxu0 0.0
    %1176 = vmatpush1.msra.mxu0 %v59
    %1177 = vmatprep.subr.mxu0 0.0
    %1178 = vmatpush1.msra.mxu0 %v60
    %1179 = vmatprep.subr.mxu0 0.0
    %1180 = vmatpush1.msra.mxu0 %v61
    %1181 = vmatprep.subr.mxu0 0.0
    %1182 = vmatpush1.msra.mxu0 %v62
    %1183 = vmatprep.subr.mxu0 0.0
    %1184 = vmatpush1.msra.mxu0 0.0
    %1185 = vmatprep.subr.mxu0 0.0
    %1186 = vmatpush1.msra.mxu0 0.0
    %1187 = vmatprep.subr.mxu0 0.0
    %1188 = vmatpush1.msra.mxu0 0.0
    %1189 = vmatprep.subr.mxu0 0.0
    %1190 = vmatpush1.msra.mxu0 0.0
    %1191 = vmatprep.subr.mxu0 0.0
    %1192 = vmatpush1.msra.mxu0 0.0
    %1193 = vmatprep.subr.mxu0 0.0
    %1194 = vmatpush1.msra.mxu0 0.0
    %1195 = vmatprep.subr.mxu0 0.0
    %1196 = vmatpush1.msra.mxu0 0.0
    %1197 = vmatprep.subr.mxu0 0.0
    %1198 = vmatpush1.msra.mxu0 0.0
    %1199 = vmatprep.subr.mxu0 0.0
    %1200 = vmatpush1.msra.mxu0 0.0
    %1201 = vmatprep.subr.mxu0 0.0
    %1202 = vmatpush1.msra.mxu0 0.0
    %1203 = vmatprep.subr.mxu0 0.0
    %1204 = vmatpush1.msra.mxu0 0.0
    %1205 = vmatprep.subr.mxu0 0.0
    %1206 = vmatpush1.msra.mxu0 0.0
    %1207 = vmatprep.subr.mxu0 0.0
    %1208 = vmatpush1.msra.mxu0 0.0
    %1209 = vmatprep.subr.mxu0 0.0
    %1210 = vmatpush1.msra.mxu0 0.0
    %1211 = vmatprep.subr.mxu0 0.0
    %1212 = vmatpush1.msra.mxu0 0.0
    %1213 = vmatprep.subr.mxu0 0.0
    %1214 = vmatpush1.msra.mxu0 0.0
    %1215 = vmatprep.subr.mxu0 0.0
    %1216 = vmatpush1.msra.mxu0 0.0
    %1217 = vmatprep.subr.mxu0 0.0
    %1218 = vmatpush1.msra.mxu0 0.0
    %1219 = vmatprep.subr.mxu0 0.0
    %1220 = vmatpush1.msra.mxu0 0.0
    %1221 = vmatprep.subr.mxu0 0.0
    %1222 = vmatpush1.msra.mxu0 0.0
    %1223 = vmatprep.subr.mxu0 0.0
    %1224 = vmatpush1.msra.mxu0 0.0
    %1225 = vmatprep.subr.mxu0 0.0
    %1226 = vmatpush1.msra.mxu0 0.0
    %1227 = vmatprep.subr.mxu0 0.0
    %1228 = vmatpush1.msra.mxu0 0.0
    %1229 = vmatprep.subr.mxu0 0.0
    %1230 = vmatpush1.msra.mxu0 0.0
    %1231 = vmatprep.subr.mxu0 0.0
    %1232 = vmatpush1.msra.mxu0 0.0
    %1233 = vmatprep.subr.mxu0 0.0
    %1234 = vmatpush1.msra.mxu0 0.0
    %1235 = vmatprep.subr.mxu0 0.0
    %1236 = vmatpush1.msra.mxu0 0.0
    %1237 = vmatprep.subr.mxu0 0.0
    %1238 = vmatpush1.msra.mxu0 0.0
    %1239 = vmatprep.mubr.f32.mxu0 0.0
    %1240 = vmatmul.mubr.f32.gmra.mrb[0].mxu0 %v1173
    %v1241 = vpop.f32.mrb[0].mxu0
    %v1242 = vadd.f32 %v1075, %v1241
    %v1243 = vpop.f32.mrb[0].mxu0
    %1244 = vdwg.mxu0
    %v1245 = vadd.f32 %v1242, %v389
    %v1246 = vmul.f32 %v1245, %v80
    %v1247 = vtanh.pop %v1246
    %v1248 = vmul.f32 %v1247, %v80
    %v1249 = vadd.f32 %v1248, %v81
    %v1250 = vmul.f32 %v1249, %v980
    %1252 = vrot.lane.b32.xlu0 %v1249, 64
    %v1253 = vpop.permute.xlu0 %1252
    %v1255 = vmul.f32 %v1249, %v1253
    %1257 = vrot.lane.b32.xlu0 %v1255, 32
    %v1258 = vpop.permute.xlu0 %1257
    %v1260 = vadd.f32 %v1250, %v1258
    %v1261 = vtanh.pop %v1260
    %1263 = vrot.lane.b32.xlu0 %v1261, 64
    %v1264 = vpop.permute.xlu0 %1263
    %v1266 = vmul.f32 %v1249, %v1264
    %v1267 = vmul.f32 %v1266, %v419
    %1269 = vrot.lane.b32.xlu0 %v1267, 32
    %v1270 = vpop.permute.xlu0 %1269
    %v1272 = vsel %vm144, %v1270, 0.0
    %1273 = vadd.xlane.f32.xlu0 %v1272
    %v1274 = vpop.xlane.xlu0 %1273
    %v1275 = vadd.f32 %v1274, %v433
    %vm1276 = vcmp.eq.s32.totalorder %v76, 3
    %1278 = vset.pattern.permute.xlu0 0
    %1279 = vperm.xlu0 %1278, %v1275
    %v1280 = vpop.permute.xlu0 %1279
    %v1282 = vsel %vm1276, %v1280, %v1002
    %1284 = vrot.lane.b32.xlu0 %v1266, 32
    %v1285 = vpop.permute.xlu0 %1284
    %v1286 = vsel %vm144, %v1285, 0
    %1288 = vmatprep.subr.mxu0 0.0
    %1289 = vmatpush1.msra.mxu0 %v63
    %1290 = vmatprep.subr.mxu0 0.0
    %1291 = vmatpush1.msra.mxu0 %v64
    %1292 = vmatprep.subr.mxu0 0.0
    %1293 = vmatpush1.msra.mxu0 %v65
    %1294 = vmatprep.subr.mxu0 0.0
    %1295 = vmatpush1.msra.mxu0 %v66
    %1296 = vmatprep.subr.mxu0 0.0
    %1297 = vmatpush1.msra.mxu0 0.0
    %1298 = vmatprep.subr.mxu0 0.0
    %1299 = vmatpush1.msra.mxu0 0.0
    %1300 = vmatprep.subr.mxu0 0.0
    %1301 = vmatpush1.msra.mxu0 0.0
    %1302 = vmatprep.subr.mxu0 0.0
    %1303 = vmatpush1.msra.mxu0 0.0
    %1304 = vmatprep.subr.mxu0 0.0
    %1305 = vmatpush1.msra.mxu0 0.0
    %1306 = vmatprep.subr.mxu0 0.0
    %1307 = vmatpush1.msra.mxu0 0.0
    %1308 = vmatprep.subr.mxu0 0.0
    %1309 = vmatpush1.msra.mxu0 0.0
    %1310 = vmatprep.subr.mxu0 0.0
    %1311 = vmatpush1.msra.mxu0 0.0
    %1312 = vmatprep.subr.mxu0 0.0
    %1313 = vmatpush1.msra.mxu0 0.0
    %1314 = vmatprep.subr.mxu0 0.0
    %1315 = vmatpush1.msra.mxu0 0.0
    %1316 = vmatprep.subr.mxu0 0.0
    %1317 = vmatpush1.msra.mxu0 0.0
    %1318 = vmatprep.subr.mxu0 0.0
    %1319 = vmatpush1.msra.mxu0 0.0
    %1320 = vmatprep.subr.mxu0 0.0
    %1321 = vmatpush1.msra.mxu0 0.0
    %1322 = vmatprep.subr.mxu0 0.0
    %1323 = vmatpush1.msra.mxu0 0.0
    %1324 = vmatprep.subr.mxu0 0.0
    %1325 = vmatpush1.msra.mxu0 0.0
    %1326 = vmatprep.subr.mxu0 0.0
    %1327 = vmatpush1.msra.mxu0 0.0
    %1328 = vmatprep.subr.mxu0 0.0
    %1329 = vmatpush1.msra.mxu0 0.0
    %1330 = vmatprep.subr.mxu0 0.0
    %1331 = vmatpush1.msra.mxu0 0.0
    %1332 = vmatprep.subr.mxu0 0.0
    %1333 = vmatpush1.msra.mxu0 0.0
    %1334 = vmatprep.subr.mxu0 0.0
    %1335 = vmatpush1.msra.mxu0 0.0
    %1336 = vmatprep.subr.mxu0 0.0
    %1337 = vmatpush1.msra.mxu0 0.0
    %1338 = vmatprep.subr.mxu0 0.0
    %1339 = vmatpush1.msra.mxu0 0.0
    %1340 = vmatprep.subr.mxu0 0.0
    %1341 = vmatpush1.msra.mxu0 0.0
    %1342 = vmatprep.subr.mxu0 0.0
    %1343 = vmatpush1.msra.mxu0 0.0
    %1344 = vmatprep.subr.mxu0 0.0
    %1345 = vmatpush1.msra.mxu0 0.0
    %1346 = vmatprep.subr.mxu0 0.0
    %1347 = vmatpush1.msra.mxu0 0.0
    %1348 = vmatprep.subr.mxu0 0.0
    %1349 = vmatpush1.msra.mxu0 0.0
    %1350 = vmatprep.subr.mxu0 0.0
    %1351 = vmatpush1.msra.mxu0 0.0
    %1352 = vmatprep.mubr.f32.mxu0 0.0
    %1353 = vmatmul.mubr.f32.gmra.mrb[0].mxu0 %v1286
    %v1354 = vpop.f32.mrb[0].mxu0
    %v1355 = vadd.f32 0.0, %v1354
    %v1356 = vpop.f32.mrb[0].mxu0
    %1357 = vdwg.mxu0
    %1358 = vmatprep.subr.mxu0 0.0
    %1359 = vmatpush1.msra.mxu0 %v54
    %1360 = vmatprep.subr.mxu0 0.0
    %1361 = vmatpush1.msra.mxu0 %v55
    %1362 = vmatprep.subr.mxu0 0.0
    %1363 = vmatpush1.msra.mxu0 %v56
    %1364 = vmatprep.subr.mxu0 0.0
    %1365 = vmatpush1.msra.mxu0 %v57
    %1366 = vmatprep.subr.mxu0 0.0
    %1367 = vmatpush1.msra.mxu0 0.0
    %1368 = vmatprep.subr.mxu0 0.0
    %1369 = vmatpush1.msra.mxu0 0.0
    %1370 = vmatprep.subr.mxu0 0.0
    %1371 = vmatpush1.msra.mxu0 0.0
    %1372 = vmatprep.subr.mxu0 0.0
    %1373 = vmatpush1.msra.mxu0 0.0
    %1374 = vmatprep.subr.mxu0 0.0
    %1375 = vmatpush1.msra.mxu0 0.0
    %1376 = vmatprep.subr.mxu0 0.0
    %1377 = vmatpush1.msra.mxu0 0.0
    %1378 = vmatprep.subr.mxu0 0.0
    %1379 = vmatpush1.msra.mxu0 0.0
    %1380 = vmatprep.subr.mxu0 0.0
    %1381 = vmatpush1.msra.mxu0 0.0
    %1382 = vmatprep.subr.mxu0 0.0
    %1383 = vmatpush1.msra.mxu0 0.0
    %1384 = vmatprep.subr.mxu0 0.0
    %1385 = vmatpush1.msra.mxu0 0.0
    %1386 = vmatprep.subr.mxu0 0.0
    %1387 = vmatpush1.msra.mxu0 0.0
    %1388 = vmatprep.subr.mxu0 0.0
    %1389 = vmatpush1.msra.mxu0 0.0
    %1390 = vmatprep.subr.mxu0 0.0
    %1391 = vmatpush1.msra.mxu0 0.0
    %1392 = vmatprep.subr.mxu0 0.0
    %1393 = vmatpush1.msra.mxu0 0.0
    %1394 = vmatprep.subr.mxu0 0.0
    %1395 = vmatpush1.msra.mxu0 0.0
    %1396 = vmatprep.subr.mxu0 0.0
    %1397 = vmatpush1.msra.mxu0 0.0
    %1398 = vmatprep.subr.mxu0 0.0
    %1399 = vmatpush1.msra.mxu0 0.0
    %1400 = vmatprep.subr.mxu0 0.0
    %1401 = vmatpush1.msra.mxu0 0.0
    %1402 = vmatprep.subr.mxu0 0.0
    %1403 = vmatpush1.msra.mxu0 0.0
    %1404 = vmatprep.subr.mxu0 0.0
    %1405 = vmatpush1.msra.mxu0 0.0
    %1406 = vmatprep.subr.mxu0 0.0
    %1407 = vmatpush1.msra.mxu0 0.0
    %1408 = vmatprep.subr.mxu0 0.0
    %1409 = vmatpush1.msra.mxu0 0.0
    %1410 = vmatprep.subr.mxu0 0.0
    %1411 = vmatpush1.msra.mxu0 0.0
    %1412 = vmatprep.subr.mxu0 0.0
    %1413 = vmatpush1.msra.mxu0 0.0
    %1414 = vmatprep.subr.mxu0 0.0
    %1415 = vmatpush1.msra.mxu0 0.0
    %1416 = vmatprep.subr.mxu0 0.0
    %1417 = vmatpush1.msra.mxu0 0.0
    %1418 = vmatprep.subr.mxu0 0.0
    %1419 = vmatpush1.msra.mxu0 0.0
    %1420 = vmatprep.subr.mxu0 0.0
    %1421 = vmatpush1.msra.mxu0 0.0
    %1422 = vmatprep.mubr.f32.mxu0 0.0
    %1423 = vmatmul.mubr.f32.gmra.mrb[0].mxu0 %v1173
    %v1424 = vpop.f32.mrb[0].mxu0
    %v1425 = vadd.f32 0.0, %v1424
    %v1426 = vpop.f32.mrb[0].mxu0
    %1427 = vdwg.mxu0
    %v1428 = vadd.f32 %v125, %v1425
    %v1429 = vmul.f32 %v1428, %v80
    %v1430 = vtanh.pop %v1429
    %v1431 = vmul.f32 %v1430, %v80
    %v1432 = vadd.f32 %v1431, %v81
    %v1433 = vmul.f32 %v1432, %v1163
    %1435 = vrot.lane.b32.xlu0 %v1432, 64
    %v1436 = vpop.permute.xlu0 %1435
    %v1438 = vmul.f32 %v1432, %v1436
    %1440 = vrot.lane.b32.xlu0 %v1438, 32
    %v1441 = vpop.permute.xlu0 %1440
    %v1443 = vadd.f32 %v1433, %v1441
    %v1444 = vtanh.pop %v1443
    %1446 = vrot.lane.b32.xlu0 %v1444, 64
    %v1447 = vpop.permute.xlu0 %1446
    %v1449 = vmul.f32 %v1432, %v1447
    %1451 = vrot.lane.b32.xlu0 %v1449, 32
    %v1452 = vpop.permute.xlu0 %1451
    %v1453 = vsel %vm144, %v1452, 0
    %1455 = vmatprep.subr.mxu0 0.0
    %1456 = vmatpush1.msra.mxu0 %v59
    %1457 = vmatprep.subr.mxu0 0.0
    %1458 = vmatpush1.msra.mxu0 %v60
    %1459 = vmatprep.subr.mxu0 0.0
    %1460 = vmatpush1.msra.mxu0 %v61
    %1461 = vmatprep.subr.mxu0 0.0
    %1462 = vmatpush1.msra.mxu0 %v62
    %1463 = vmatprep.subr.mxu0 0.0
    %1464 = vmatpush1.msra.mxu0 0.0
    %1465 = vmatprep.subr.mxu0 0.0
    %1466 = vmatpush1.msra.mxu0 0.0
    %1467 = vmatprep.subr.mxu0 0.0
    %1468 = vmatpush1.msra.mxu0 0.0
    %1469 = vmatprep.subr.mxu0 0.0
    %1470 = vmatpush1.msra.mxu0 0.0
    %1471 = vmatprep.subr.mxu0 0.0
    %1472 = vmatpush1.msra.mxu0 0.0
    %1473 = vmatprep.subr.mxu0 0.0
    %1474 = vmatpush1.msra.mxu0 0.0
    %1475 = vmatprep.subr.mxu0 0.0
    %1476 = vmatpush1.msra.mxu0 0.0
    %1477 = vmatprep.subr.mxu0 0.0
    %1478 = vmatpush1.msra.mxu0 0.0
    %1479 = vmatprep.subr.mxu0 0.0
    %1480 = vmatpush1.msra.mxu0 0.0
    %1481 = vmatprep.subr.mxu0 0.0
    %1482 = vmatpush1.msra.mxu0 0.0
    %1483 = vmatprep.subr.mxu0 0.0
    %1484 = vmatpush1.msra.mxu0 0.0
    %1485 = vmatprep.subr.mxu0 0.0
    %1486 = vmatpush1.msra.mxu0 0.0
    %1487 = vmatprep.subr.mxu0 0.0
    %1488 = vmatpush1.msra.mxu0 0.0
    %1489 = vmatprep.subr.mxu0 0.0
    %1490 = vmatpush1.msra.mxu0 0.0
    %1491 = vmatprep.subr.mxu0 0.0
    %1492 = vmatpush1.msra.mxu0 0.0
    %1493 = vmatprep.subr.mxu0 0.0
    %1494 = vmatpush1.msra.mxu0 0.0
    %1495 = vmatprep.subr.mxu0 0.0
    %1496 = vmatpush1.msra.mxu0 0.0
    %1497 = vmatprep.subr.mxu0 0.0
    %1498 = vmatpush1.msra.mxu0 0.0
    %1499 = vmatprep.subr.mxu0 0.0
    %1500 = vmatpush1.msra.mxu0 0.0
    %1501 = vmatprep.subr.mxu0 0.0
    %1502 = vmatpush1.msra.mxu0 0.0
    %1503 = vmatprep.subr.mxu0 0.0
    %1504 = vmatpush1.msra.mxu0 0.0
    %1505 = vmatprep.subr.mxu0 0.0
    %1506 = vmatpush1.msra.mxu0 0.0
    %1507 = vmatprep.subr.mxu0 0.0
    %1508 = vmatpush1.msra.mxu0 0.0
    %1509 = vmatprep.subr.mxu0 0.0
    %1510 = vmatpush1.msra.mxu0 0.0
    %1511 = vmatprep.subr.mxu0 0.0
    %1512 = vmatpush1.msra.mxu0 0.0
    %1513 = vmatprep.subr.mxu0 0.0
    %1514 = vmatpush1.msra.mxu0 0.0
    %1515 = vmatprep.subr.mxu0 0.0
    %1516 = vmatpush1.msra.mxu0 0.0
    %1517 = vmatprep.subr.mxu0 0.0
    %1518 = vmatpush1.msra.mxu0 0.0
    %1519 = vmatprep.mubr.f32.mxu0 0.0
    %1520 = vmatmul.mubr.f32.gmra.mrb[0].mxu0 %v1453
    %v1521 = vpop.f32.mrb[0].mxu0
    %v1522 = vadd.f32 %v1355, %v1521
    %v1523 = vpop.f32.mrb[0].mxu0
    %1524 = vdwg.mxu0
    %v1525 = vadd.f32 %v1522, %v389
    %v1526 = vmul.f32 %v1525, %v80
    %v1527 = vtanh.pop %v1526
    %v1528 = vmul.f32 %v1527, %v80
    %v1529 = vadd.f32 %v1528, %v81
    %v1530 = vmul.f32 %v1529, %v1260
    %1532 = vrot.lane.b32.xlu0 %v1529, 64
    %v1533 = vpop.permute.xlu0 %1532
    %v1535 = vmul.f32 %v1529, %v1533
    %1537 = vrot.lane.b32.xlu0 %v1535, 32
    %v1538 = vpop.permute.xlu0 %1537
    %v1540 = vadd.f32 %v1530, %v1538
    %v1541 = vtanh.pop %v1540
    %1543 = vrot.lane.b32.xlu0 %v1541, 64
    %v1544 = vpop.permute.xlu0 %1543
    %v1546 = vmul.f32 %v1529, %v1544
    %v1547 = vmul.f32 %v1546, %v419
    %1549 = vrot.lane.b32.xlu0 %v1547, 32
    %v1550 = vpop.permute.xlu0 %1549
    %v1552 = vsel %vm144, %v1550, 0.0
    %1553 = vadd.xlane.f32.xlu0 %v1552
    %v1554 = vpop.xlane.xlu0 %1553
    %v1555 = vadd.f32 %v1554, %v433
    %vm1556 = vcmp.eq.s32.totalorder %v76, 4
    %1558 = vset.pattern.permute.xlu0 0
    %1559 = vperm.xlu0 %1558, %v1555
    %v1560 = vpop.permute.xlu0 %1559
    %v1562 = vsel %vm1556, %v1560, %v1282
    %1564 = vrot.lane.b32.xlu0 %v1546, 32
    %v1565 = vpop.permute.xlu0 %1564
    %v1566 = vsel %vm144, %v1565, 0
    %1568 = vmatprep.subr.mxu0 0.0
    %1569 = vmatpush1.msra.mxu0 %v63
    %1570 = vmatprep.subr.mxu0 0.0
    %1571 = vmatpush1.msra.mxu0 %v64
    %1572 = vmatprep.subr.mxu0 0.0
    %1573 = vmatpush1.msra.mxu0 %v65
    %1574 = vmatprep.subr.mxu0 0.0
    %1575 = vmatpush1.msra.mxu0 %v66
    %1576 = vmatprep.subr.mxu0 0.0
    %1577 = vmatpush1.msra.mxu0 0.0
    %1578 = vmatprep.subr.mxu0 0.0
    %1579 = vmatpush1.msra.mxu0 0.0
    %1580 = vmatprep.subr.mxu0 0.0
    %1581 = vmatpush1.msra.mxu0 0.0
    %1582 = vmatprep.subr.mxu0 0.0
    %1583 = vmatpush1.msra.mxu0 0.0
    %1584 = vmatprep.subr.mxu0 0.0
    %1585 = vmatpush1.msra.mxu0 0.0
    %1586 = vmatprep.subr.mxu0 0.0
    %1587 = vmatpush1.msra.mxu0 0.0
    %1588 = vmatprep.subr.mxu0 0.0
    %1589 = vmatpush1.msra.mxu0 0.0
    %1590 = vmatprep.subr.mxu0 0.0
    %1591 = vmatpush1.msra.mxu0 0.0
    %1592 = vmatprep.subr.mxu0 0.0
    %1593 = vmatpush1.msra.mxu0 0.0
    %1594 = vmatprep.subr.mxu0 0.0
    %1595 = vmatpush1.msra.mxu0 0.0
    %1596 = vmatprep.subr.mxu0 0.0
    %1597 = vmatpush1.msra.mxu0 0.0
    %1598 = vmatprep.subr.mxu0 0.0
    %1599 = vmatpush1.msra.mxu0 0.0
    %1600 = vmatprep.subr.mxu0 0.0
    %1601 = vmatpush1.msra.mxu0 0.0
    %1602 = vmatprep.subr.mxu0 0.0
    %1603 = vmatpush1.msra.mxu0 0.0
    %1604 = vmatprep.subr.mxu0 0.0
    %1605 = vmatpush1.msra.mxu0 0.0
    %1606 = vmatprep.subr.mxu0 0.0
    %1607 = vmatpush1.msra.mxu0 0.0
    %1608 = vmatprep.subr.mxu0 0.0
    %1609 = vmatpush1.msra.mxu0 0.0
    %1610 = vmatprep.subr.mxu0 0.0
    %1611 = vmatpush1.msra.mxu0 0.0
    %1612 = vmatprep.subr.mxu0 0.0
    %1613 = vmatpush1.msra.mxu0 0.0
    %1614 = vmatprep.subr.mxu0 0.0
    %1615 = vmatpush1.msra.mxu0 0.0
    %1616 = vmatprep.subr.mxu0 0.0
    %1617 = vmatpush1.msra.mxu0 0.0
    %1618 = vmatprep.subr.mxu0 0.0
    %1619 = vmatpush1.msra.mxu0 0.0
    %1620 = vmatprep.subr.mxu0 0.0
    %1621 = vmatpush1.msra.mxu0 0.0
    %1622 = vmatprep.subr.mxu0 0.0
    %1623 = vmatpush1.msra.mxu0 0.0
    %1624 = vmatprep.subr.mxu0 0.0
    %1625 = vmatpush1.msra.mxu0 0.0
    %1626 = vmatprep.subr.mxu0 0.0
    %1627 = vmatpush1.msra.mxu0 0.0
    %1628 = vmatprep.subr.mxu0 0.0
    %1629 = vmatpush1.msra.mxu0 0.0
    %1630 = vmatprep.subr.mxu0 0.0
    %1631 = vmatpush1.msra.mxu0 0.0
    %1632 = vmatprep.mubr.f32.mxu0 0.0
    %1633 = vmatmul.mubr.f32.gmra.mrb[0].mxu0 %v1566
    %v1634 = vpop.f32.mrb[0].mxu0
    %v1635 = vadd.f32 0.0, %v1634
    %v1636 = vpop.f32.mrb[0].mxu0
    %1637 = vdwg.mxu0
    %1638 = vmatprep.subr.mxu0 0.0
    %1639 = vmatpush1.msra.mxu0 %v54
    %1640 = vmatprep.subr.mxu0 0.0
    %1641 = vmatpush1.msra.mxu0 %v55
    %1642 = vmatprep.subr.mxu0 0.0
    %1643 = vmatpush1.msra.mxu0 %v56
    %1644 = vmatprep.subr.mxu0 0.0
    %1645 = vmatpush1.msra.mxu0 %v57
    %1646 = vmatprep.subr.mxu0 0.0
    %1647 = vmatpush1.msra.mxu0 0.0
    %1648 = vmatprep.subr.mxu0 0.0
    %1649 = vmatpush1.msra.mxu0 0.0
    %1650 = vmatprep.subr.mxu0 0.0
    %1651 = vmatpush1.msra.mxu0 0.0
    %1652 = vmatprep.subr.mxu0 0.0
    %1653 = vmatpush1.msra.mxu0 0.0
    %1654 = vmatprep.subr.mxu0 0.0
    %1655 = vmatpush1.msra.mxu0 0.0
    %1656 = vmatprep.subr.mxu0 0.0
    %1657 = vmatpush1.msra.mxu0 0.0
    %1658 = vmatprep.subr.mxu0 0.0
    %1659 = vmatpush1.msra.mxu0 0.0
    %1660 = vmatprep.subr.mxu0 0.0
    %1661 = vmatpush1.msra.mxu0 0.0
    %1662 = vmatprep.subr.mxu0 0.0
    %1663 = vmatpush1.msra.mxu0 0.0
    %1664 = vmatprep.subr.mxu0 0.0
    %1665 = vmatpush1.msra.mxu0 0.0
    %1666 = vmatprep.subr.mxu0 0.0
    %1667 = vmatpush1.msra.mxu0 0.0
    %1668 = vmatprep.subr.mxu0 0.0
    %1669 = vmatpush1.msra.mxu0 0.0
    %1670 = vmatprep.subr.mxu0 0.0
    %1671 = vmatpush1.msra.mxu0 0.0
    %1672 = vmatprep.subr.mxu0 0.0
    %1673 = vmatpush1.msra.mxu0 0.0
    %1674 = vmatprep.subr.mxu0 0.0
    %1675 = vmatpush1.msra.mxu0 0.0
    %1676 = vmatprep.subr.mxu0 0.0
    %1677 = vmatpush1.msra.mxu0 0.0
    %1678 = vmatprep.subr.mxu0 0.0
    %1679 = vmatpush1.msra.mxu0 0.0
    %1680 = vmatprep.subr.mxu0 0.0
    %1681 = vmatpush1.msra.mxu0 0.0
    %1682 = vmatprep.subr.mxu0 0.0
    %1683 = vmatpush1.msra.mxu0 0.0
    %1684 = vmatprep.subr.mxu0 0.0
    %1685 = vmatpush1.msra.mxu0 0.0
    %1686 = vmatprep.subr.mxu0 0.0
    %1687 = vmatpush1.msra.mxu0 0.0
    %1688 = vmatprep.subr.mxu0 0.0
    %1689 = vmatpush1.msra.mxu0 0.0
    %1690 = vmatprep.subr.mxu0 0.0
    %1691 = vmatpush1.msra.mxu0 0.0
    %1692 = vmatprep.subr.mxu0 0.0
    %1693 = vmatpush1.msra.mxu0 0.0
    %1694 = vmatprep.subr.mxu0 0.0
    %1695 = vmatpush1.msra.mxu0 0.0
    %1696 = vmatprep.subr.mxu0 0.0
    %1697 = vmatpush1.msra.mxu0 0.0
    %1698 = vmatprep.subr.mxu0 0.0
    %1699 = vmatpush1.msra.mxu0 0.0
    %1700 = vmatprep.subr.mxu0 0.0
    %1701 = vmatpush1.msra.mxu0 0.0
    %1702 = vmatprep.mubr.f32.mxu0 0.0
    %1703 = vmatmul.mubr.f32.gmra.mrb[0].mxu0 %v1453
    %v1704 = vpop.f32.mrb[0].mxu0
    %v1705 = vadd.f32 0.0, %v1704
    %v1706 = vpop.f32.mrb[0].mxu0
    %1707 = vdwg.mxu0
    %v1708 = vadd.f32 %v131, %v1705
    %v1709 = vmul.f32 %v1708, %v80
    %v1710 = vtanh.pop %v1709
    %v1711 = vmul.f32 %v1710, %v80
    %v1712 = vadd.f32 %v1711, %v81
    %v1713 = vmul.f32 %v1712, %v1443
    %1715 = vrot.lane.b32.xlu0 %v1712, 64
    %v1716 = vpop.permute.xlu0 %1715
    %v1718 = vmul.f32 %v1712, %v1716
    %1720 = vrot.lane.b32.xlu0 %v1718, 32
    %v1721 = vpop.permute.xlu0 %1720
    %v1723 = vadd.f32 %v1713, %v1721
    %v1724 = vtanh.pop %v1723
    %1726 = vrot.lane.b32.xlu0 %v1724, 64
    %v1727 = vpop.permute.xlu0 %1726
    %v1729 = vmul.f32 %v1712, %v1727
    %1731 = vrot.lane.b32.xlu0 %v1729, 32
    %v1732 = vpop.permute.xlu0 %1731
    %v1733 = vsel %vm144, %v1732, 0
    %1735 = vmatprep.subr.mxu0 0.0
    %1736 = vmatpush1.msra.mxu0 %v59
    %1737 = vmatprep.subr.mxu0 0.0
    %1738 = vmatpush1.msra.mxu0 %v60
    %1739 = vmatprep.subr.mxu0 0.0
    %1740 = vmatpush1.msra.mxu0 %v61
    %1741 = vmatprep.subr.mxu0 0.0
    %1742 = vmatpush1.msra.mxu0 %v62
    %1743 = vmatprep.subr.mxu0 0.0
    %1744 = vmatpush1.msra.mxu0 0.0
    %1745 = vmatprep.subr.mxu0 0.0
    %1746 = vmatpush1.msra.mxu0 0.0
    %1747 = vmatprep.subr.mxu0 0.0
    %1748 = vmatpush1.msra.mxu0 0.0
    %1749 = vmatprep.subr.mxu0 0.0
    %1750 = vmatpush1.msra.mxu0 0.0
    %1751 = vmatprep.subr.mxu0 0.0
    %1752 = vmatpush1.msra.mxu0 0.0
    %1753 = vmatprep.subr.mxu0 0.0
    %1754 = vmatpush1.msra.mxu0 0.0
    %1755 = vmatprep.subr.mxu0 0.0
    %1756 = vmatpush1.msra.mxu0 0.0
    %1757 = vmatprep.subr.mxu0 0.0
    %1758 = vmatpush1.msra.mxu0 0.0
    %1759 = vmatprep.subr.mxu0 0.0
    %1760 = vmatpush1.msra.mxu0 0.0
    %1761 = vmatprep.subr.mxu0 0.0
    %1762 = vmatpush1.msra.mxu0 0.0
    %1763 = vmatprep.subr.mxu0 0.0
    %1764 = vmatpush1.msra.mxu0 0.0
    %1765 = vmatprep.subr.mxu0 0.0
    %1766 = vmatpush1.msra.mxu0 0.0
    %1767 = vmatprep.subr.mxu0 0.0
    %1768 = vmatpush1.msra.mxu0 0.0
    %1769 = vmatprep.subr.mxu0 0.0
    %1770 = vmatpush1.msra.mxu0 0.0
    %1771 = vmatprep.subr.mxu0 0.0
    %1772 = vmatpush1.msra.mxu0 0.0
    %1773 = vmatprep.subr.mxu0 0.0
    %1774 = vmatpush1.msra.mxu0 0.0
    %1775 = vmatprep.subr.mxu0 0.0
    %1776 = vmatpush1.msra.mxu0 0.0
    %1777 = vmatprep.subr.mxu0 0.0
    %1778 = vmatpush1.msra.mxu0 0.0
    %1779 = vmatprep.subr.mxu0 0.0
    %1780 = vmatpush1.msra.mxu0 0.0
    %1781 = vmatprep.subr.mxu0 0.0
    %1782 = vmatpush1.msra.mxu0 0.0
    %1783 = vmatprep.subr.mxu0 0.0
    %1784 = vmatpush1.msra.mxu0 0.0
    %1785 = vmatprep.subr.mxu0 0.0
    %1786 = vmatpush1.msra.mxu0 0.0
    %1787 = vmatprep.subr.mxu0 0.0
    %1788 = vmatpush1.msra.mxu0 0.0
    %1789 = vmatprep.subr.mxu0 0.0
    %1790 = vmatpush1.msra.mxu0 0.0
    %1791 = vmatprep.subr.mxu0 0.0
    %1792 = vmatpush1.msra.mxu0 0.0
    %1793 = vmatprep.subr.mxu0 0.0
    %1794 = vmatpush1.msra.mxu0 0.0
    %1795 = vmatprep.subr.mxu0 0.0
    %1796 = vmatpush1.msra.mxu0 0.0
    %1797 = vmatprep.subr.mxu0 0.0
    %1798 = vmatpush1.msra.mxu0 0.0
    %1799 = vmatprep.mubr.f32.mxu0 0.0
    %1800 = vmatmul.mubr.f32.gmra.mrb[0].mxu0 %v1733
    %v1801 = vpop.f32.mrb[0].mxu0
    %v1802 = vadd.f32 %v1635, %v1801
    %v1803 = vpop.f32.mrb[0].mxu0
    %1804 = vdwg.mxu0
    %v1805 = vadd.f32 %v1802, %v389
    %v1806 = vmul.f32 %v1805, %v80
    %v1807 = vtanh.pop %v1806
    %v1808 = vmul.f32 %v1807, %v80
    %v1809 = vadd.f32 %v1808, %v81
    %v1810 = vmul.f32 %v1809, %v1540
    %1812 = vrot.lane.b32.xlu0 %v1809, 64
    %v1813 = vpop.permute.xlu0 %1812
    %v1815 = vmul.f32 %v1809, %v1813
    %1817 = vrot.lane.b32.xlu0 %v1815, 32
    %v1818 = vpop.permute.xlu0 %1817
    %v1820 = vadd.f32 %v1810, %v1818
    %v1821 = vtanh.pop %v1820
    %1823 = vrot.lane.b32.xlu0 %v1821, 64
    %v1824 = vpop.permute.xlu0 %1823
    %v1826 = vmul.f32 %v1809, %v1824
    %v1827 = vmul.f32 %v1826, %v419
    %1829 = vrot.lane.b32.xlu0 %v1827, 32
    %v1830 = vpop.permute.xlu0 %1829
    %v1832 = vsel %vm144, %v1830, 0.0
    %1833 = vadd.xlane.f32.xlu0 %v1832
    %v1834 = vpop.xlane.xlu0 %1833
    %v1835 = vadd.f32 %v1834, %v433
    %vm1836 = vcmp.eq.s32.totalorder %v76, 5
    %1838 = vset.pattern.permute.xlu0 0
    %1839 = vperm.xlu0 %1838, %v1835
    %v1840 = vpop.permute.xlu0 %1839
    %v1842 = vsel %vm1836, %v1840, %v1562
    %1844 = vrot.lane.b32.xlu0 %v1826, 32
    %v1845 = vpop.permute.xlu0 %1844
    %v1846 = vsel %vm144, %v1845, 0
    %1848 = vmatprep.subr.mxu0 0.0
    %1849 = vmatpush1.msra.mxu0 %v63
    %1850 = vmatprep.subr.mxu0 0.0
    %1851 = vmatpush1.msra.mxu0 %v64
    %1852 = vmatprep.subr.mxu0 0.0
    %1853 = vmatpush1.msra.mxu0 %v65
    %1854 = vmatprep.subr.mxu0 0.0
    %1855 = vmatpush1.msra.mxu0 %v66
    %1856 = vmatprep.subr.mxu0 0.0
    %1857 = vmatpush1.msra.mxu0 0.0
    %1858 = vmatprep.subr.mxu0 0.0
    %1859 = vmatpush1.msra.mxu0 0.0
    %1860 = vmatprep.subr.mxu0 0.0
    %1861 = vmatpush1.msra.mxu0 0.0
    %1862 = vmatprep.subr.mxu0 0.0
    %1863 = vmatpush1.msra.mxu0 0.0
    %1864 = vmatprep.subr.mxu0 0.0
    %1865 = vmatpush1.msra.mxu0 0.0
    %1866 = vmatprep.subr.mxu0 0.0
    %1867 = vmatpush1.msra.mxu0 0.0
    %1868 = vmatprep.subr.mxu0 0.0
    %1869 = vmatpush1.msra.mxu0 0.0
    %1870 = vmatprep.subr.mxu0 0.0
    %1871 = vmatpush1.msra.mxu0 0.0
    %1872 = vmatprep.subr.mxu0 0.0
    %1873 = vmatpush1.msra.mxu0 0.0
    %1874 = vmatprep.subr.mxu0 0.0
    %1875 = vmatpush1.msra.mxu0 0.0
    %1876 = vmatprep.subr.mxu0 0.0
    %1877 = vmatpush1.msra.mxu0 0.0
    %1878 = vmatprep.subr.mxu0 0.0
    %1879 = vmatpush1.msra.mxu0 0.0
    %1880 = vmatprep.subr.mxu0 0.0
    %1881 = vmatpush1.msra.mxu0 0.0
    %1882 = vmatprep.subr.mxu0 0.0
    %1883 = vmatpush1.msra.mxu0 0.0
    %1884 = vmatprep.subr.mxu0 0.0
    %1885 = vmatpush1.msra.mxu0 0.0
    %1886 = vmatprep.subr.mxu0 0.0
    %1887 = vmatpush1.msra.mxu0 0.0
    %1888 = vmatprep.subr.mxu0 0.0
    %1889 = vmatpush1.msra.mxu0 0.0
    %1890 = vmatprep.subr.mxu0 0.0
    %1891 = vmatpush1.msra.mxu0 0.0
    %1892 = vmatprep.subr.mxu0 0.0
    %1893 = vmatpush1.msra.mxu0 0.0
    %1894 = vmatprep.subr.mxu0 0.0
    %1895 = vmatpush1.msra.mxu0 0.0
    %1896 = vmatprep.subr.mxu0 0.0
    %1897 = vmatpush1.msra.mxu0 0.0
    %1898 = vmatprep.subr.mxu0 0.0
    %1899 = vmatpush1.msra.mxu0 0.0
    %1900 = vmatprep.subr.mxu0 0.0
    %1901 = vmatpush1.msra.mxu0 0.0
    %1902 = vmatprep.subr.mxu0 0.0
    %1903 = vmatpush1.msra.mxu0 0.0
    %1904 = vmatprep.subr.mxu0 0.0
    %1905 = vmatpush1.msra.mxu0 0.0
    %1906 = vmatprep.subr.mxu0 0.0
    %1907 = vmatpush1.msra.mxu0 0.0
    %1908 = vmatprep.subr.mxu0 0.0
    %1909 = vmatpush1.msra.mxu0 0.0
    %1910 = vmatprep.subr.mxu0 0.0
    %1911 = vmatpush1.msra.mxu0 0.0
    %1912 = vmatprep.mubr.f32.mxu0 0.0
    %1913 = vmatmul.mubr.f32.gmra.mrb[0].mxu0 %v1846
    %v1914 = vpop.f32.mrb[0].mxu0
    %v1915 = vadd.f32 0.0, %v1914
    %v1916 = vpop.f32.mrb[0].mxu0
    %1917 = vdwg.mxu0
    %1918 = vmatprep.subr.mxu0 0.0
    %1919 = vmatpush1.msra.mxu0 %v54
    %1920 = vmatprep.subr.mxu0 0.0
    %1921 = vmatpush1.msra.mxu0 %v55
    %1922 = vmatprep.subr.mxu0 0.0
    %1923 = vmatpush1.msra.mxu0 %v56
    %1924 = vmatprep.subr.mxu0 0.0
    %1925 = vmatpush1.msra.mxu0 %v57
    %1926 = vmatprep.subr.mxu0 0.0
    %1927 = vmatpush1.msra.mxu0 0.0
    %1928 = vmatprep.subr.mxu0 0.0
    %1929 = vmatpush1.msra.mxu0 0.0
    %1930 = vmatprep.subr.mxu0 0.0
    %1931 = vmatpush1.msra.mxu0 0.0
    %1932 = vmatprep.subr.mxu0 0.0
    %1933 = vmatpush1.msra.mxu0 0.0
    %1934 = vmatprep.subr.mxu0 0.0
    %1935 = vmatpush1.msra.mxu0 0.0
    %1936 = vmatprep.subr.mxu0 0.0
    %1937 = vmatpush1.msra.mxu0 0.0
    %1938 = vmatprep.subr.mxu0 0.0
    %1939 = vmatpush1.msra.mxu0 0.0
    %1940 = vmatprep.subr.mxu0 0.0
    %1941 = vmatpush1.msra.mxu0 0.0
    %1942 = vmatprep.subr.mxu0 0.0
    %1943 = vmatpush1.msra.mxu0 0.0
    %1944 = vmatprep.subr.mxu0 0.0
    %1945 = vmatpush1.msra.mxu0 0.0
    %1946 = vmatprep.subr.mxu0 0.0
    %1947 = vmatpush1.msra.mxu0 0.0
    %1948 = vmatprep.subr.mxu0 0.0
    %1949 = vmatpush1.msra.mxu0 0.0
    %1950 = vmatprep.subr.mxu0 0.0
    %1951 = vmatpush1.msra.mxu0 0.0
    %1952 = vmatprep.subr.mxu0 0.0
    %1953 = vmatpush1.msra.mxu0 0.0
    %1954 = vmatprep.subr.mxu0 0.0
    %1955 = vmatpush1.msra.mxu0 0.0
    %1956 = vmatprep.subr.mxu0 0.0
    %1957 = vmatpush1.msra.mxu0 0.0
    %1958 = vmatprep.subr.mxu0 0.0
    %1959 = vmatpush1.msra.mxu0 0.0
    %1960 = vmatprep.subr.mxu0 0.0
    %1961 = vmatpush1.msra.mxu0 0.0
    %1962 = vmatprep.subr.mxu0 0.0
    %1963 = vmatpush1.msra.mxu0 0.0
    %1964 = vmatprep.subr.mxu0 0.0
    %1965 = vmatpush1.msra.mxu0 0.0
    %1966 = vmatprep.subr.mxu0 0.0
    %1967 = vmatpush1.msra.mxu0 0.0
    %1968 = vmatprep.subr.mxu0 0.0
    %1969 = vmatpush1.msra.mxu0 0.0
    %1970 = vmatprep.subr.mxu0 0.0
    %1971 = vmatpush1.msra.mxu0 0.0
    %1972 = vmatprep.subr.mxu0 0.0
    %1973 = vmatpush1.msra.mxu0 0.0
    %1974 = vmatprep.subr.mxu0 0.0
    %1975 = vmatpush1.msra.mxu0 0.0
    %1976 = vmatprep.subr.mxu0 0.0
    %1977 = vmatpush1.msra.mxu0 0.0
    %1978 = vmatprep.subr.mxu0 0.0
    %1979 = vmatpush1.msra.mxu0 0.0
    %1980 = vmatprep.subr.mxu0 0.0
    %1981 = vmatpush1.msra.mxu0 0.0
    %1982 = vmatprep.mubr.f32.mxu0 0.0
    %1983 = vmatmul.mubr.f32.gmra.mrb[0].mxu0 %v1733
    %v1984 = vpop.f32.mrb[0].mxu0
    %v1985 = vadd.f32 0.0, %v1984
    %v1986 = vpop.f32.mrb[0].mxu0
    %1987 = vdwg.mxu0
    %v1988 = vadd.f32 %v137, %v1985
    %v1989 = vmul.f32 %v1988, %v80
    %v1990 = vtanh.pop %v1989
    %v1991 = vmul.f32 %v1990, %v80
    %v1992 = vadd.f32 %v1991, %v81
    %v1993 = vmul.f32 %v1992, %v1723
    %1995 = vrot.lane.b32.xlu0 %v1992, 64
    %v1996 = vpop.permute.xlu0 %1995
    %v1998 = vmul.f32 %v1992, %v1996
    %2000 = vrot.lane.b32.xlu0 %v1998, 32
    %v2001 = vpop.permute.xlu0 %2000
    %v2003 = vadd.f32 %v1993, %v2001
    %v2004 = vtanh.pop %v2003
    %2006 = vrot.lane.b32.xlu0 %v2004, 64
    %v2007 = vpop.permute.xlu0 %2006
    %v2009 = vmul.f32 %v1992, %v2007
    %2011 = vrot.lane.b32.xlu0 %v2009, 32
    %v2012 = vpop.permute.xlu0 %2011
    %v2013 = vsel %vm144, %v2012, 0
    %2015 = vmatprep.subr.mxu0 0.0
    %2016 = vmatpush1.msra.mxu0 %v59
    %2017 = vmatprep.subr.mxu0 0.0
    %2018 = vmatpush1.msra.mxu0 %v60
    %2019 = vmatprep.subr.mxu0 0.0
    %2020 = vmatpush1.msra.mxu0 %v61
    %2021 = vmatprep.subr.mxu0 0.0
    %2022 = vmatpush1.msra.mxu0 %v62
    %2023 = vmatprep.subr.mxu0 0.0
    %2024 = vmatpush1.msra.mxu0 0.0
    %2025 = vmatprep.subr.mxu0 0.0
    %2026 = vmatpush1.msra.mxu0 0.0
    %2027 = vmatprep.subr.mxu0 0.0
    %2028 = vmatpush1.msra.mxu0 0.0
    %2029 = vmatprep.subr.mxu0 0.0
    %2030 = vmatpush1.msra.mxu0 0.0
    %2031 = vmatprep.subr.mxu0 0.0
    %2032 = vmatpush1.msra.mxu0 0.0
    %2033 = vmatprep.subr.mxu0 0.0
    %2034 = vmatpush1.msra.mxu0 0.0
    %2035 = vmatprep.subr.mxu0 0.0
    %2036 = vmatpush1.msra.mxu0 0.0
    %2037 = vmatprep.subr.mxu0 0.0
    %2038 = vmatpush1.msra.mxu0 0.0
    %2039 = vmatprep.subr.mxu0 0.0
    %2040 = vmatpush1.msra.mxu0 0.0
    %2041 = vmatprep.subr.mxu0 0.0
    %2042 = vmatpush1.msra.mxu0 0.0
    %2043 = vmatprep.subr.mxu0 0.0
    %2044 = vmatpush1.msra.mxu0 0.0
    %2045 = vmatprep.subr.mxu0 0.0
    %2046 = vmatpush1.msra.mxu0 0.0
    %2047 = vmatprep.subr.mxu0 0.0
    %2048 = vmatpush1.msra.mxu0 0.0
    %2049 = vmatprep.subr.mxu0 0.0
    %2050 = vmatpush1.msra.mxu0 0.0
    %2051 = vmatprep.subr.mxu0 0.0
    %2052 = vmatpush1.msra.mxu0 0.0
    %2053 = vmatprep.subr.mxu0 0.0
    %2054 = vmatpush1.msra.mxu0 0.0
    %2055 = vmatprep.subr.mxu0 0.0
    %2056 = vmatpush1.msra.mxu0 0.0
    %2057 = vmatprep.subr.mxu0 0.0
    %2058 = vmatpush1.msra.mxu0 0.0
    %2059 = vmatprep.subr.mxu0 0.0
    %2060 = vmatpush1.msra.mxu0 0.0
    %2061 = vmatprep.subr.mxu0 0.0
    %2062 = vmatpush1.msra.mxu0 0.0
    %2063 = vmatprep.subr.mxu0 0.0
    %2064 = vmatpush1.msra.mxu0 0.0
    %2065 = vmatprep.subr.mxu0 0.0
    %2066 = vmatpush1.msra.mxu0 0.0
    %2067 = vmatprep.subr.mxu0 0.0
    %2068 = vmatpush1.msra.mxu0 0.0
    %2069 = vmatprep.subr.mxu0 0.0
    %2070 = vmatpush1.msra.mxu0 0.0
    %2071 = vmatprep.subr.mxu0 0.0
    %2072 = vmatpush1.msra.mxu0 0.0
    %2073 = vmatprep.subr.mxu0 0.0
    %2074 = vmatpush1.msra.mxu0 0.0
    %2075 = vmatprep.subr.mxu0 0.0
    %2076 = vmatpush1.msra.mxu0 0.0
    %2077 = vmatprep.subr.mxu0 0.0
    %2078 = vmatpush1.msra.mxu0 0.0
    %2079 = vmatprep.mubr.f32.mxu0 0.0
    %2080 = vmatmul.mubr.f32.gmra.mrb[0].mxu0 %v2013
    %v2081 = vpop.f32.mrb[0].mxu0
    %v2082 = vadd.f32 %v1915, %v2081
    %v2083 = vpop.f32.mrb[0].mxu0
    %2084 = vdwg.mxu0
    %v2085 = vadd.f32 %v2082, %v389
    %v2086 = vmul.f32 %v2085, %v80
    %v2087 = vtanh.pop %v2086
    %v2088 = vmul.f32 %v2087, %v80
    %v2089 = vadd.f32 %v2088, %v81
    %v2090 = vmul.f32 %v2089, %v1820
    %2092 = vrot.lane.b32.xlu0 %v2089, 64
    %v2093 = vpop.permute.xlu0 %2092
    %v2095 = vmul.f32 %v2089, %v2093
    %2097 = vrot.lane.b32.xlu0 %v2095, 32
    %v2098 = vpop.permute.xlu0 %2097
    %v2100 = vadd.f32 %v2090, %v2098
    %v2101 = vtanh.pop %v2100
    %2103 = vrot.lane.b32.xlu0 %v2101, 64
    %v2104 = vpop.permute.xlu0 %2103
    %v2106 = vmul.f32 %v2089, %v2104
    %v2107 = vmul.f32 %v2106, %v419
    %2109 = vrot.lane.b32.xlu0 %v2107, 32
    %v2110 = vpop.permute.xlu0 %2109
    %v2112 = vsel %vm144, %v2110, 0.0
    %2113 = vadd.xlane.f32.xlu0 %v2112
    %v2114 = vpop.xlane.xlu0 %2113
    %v2115 = vadd.f32 %v2114, %v433
    %vm2116 = vcmp.eq.s32.totalorder %v76, 6
    %2118 = vset.pattern.permute.xlu0 0
    %2119 = vperm.xlu0 %2118, %v2115
    %v2120 = vpop.permute.xlu0 %2119
    %v2122 = vsel %vm2116, %v2120, %v1842
    %2124 = vrot.lane.b32.xlu0 %v2106, 32
    %v2125 = vpop.permute.xlu0 %2124
    %v2126 = vsel %vm144, %v2125, 0
    %2128 = vmatprep.subr.mxu0 0.0
    %2129 = vmatpush1.msra.mxu0 %v63
    %2130 = vmatprep.subr.mxu0 0.0
    %2131 = vmatpush1.msra.mxu0 %v64
    %2132 = vmatprep.subr.mxu0 0.0
    %2133 = vmatpush1.msra.mxu0 %v65
    %2134 = vmatprep.subr.mxu0 0.0
    %2135 = vmatpush1.msra.mxu0 %v66
    %2136 = vmatprep.subr.mxu0 0.0
    %2137 = vmatpush1.msra.mxu0 0.0
    %2138 = vmatprep.subr.mxu0 0.0
    %2139 = vmatpush1.msra.mxu0 0.0
    %2140 = vmatprep.subr.mxu0 0.0
    %2141 = vmatpush1.msra.mxu0 0.0
    %2142 = vmatprep.subr.mxu0 0.0
    %2143 = vmatpush1.msra.mxu0 0.0
    %2144 = vmatprep.subr.mxu0 0.0
    %2145 = vmatpush1.msra.mxu0 0.0
    %2146 = vmatprep.subr.mxu0 0.0
    %2147 = vmatpush1.msra.mxu0 0.0
    %2148 = vmatprep.subr.mxu0 0.0
    %2149 = vmatpush1.msra.mxu0 0.0
    %2150 = vmatprep.subr.mxu0 0.0
    %2151 = vmatpush1.msra.mxu0 0.0
    %2152 = vmatprep.subr.mxu0 0.0
    %2153 = vmatpush1.msra.mxu0 0.0
    %2154 = vmatprep.subr.mxu0 0.0
    %2155 = vmatpush1.msra.mxu0 0.0
    %2156 = vmatprep.subr.mxu0 0.0
    %2157 = vmatpush1.msra.mxu0 0.0
    %2158 = vmatprep.subr.mxu0 0.0
    %2159 = vmatpush1.msra.mxu0 0.0
    %2160 = vmatprep.subr.mxu0 0.0
    %2161 = vmatpush1.msra.mxu0 0.0
    %2162 = vmatprep.subr.mxu0 0.0
    %2163 = vmatpush1.msra.mxu0 0.0
    %2164 = vmatprep.subr.mxu0 0.0
    %2165 = vmatpush1.msra.mxu0 0.0
    %2166 = vmatprep.subr.mxu0 0.0
    %2167 = vmatpush1.msra.mxu0 0.0
    %2168 = vmatprep.subr.mxu0 0.0
    %2169 = vmatpush1.msra.mxu0 0.0
    %2170 = vmatprep.subr.mxu0 0.0
    %2171 = vmatpush1.msra.mxu0 0.0
    %2172 = vmatprep.subr.mxu0 0.0
    %2173 = vmatpush1.msra.mxu0 0.0
    %2174 = vmatprep.subr.mxu0 0.0
    %2175 = vmatpush1.msra.mxu0 0.0
    %2176 = vmatprep.subr.mxu0 0.0
    %2177 = vmatpush1.msra.mxu0 0.0
    %2178 = vmatprep.subr.mxu0 0.0
    %2179 = vmatpush1.msra.mxu0 0.0
    %2180 = vmatprep.subr.mxu0 0.0
    %2181 = vmatpush1.msra.mxu0 0.0
    %2182 = vmatprep.subr.mxu0 0.0
    %2183 = vmatpush1.msra.mxu0 0.0
    %2184 = vmatprep.subr.mxu0 0.0
    %2185 = vmatpush1.msra.mxu0 0.0
    %2186 = vmatprep.subr.mxu0 0.0
    %2187 = vmatpush1.msra.mxu0 0.0
    %2188 = vmatprep.subr.mxu0 0.0
    %2189 = vmatpush1.msra.mxu0 0.0
    %2190 = vmatprep.subr.mxu0 0.0
    %2191 = vmatpush1.msra.mxu0 0.0
    %2192 = vmatprep.mubr.f32.mxu0 0.0
    %2193 = vmatmul.mubr.f32.gmra.mrb[0].mxu0 %v2126
    %v2194 = vpop.f32.mrb[0].mxu0
    %v2195 = vadd.f32 0.0, %v2194
    %v2196 = vpop.f32.mrb[0].mxu0
    %2197 = vdwg.mxu0
    %2198 = vmatprep.subr.mxu0 0.0
    %2199 = vmatpush1.msra.mxu0 %v54
    %2200 = vmatprep.subr.mxu0 0.0
    %2201 = vmatpush1.msra.mxu0 %v55
    %2202 = vmatprep.subr.mxu0 0.0
    %2203 = vmatpush1.msra.mxu0 %v56
    %2204 = vmatprep.subr.mxu0 0.0
    %2205 = vmatpush1.msra.mxu0 %v57
    %2206 = vmatprep.subr.mxu0 0.0
    %2207 = vmatpush1.msra.mxu0 0.0
    %2208 = vmatprep.subr.mxu0 0.0
    %2209 = vmatpush1.msra.mxu0 0.0
    %2210 = vmatprep.subr.mxu0 0.0
    %2211 = vmatpush1.msra.mxu0 0.0
    %2212 = vmatprep.subr.mxu0 0.0
    %2213 = vmatpush1.msra.mxu0 0.0
    %2214 = vmatprep.subr.mxu0 0.0
    %2215 = vmatpush1.msra.mxu0 0.0
    %2216 = vmatprep.subr.mxu0 0.0
    %2217 = vmatpush1.msra.mxu0 0.0
    %2218 = vmatprep.subr.mxu0 0.0
    %2219 = vmatpush1.msra.mxu0 0.0
    %2220 = vmatprep.subr.mxu0 0.0
    %2221 = vmatpush1.msra.mxu0 0.0
    %2222 = vmatprep.subr.mxu0 0.0
    %2223 = vmatpush1.msra.mxu0 0.0
    %2224 = vmatprep.subr.mxu0 0.0
    %2225 = vmatpush1.msra.mxu0 0.0
    %2226 = vmatprep.subr.mxu0 0.0
    %2227 = vmatpush1.msra.mxu0 0.0
    %2228 = vmatprep.subr.mxu0 0.0
    %2229 = vmatpush1.msra.mxu0 0.0
    %2230 = vmatprep.subr.mxu0 0.0
    %2231 = vmatpush1.msra.mxu0 0.0
    %2232 = vmatprep.subr.mxu0 0.0
    %2233 = vmatpush1.msra.mxu0 0.0
    %2234 = vmatprep.subr.mxu0 0.0
    %2235 = vmatpush1.msra.mxu0 0.0
    %2236 = vmatprep.subr.mxu0 0.0
    %2237 = vmatpush1.msra.mxu0 0.0
    %2238 = vmatprep.subr.mxu0 0.0
    %2239 = vmatpush1.msra.mxu0 0.0
    %2240 = vmatprep.subr.mxu0 0.0
    %2241 = vmatpush1.msra.mxu0 0.0
    %2242 = vmatprep.subr.mxu0 0.0
    %2243 = vmatpush1.msra.mxu0 0.0
    %2244 = vmatprep.subr.mxu0 0.0
    %2245 = vmatpush1.msra.mxu0 0.0
    %2246 = vmatprep.subr.mxu0 0.0
    %2247 = vmatpush1.msra.mxu0 0.0
    %2248 = vmatprep.subr.mxu0 0.0
    %2249 = vmatpush1.msra.mxu0 0.0
    %2250 = vmatprep.subr.mxu0 0.0
    %2251 = vmatpush1.msra.mxu0 0.0
    %2252 = vmatprep.subr.mxu0 0.0
    %2253 = vmatpush1.msra.mxu0 0.0
    %2254 = vmatprep.subr.mxu0 0.0
    %2255 = vmatpush1.msra.mxu0 0.0
    %2256 = vmatprep.subr.mxu0 0.0
    %2257 = vmatpush1.msra.mxu0 0.0
    %2258 = vmatprep.subr.mxu0 0.0
    %2259 = vmatpush1.msra.mxu0 0.0
    %2260 = vmatprep.subr.mxu0 0.0
    %2261 = vmatpush1.msra.mxu0 0.0
    %2262 = vmatprep.mubr.f32.mxu0 0.0
    %2263 = vmatmul.mubr.f32.gmra.mrb[0].mxu0 %v2013
    %v2264 = vpop.f32.mrb[0].mxu0
    %v2265 = vadd.f32 0.0, %v2264
    %v2266 = vpop.f32.mrb[0].mxu0
    %2267 = vdwg.mxu0
    %v2268 = vadd.f32 %v143, %v2265
    %v2269 = vmul.f32 %v2268, %v80
    %v2270 = vtanh.pop %v2269
    %v2271 = vmul.f32 %v2270, %v80
    %v2272 = vadd.f32 %v2271, %v81
    %v2273 = vmul.f32 %v2272, %v2003
    %2275 = vrot.lane.b32.xlu0 %v2272, 64
    %v2276 = vpop.permute.xlu0 %2275
    %v2278 = vmul.f32 %v2272, %v2276
    %2280 = vrot.lane.b32.xlu0 %v2278, 32
    %v2281 = vpop.permute.xlu0 %2280
    %v2283 = vadd.f32 %v2273, %v2281
    %v2284 = vtanh.pop %v2283
    %2286 = vrot.lane.b32.xlu0 %v2284, 64
    %v2287 = vpop.permute.xlu0 %2286
    %v2289 = vmul.f32 %v2272, %v2287
    %2291 = vrot.lane.b32.xlu0 %v2289, 32
    %v2292 = vpop.permute.xlu0 %2291
    %v2293 = vsel %vm144, %v2292, 0
    %2295 = vmatprep.subr.mxu0 0.0
    %2296 = vmatpush1.msra.mxu0 %v59
    %2297 = vmatprep.subr.mxu0 0.0
    %2298 = vmatpush1.msra.mxu0 %v60
    %2299 = vmatprep.subr.mxu0 0.0
    %2300 = vmatpush1.msra.mxu0 %v61
    %2301 = vmatprep.subr.mxu0 0.0
    %2302 = vmatpush1.msra.mxu0 %v62
    %2303 = vmatprep.subr.mxu0 0.0
    %2304 = vmatpush1.msra.mxu0 0.0
    %2305 = vmatprep.subr.mxu0 0.0
    %2306 = vmatpush1.msra.mxu0 0.0
    %2307 = vmatprep.subr.mxu0 0.0
    %2308 = vmatpush1.msra.mxu0 0.0
    %2309 = vmatprep.subr.mxu0 0.0
    %2310 = vmatpush1.msra.mxu0 0.0
    %2311 = vmatprep.subr.mxu0 0.0
    %2312 = vmatpush1.msra.mxu0 0.0
    %2313 = vmatprep.subr.mxu0 0.0
    %2314 = vmatpush1.msra.mxu0 0.0
    %2315 = vmatprep.subr.mxu0 0.0
    %2316 = vmatpush1.msra.mxu0 0.0
    %2317 = vmatprep.subr.mxu0 0.0
    %2318 = vmatpush1.msra.mxu0 0.0
    %2319 = vmatprep.subr.mxu0 0.0
    %2320 = vmatpush1.msra.mxu0 0.0
    %2321 = vmatprep.subr.mxu0 0.0
    %2322 = vmatpush1.msra.mxu0 0.0
    %2323 = vmatprep.subr.mxu0 0.0
    %2324 = vmatpush1.msra.mxu0 0.0
    %2325 = vmatprep.subr.mxu0 0.0
    %2326 = vmatpush1.msra.mxu0 0.0
    %2327 = vmatprep.subr.mxu0 0.0
    %2328 = vmatpush1.msra.mxu0 0.0
    %2329 = vmatprep.subr.mxu0 0.0
    %2330 = vmatpush1.msra.mxu0 0.0
    %2331 = vmatprep.subr.mxu0 0.0
    %2332 = vmatpush1.msra.mxu0 0.0
    %2333 = vmatprep.subr.mxu0 0.0
    %2334 = vmatpush1.msra.mxu0 0.0
    %2335 = vmatprep.subr.mxu0 0.0
    %2336 = vmatpush1.msra.mxu0 0.0
    %2337 = vmatprep.subr.mxu0 0.0
    %2338 = vmatpush1.msra.mxu0 0.0
    %2339 = vmatprep.subr.mxu0 0.0
    %2340 = vmatpush1.msra.mxu0 0.0
    %2341 = vmatprep.subr.mxu0 0.0
    %2342 = vmatpush1.msra.mxu0 0.0
    %2343 = vmatprep.subr.mxu0 0.0
    %2344 = vmatpush1.msra.mxu0 0.0
    %2345 = vmatprep.subr.mxu0 0.0
    %2346 = vmatpush1.msra.mxu0 0.0
    %2347 = vmatprep.subr.mxu0 0.0
    %2348 = vmatpush1.msra.mxu0 0.0
    %2349 = vmatprep.subr.mxu0 0.0
    %2350 = vmatpush1.msra.mxu0 0.0
    %2351 = vmatprep.subr.mxu0 0.0
    %2352 = vmatpush1.msra.mxu0 0.0
    %2353 = vmatprep.subr.mxu0 0.0
    %2354 = vmatpush1.msra.mxu0 0.0
    %2355 = vmatprep.subr.mxu0 0.0
    %2356 = vmatpush1.msra.mxu0 0.0
    %2357 = vmatprep.subr.mxu0 0.0
    %2358 = vmatpush1.msra.mxu0 0.0
    %2359 = vmatprep.mubr.f32.mxu0 0.0
    %2360 = vmatmul.mubr.f32.gmra.mrb[0].mxu0 %v2293
    %v2361 = vpop.f32.mrb[0].mxu0
    %v2362 = vadd.f32 %v2195, %v2361
    %v2363 = vpop.f32.mrb[0].mxu0
    %2364 = vdwg.mxu0
    %v2365 = vadd.f32 %v2362, %v389
    %v2366 = vmul.f32 %v2365, %v80
    %v2367 = vtanh.pop %v2366
    %v2368 = vmul.f32 %v2367, %v80
    %v2369 = vadd.f32 %v2368, %v81
    %v2370 = vmul.f32 %v2369, %v2100
    %2372 = vrot.lane.b32.xlu0 %v2369, 64
    %v2373 = vpop.permute.xlu0 %2372
    %v2375 = vmul.f32 %v2369, %v2373
    %2377 = vrot.lane.b32.xlu0 %v2375, 32
    %v2378 = vpop.permute.xlu0 %2377
    %v2380 = vadd.f32 %v2370, %v2378
    %v2381 = vtanh.pop %v2380
    %2383 = vrot.lane.b32.xlu0 %v2381, 64
    %v2384 = vpop.permute.xlu0 %2383
    %v2386 = vmul.f32 %v2369, %v2384
    %v2387 = vmul.f32 %v2386, %v419
    %2389 = vrot.lane.b32.xlu0 %v2387, 32
    %v2390 = vpop.permute.xlu0 %2389
    %v2392 = vsel %vm144, %v2390, 0.0
    %2393 = vadd.xlane.f32.xlu0 %v2392
    %v2394 = vpop.xlane.xlu0 %2393
    %v2395 = vadd.f32 %v2394, %v433
    %vm2396 = vcmp.eq.s32.totalorder %v76, 7
    %2398 = vset.pattern.permute.xlu0 0
    %2399 = vperm.xlu0 %2398, %v2395
    %v2400 = vpop.permute.xlu0 %2399
    %v2402 = vsel %vm2396, %v2400, %v2122
    %2404 = vrot.lane.b32.xlu0 %v2386, 32
    %v2405 = vpop.permute.xlu0 %2404
    %v2406 = vsel %vm144, %v2405, 0
    %2408 = vmatprep.subr.mxu0 0.0
    %2409 = vmatpush1.msra.mxu0 %v63
    %2410 = vmatprep.subr.mxu0 0.0
    %2411 = vmatpush1.msra.mxu0 %v64
    %2412 = vmatprep.subr.mxu0 0.0
    %2413 = vmatpush1.msra.mxu0 %v65
    %2414 = vmatprep.subr.mxu0 0.0
    %2415 = vmatpush1.msra.mxu0 %v66
    %2416 = vmatprep.subr.mxu0 0.0
    %2417 = vmatpush1.msra.mxu0 0.0
    %2418 = vmatprep.subr.mxu0 0.0
    %2419 = vmatpush1.msra.mxu0 0.0
    %2420 = vmatprep.subr.mxu0 0.0
    %2421 = vmatpush1.msra.mxu0 0.0
    %2422 = vmatprep.subr.mxu0 0.0
    %2423 = vmatpush1.msra.mxu0 0.0
    %2424 = vmatprep.subr.mxu0 0.0
    %2425 = vmatpush1.msra.mxu0 0.0
    %2426 = vmatprep.subr.mxu0 0.0
    %2427 = vmatpush1.msra.mxu0 0.0
    %2428 = vmatprep.subr.mxu0 0.0
    %2429 = vmatpush1.msra.mxu0 0.0
    %2430 = vmatprep.subr.mxu0 0.0
    %2431 = vmatpush1.msra.mxu0 0.0
    %2432 = vmatprep.subr.mxu0 0.0
    %2433 = vmatpush1.msra.mxu0 0.0
    %2434 = vmatprep.subr.mxu0 0.0
    %2435 = vmatpush1.msra.mxu0 0.0
    %2436 = vmatprep.subr.mxu0 0.0
    %2437 = vmatpush1.msra.mxu0 0.0
    %2438 = vmatprep.subr.mxu0 0.0
    %2439 = vmatpush1.msra.mxu0 0.0
    %2440 = vmatprep.subr.mxu0 0.0
    %2441 = vmatpush1.msra.mxu0 0.0
    %2442 = vmatprep.subr.mxu0 0.0
    %2443 = vmatpush1.msra.mxu0 0.0
    %2444 = vmatprep.subr.mxu0 0.0
    %2445 = vmatpush1.msra.mxu0 0.0
    %2446 = vmatprep.subr.mxu0 0.0
    %2447 = vmatpush1.msra.mxu0 0.0
    %2448 = vmatprep.subr.mxu0 0.0
    %2449 = vmatpush1.msra.mxu0 0.0
    %2450 = vmatprep.subr.mxu0 0.0
    %2451 = vmatpush1.msra.mxu0 0.0
    %2452 = vmatprep.subr.mxu0 0.0
    %2453 = vmatpush1.msra.mxu0 0.0
    %2454 = vmatprep.subr.mxu0 0.0
    %2455 = vmatpush1.msra.mxu0 0.0
    %2456 = vmatprep.subr.mxu0 0.0
    %2457 = vmatpush1.msra.mxu0 0.0
    %2458 = vmatprep.subr.mxu0 0.0
    %2459 = vmatpush1.msra.mxu0 0.0
    %2460 = vmatprep.subr.mxu0 0.0
    %2461 = vmatpush1.msra.mxu0 0.0
    %2462 = vmatprep.subr.mxu0 0.0
    %2463 = vmatpush1.msra.mxu0 0.0
    %2464 = vmatprep.subr.mxu0 0.0
    %2465 = vmatpush1.msra.mxu0 0.0
    %2466 = vmatprep.subr.mxu0 0.0
    %2467 = vmatpush1.msra.mxu0 0.0
    %2468 = vmatprep.subr.mxu0 0.0
    %2469 = vmatpush1.msra.mxu0 0.0
    %2470 = vmatprep.subr.mxu0 0.0
    %2471 = vmatpush1.msra.mxu0 0.0
    %2472 = vmatprep.mubr.f32.mxu0 0.0
    %2473 = vmatmul.mubr.f32.gmra.mrb[0].mxu0 %v2406
    %v2474 = vpop.f32.mrb[0].mxu0
    %v2475 = vadd.f32 0.0, %v2474
    %v2476 = vpop.f32.mrb[0].mxu0
    %2477 = vdwg.mxu0
    %2478 = vmatprep.subr.mxu0 0.0
    %2479 = vmatpush1.msra.mxu0 %v68
    %2480 = vmatprep.subr.mxu0 0.0
    %2481 = vmatpush1.msra.mxu0 %v69
    %2482 = vmatprep.subr.mxu0 0.0
    %2483 = vmatpush1.msra.mxu0 %v70
    %2484 = vmatprep.subr.mxu0 0.0
    %2485 = vmatpush1.msra.mxu0 %v71
    %2486 = vmatprep.subr.mxu0 0.0
    %2487 = vmatpush1.msra.mxu0 0.0
    %2488 = vmatprep.subr.mxu0 0.0
    %2489 = vmatpush1.msra.mxu0 0.0
    %2490 = vmatprep.subr.mxu0 0.0
    %2491 = vmatpush1.msra.mxu0 0.0
    %2492 = vmatprep.subr.mxu0 0.0
    %2493 = vmatpush1.msra.mxu0 0.0
    %2494 = vmatprep.subr.mxu0 0.0
    %2495 = vmatpush1.msra.mxu0 0.0
    %2496 = vmatprep.subr.mxu0 0.0
    %2497 = vmatpush1.msra.mxu0 0.0
    %2498 = vmatprep.subr.mxu0 0.0
    %2499 = vmatpush1.msra.mxu0 0.0
    %2500 = vmatprep.subr.mxu0 0.0
    %2501 = vmatpush1.msra.mxu0 0.0
    %2502 = vmatprep.subr.mxu0 0.0
    %2503 = vmatpush1.msra.mxu0 0.0
    %2504 = vmatprep.subr.mxu0 0.0
    %2505 = vmatpush1.msra.mxu0 0.0
    %2506 = vmatprep.subr.mxu0 0.0
    %2507 = vmatpush1.msra.mxu0 0.0
    %2508 = vmatprep.subr.mxu0 0.0
    %2509 = vmatpush1.msra.mxu0 0.0
    %2510 = vmatprep.subr.mxu0 0.0
    %2511 = vmatpush1.msra.mxu0 0.0
    %2512 = vmatprep.subr.mxu0 0.0
    %2513 = vmatpush1.msra.mxu0 0.0
    %2514 = vmatprep.subr.mxu0 0.0
    %2515 = vmatpush1.msra.mxu0 0.0
    %2516 = vmatprep.subr.mxu0 0.0
    %2517 = vmatpush1.msra.mxu0 0.0
    %2518 = vmatprep.subr.mxu0 0.0
    %2519 = vmatpush1.msra.mxu0 0.0
    %2520 = vmatprep.subr.mxu0 0.0
    %2521 = vmatpush1.msra.mxu0 0.0
    %2522 = vmatprep.subr.mxu0 0.0
    %2523 = vmatpush1.msra.mxu0 0.0
    %2524 = vmatprep.subr.mxu0 0.0
    %2525 = vmatpush1.msra.mxu0 0.0
    %2526 = vmatprep.subr.mxu0 0.0
    %2527 = vmatpush1.msra.mxu0 0.0
    %2528 = vmatprep.subr.mxu0 0.0
    %2529 = vmatpush1.msra.mxu0 0.0
    %2530 = vmatprep.subr.mxu0 0.0
    %2531 = vmatpush1.msra.mxu0 0.0
    %2532 = vmatprep.subr.mxu0 0.0
    %2533 = vmatpush1.msra.mxu0 0.0
    %2534 = vmatprep.subr.mxu0 0.0
    %2535 = vmatpush1.msra.mxu0 0.0
    %2536 = vmatprep.subr.mxu0 0.0
    %2537 = vmatpush1.msra.mxu0 0.0
    %2538 = vmatprep.subr.mxu0 0.0
    %2539 = vmatpush1.msra.mxu0 0.0
    %2540 = vmatprep.subr.mxu0 0.0
    %2541 = vmatpush1.msra.mxu0 0.0
    %2542 = vmatprep.mubr.f32.mxu0 0.0
    %2543 = vmatmul.mubr.f32.gmra.mrb[0].mxu0 %v2406
    %v2544 = vpop.f32.mrb[0].mxu0
    %v2545 = vadd.f32 0.0, %v2544
    %v2546 = vpop.f32.mrb[0].mxu0
    %2547 = vdwg.mxu0
    %2548 = vmatprep.subr.mxu0 0.0
    %2549 = vmatpush1.msra.mxu0 %v54
    %2550 = vmatprep.subr.mxu0 0.0
    %2551 = vmatpush1.msra.mxu0 %v55
    %2552 = vmatprep.subr.mxu0 0.0
    %2553 = vmatpush1.msra.mxu0 %v56
    %2554 = vmatprep.subr.mxu0 0.0
    %2555 = vmatpush1.msra.mxu0 %v57
    %2556 = vmatprep.subr.mxu0 0.0
    %2557 = vmatpush1.msra.mxu0 0.0
    %2558 = vmatprep.subr.mxu0 0.0
    %2559 = vmatpush1.msra.mxu0 0.0
    %2560 = vmatprep.subr.mxu0 0.0
    %2561 = vmatpush1.msra.mxu0 0.0
    %2562 = vmatprep.subr.mxu0 0.0
    %2563 = vmatpush1.msra.mxu0 0.0
    %2564 = vmatprep.subr.mxu0 0.0
    %2565 = vmatpush1.msra.mxu0 0.0
    %2566 = vmatprep.subr.mxu0 0.0
    %2567 = vmatpush1.msra.mxu0 0.0
    %2568 = vmatprep.subr.mxu0 0.0
    %2569 = vmatpush1.msra.mxu0 0.0
    %2570 = vmatprep.subr.mxu0 0.0
    %2571 = vmatpush1.msra.mxu0 0.0
    %2572 = vmatprep.subr.mxu0 0.0
    %2573 = vmatpush1.msra.mxu0 0.0
    %2574 = vmatprep.subr.mxu0 0.0
    %2575 = vmatpush1.msra.mxu0 0.0
    %2576 = vmatprep.subr.mxu0 0.0
    %2577 = vmatpush1.msra.mxu0 0.0
    %2578 = vmatprep.subr.mxu0 0.0
    %2579 = vmatpush1.msra.mxu0 0.0
    %2580 = vmatprep.subr.mxu0 0.0
    %2581 = vmatpush1.msra.mxu0 0.0
    %2582 = vmatprep.subr.mxu0 0.0
    %2583 = vmatpush1.msra.mxu0 0.0
    %2584 = vmatprep.subr.mxu0 0.0
    %2585 = vmatpush1.msra.mxu0 0.0
    %2586 = vmatprep.subr.mxu0 0.0
    %2587 = vmatpush1.msra.mxu0 0.0
    %2588 = vmatprep.subr.mxu0 0.0
    %2589 = vmatpush1.msra.mxu0 0.0
    %2590 = vmatprep.subr.mxu0 0.0
    %2591 = vmatpush1.msra.mxu0 0.0
    %2592 = vmatprep.subr.mxu0 0.0
    %2593 = vmatpush1.msra.mxu0 0.0
    %2594 = vmatprep.subr.mxu0 0.0
    %2595 = vmatpush1.msra.mxu0 0.0
    %2596 = vmatprep.subr.mxu0 0.0
    %2597 = vmatpush1.msra.mxu0 0.0
    %2598 = vmatprep.subr.mxu0 0.0
    %2599 = vmatpush1.msra.mxu0 0.0
    %2600 = vmatprep.subr.mxu0 0.0
    %2601 = vmatpush1.msra.mxu0 0.0
    %2602 = vmatprep.subr.mxu0 0.0
    %2603 = vmatpush1.msra.mxu0 0.0
    %2604 = vmatprep.subr.mxu0 0.0
    %2605 = vmatpush1.msra.mxu0 0.0
    %2606 = vmatprep.subr.mxu0 0.0
    %2607 = vmatpush1.msra.mxu0 0.0
    %2608 = vmatprep.subr.mxu0 0.0
    %2609 = vmatpush1.msra.mxu0 0.0
    %2610 = vmatprep.subr.mxu0 0.0
    %2611 = vmatpush1.msra.mxu0 0.0
    %2612 = vmatprep.mubr.f32.mxu0 0.0
    %2613 = vmatmul.mubr.f32.gmra.mrb[0].mxu0 %v2293
    %v2614 = vpop.f32.mrb[0].mxu0
    %v2615 = vadd.f32 %v2545, %v2614
    %v2616 = vpop.f32.mrb[0].mxu0
    %2617 = vdwg.mxu0
    %v2619 = vlaneseq
    %v2620 = vshrl.u32 %v2619, 7
    %v2621 = vsub.s32 0, %v2620
    %v2622 = vrot.slane %v72, %v2621
    %v2624 = vadd.f32 %v2615, %v2622
    %v2625 = vmul.f32 %v2624, %v80
    %v2626 = vtanh.pop %v2625
    %v2627 = vmul.f32 %v2626, %v80
    %v2628 = vadd.f32 %v2627, %v81
    %v2629 = vmul.f32 %v2628, %v2283
    %2631 = vrot.lane.b32.xlu0 %v2628, 64
    %v2632 = vpop.permute.xlu0 %2631
    %v2634 = vmul.f32 %v2628, %v2632
    %2636 = vrot.lane.b32.xlu0 %v2634, 32
    %v2637 = vpop.permute.xlu0 %2636
    %v2639 = vadd.f32 %v2629, %v2637
    %v2640 = vtanh.pop %v2639
    %2642 = vrot.lane.b32.xlu0 %v2640, 64
    %v2643 = vpop.permute.xlu0 %2642
    %v2645 = vmul.f32 %v2628, %v2643
    %2647 = vrot.lane.b32.xlu0 %v2645, 32
    %v2648 = vpop.permute.xlu0 %2647
    %v2649 = vsel %vm144, %v2648, 0
    %2651 = vmatprep.subr.mxu0 0.0
    %2652 = vmatpush1.msra.mxu0 %v59
    %2653 = vmatprep.subr.mxu0 0.0
    %2654 = vmatpush1.msra.mxu0 %v60
    %2655 = vmatprep.subr.mxu0 0.0
    %2656 = vmatpush1.msra.mxu0 %v61
    %2657 = vmatprep.subr.mxu0 0.0
    %2658 = vmatpush1.msra.mxu0 %v62
    %2659 = vmatprep.subr.mxu0 0.0
    %2660 = vmatpush1.msra.mxu0 0.0
    %2661 = vmatprep.subr.mxu0 0.0
    %2662 = vmatpush1.msra.mxu0 0.0
    %2663 = vmatprep.subr.mxu0 0.0
    %2664 = vmatpush1.msra.mxu0 0.0
    %2665 = vmatprep.subr.mxu0 0.0
    %2666 = vmatpush1.msra.mxu0 0.0
    %2667 = vmatprep.subr.mxu0 0.0
    %2668 = vmatpush1.msra.mxu0 0.0
    %2669 = vmatprep.subr.mxu0 0.0
    %2670 = vmatpush1.msra.mxu0 0.0
    %2671 = vmatprep.subr.mxu0 0.0
    %2672 = vmatpush1.msra.mxu0 0.0
    %2673 = vmatprep.subr.mxu0 0.0
    %2674 = vmatpush1.msra.mxu0 0.0
    %2675 = vmatprep.subr.mxu0 0.0
    %2676 = vmatpush1.msra.mxu0 0.0
    %2677 = vmatprep.subr.mxu0 0.0
    %2678 = vmatpush1.msra.mxu0 0.0
    %2679 = vmatprep.subr.mxu0 0.0
    %2680 = vmatpush1.msra.mxu0 0.0
    %2681 = vmatprep.subr.mxu0 0.0
    %2682 = vmatpush1.msra.mxu0 0.0
    %2683 = vmatprep.subr.mxu0 0.0
    %2684 = vmatpush1.msra.mxu0 0.0
    %2685 = vmatprep.subr.mxu0 0.0
    %2686 = vmatpush1.msra.mxu0 0.0
    %2687 = vmatprep.subr.mxu0 0.0
    %2688 = vmatpush1.msra.mxu0 0.0
    %2689 = vmatprep.subr.mxu0 0.0
    %2690 = vmatpush1.msra.mxu0 0.0
    %2691 = vmatprep.subr.mxu0 0.0
    %2692 = vmatpush1.msra.mxu0 0.0
    %2693 = vmatprep.subr.mxu0 0.0
    %2694 = vmatpush1.msra.mxu0 0.0
    %2695 = vmatprep.subr.mxu0 0.0
    %2696 = vmatpush1.msra.mxu0 0.0
    %2697 = vmatprep.subr.mxu0 0.0
    %2698 = vmatpush1.msra.mxu0 0.0
    %2699 = vmatprep.subr.mxu0 0.0
    %2700 = vmatpush1.msra.mxu0 0.0
    %2701 = vmatprep.subr.mxu0 0.0
    %2702 = vmatpush1.msra.mxu0 0.0
    %2703 = vmatprep.subr.mxu0 0.0
    %2704 = vmatpush1.msra.mxu0 0.0
    %2705 = vmatprep.subr.mxu0 0.0
    %2706 = vmatpush1.msra.mxu0 0.0
    %2707 = vmatprep.subr.mxu0 0.0
    %2708 = vmatpush1.msra.mxu0 0.0
    %2709 = vmatprep.subr.mxu0 0.0
    %2710 = vmatpush1.msra.mxu0 0.0
    %2711 = vmatprep.subr.mxu0 0.0
    %2712 = vmatpush1.msra.mxu0 0.0
    %2713 = vmatprep.subr.mxu0 0.0
    %2714 = vmatpush1.msra.mxu0 0.0
    %2715 = vmatprep.mubr.f32.mxu0 0.0
    %2716 = vmatmul.mubr.f32.gmra.mrb[0].mxu0 %v2649
    %v2717 = vpop.f32.mrb[0].mxu0
    %v2718 = vadd.f32 %v2475, %v2717
    %v2719 = vpop.f32.mrb[0].mxu0
    %2720 = vdwg.mxu0
    %v2721 = vadd.f32 %v2718, %v389
    %v2722 = vmul.f32 %v2721, %v80
    %v2723 = vtanh.pop %v2722
    %v2724 = vmul.f32 %v2723, %v80
    %v2725 = vadd.f32 %v2724, %v81
    %v2726 = vmul.f32 %v2725, %v2380
    %2728 = vrot.lane.b32.xlu0 %v2725, 64
    %v2729 = vpop.permute.xlu0 %2728
    %v2731 = vmul.f32 %v2725, %v2729
    %2733 = vrot.lane.b32.xlu0 %v2731, 32
    %v2734 = vpop.permute.xlu0 %2733
    %v2736 = vadd.f32 %v2726, %v2734
    %v2737 = vtanh.pop %v2736
    %2739 = vrot.lane.b32.xlu0 %v2737, 64
    %v2740 = vpop.permute.xlu0 %2739
    %v2742 = vmul.f32 %v2725, %v2740
    %v2743 = vmul.f32 %v2742, %v419
    %2745 = vrot.lane.b32.xlu0 %v2743, 32
    %v2746 = vpop.permute.xlu0 %2745
    %v2748 = vsel %vm144, %v2746, 0.0
    %2749 = vadd.xlane.f32.xlu0 %v2748
    %v2750 = vpop.xlane.xlu0 %2749
    %v2751 = vadd.f32 %v2750, %v433
    %vm2752 = vcmp.eq.s32.totalorder %v76, 8
    %2754 = vset.pattern.permute.xlu0 0
    %2755 = vperm.xlu0 %2754, %v2751
    %v2756 = vpop.permute.xlu0 %2755
    %v2758 = vsel %vm2752, %v2756, %v2402
    %2760 = vrot.lane.b32.xlu0 %v2742, 32
    %v2761 = vpop.permute.xlu0 %2760
    %v2762 = vsel %vm144, %v2761, 0
    %2764 = vmatprep.subr.mxu0 0.0
    %2765 = vmatpush1.msra.mxu0 %v63
    %2766 = vmatprep.subr.mxu0 0.0
    %2767 = vmatpush1.msra.mxu0 %v64
    %2768 = vmatprep.subr.mxu0 0.0
    %2769 = vmatpush1.msra.mxu0 %v65
    %2770 = vmatprep.subr.mxu0 0.0
    %2771 = vmatpush1.msra.mxu0 %v66
    %2772 = vmatprep.subr.mxu0 0.0
    %2773 = vmatpush1.msra.mxu0 0.0
    %2774 = vmatprep.subr.mxu0 0.0
    %2775 = vmatpush1.msra.mxu0 0.0
    %2776 = vmatprep.subr.mxu0 0.0
    %2777 = vmatpush1.msra.mxu0 0.0
    %2778 = vmatprep.subr.mxu0 0.0
    %2779 = vmatpush1.msra.mxu0 0.0
    %2780 = vmatprep.subr.mxu0 0.0
    %2781 = vmatpush1.msra.mxu0 0.0
    %2782 = vmatprep.subr.mxu0 0.0
    %2783 = vmatpush1.msra.mxu0 0.0
    %2784 = vmatprep.subr.mxu0 0.0
    %2785 = vmatpush1.msra.mxu0 0.0
    %2786 = vmatprep.subr.mxu0 0.0
    %2787 = vmatpush1.msra.mxu0 0.0
    %2788 = vmatprep.subr.mxu0 0.0
    %2789 = vmatpush1.msra.mxu0 0.0
    %2790 = vmatprep.subr.mxu0 0.0
    %2791 = vmatpush1.msra.mxu0 0.0
    %2792 = vmatprep.subr.mxu0 0.0
    %2793 = vmatpush1.msra.mxu0 0.0
    %2794 = vmatprep.subr.mxu0 0.0
    %2795 = vmatpush1.msra.mxu0 0.0
    %2796 = vmatprep.subr.mxu0 0.0
    %2797 = vmatpush1.msra.mxu0 0.0
    %2798 = vmatprep.subr.mxu0 0.0
    %2799 = vmatpush1.msra.mxu0 0.0
    %2800 = vmatprep.subr.mxu0 0.0
    %2801 = vmatpush1.msra.mxu0 0.0
    %2802 = vmatprep.subr.mxu0 0.0
    %2803 = vmatpush1.msra.mxu0 0.0
    %2804 = vmatprep.subr.mxu0 0.0
    %2805 = vmatpush1.msra.mxu0 0.0
    %2806 = vmatprep.subr.mxu0 0.0
    %2807 = vmatpush1.msra.mxu0 0.0
    %2808 = vmatprep.subr.mxu0 0.0
    %2809 = vmatpush1.msra.mxu0 0.0
    %2810 = vmatprep.subr.mxu0 0.0
    %2811 = vmatpush1.msra.mxu0 0.0
    %2812 = vmatprep.subr.mxu0 0.0
    %2813 = vmatpush1.msra.mxu0 0.0
    %2814 = vmatprep.subr.mxu0 0.0
    %2815 = vmatpush1.msra.mxu0 0.0
    %2816 = vmatprep.subr.mxu0 0.0
    %2817 = vmatpush1.msra.mxu0 0.0
    %2818 = vmatprep.subr.mxu0 0.0
    %2819 = vmatpush1.msra.mxu0 0.0
    %2820 = vmatprep.subr.mxu0 0.0
    %2821 = vmatpush1.msra.mxu0 0.0
    %2822 = vmatprep.subr.mxu0 0.0
    %2823 = vmatpush1.msra.mxu0 0.0
    %2824 = vmatprep.subr.mxu0 0.0
    %2825 = vmatpush1.msra.mxu0 0.0
    %2826 = vmatprep.subr.mxu0 0.0
    %2827 = vmatpush1.msra.mxu0 0.0
    %2828 = vmatprep.mubr.f32.mxu0 0.0
    %2829 = vmatmul.mubr.f32.gmra.mrb[0].mxu0 %v2762
    %v2830 = vpop.f32.mrb[0].mxu0
    %v2831 = vadd.f32 0.0, %v2830
    %v2832 = vpop.f32.mrb[0].mxu0
    %2833 = vdwg.mxu0
    %2834 = vmatprep.subr.mxu0 0.0
    %2835 = vmatpush1.msra.mxu0 %v68
    %2836 = vmatprep.subr.mxu0 0.0
    %2837 = vmatpush1.msra.mxu0 %v69
    %2838 = vmatprep.subr.mxu0 0.0
    %2839 = vmatpush1.msra.mxu0 %v70
    %2840 = vmatprep.subr.mxu0 0.0
    %2841 = vmatpush1.msra.mxu0 %v71
    %2842 = vmatprep.subr.mxu0 0.0
    %2843 = vmatpush1.msra.mxu0 0.0
    %2844 = vmatprep.subr.mxu0 0.0
    %2845 = vmatpush1.msra.mxu0 0.0
    %2846 = vmatprep.subr.mxu0 0.0
    %2847 = vmatpush1.msra.mxu0 0.0
    %2848 = vmatprep.subr.mxu0 0.0
    %2849 = vmatpush1.msra.mxu0 0.0
    %2850 = vmatprep.subr.mxu0 0.0
    %2851 = vmatpush1.msra.mxu0 0.0
    %2852 = vmatprep.subr.mxu0 0.0
    %2853 = vmatpush1.msra.mxu0 0.0
    %2854 = vmatprep.subr.mxu0 0.0
    %2855 = vmatpush1.msra.mxu0 0.0
    %2856 = vmatprep.subr.mxu0 0.0
    %2857 = vmatpush1.msra.mxu0 0.0
    %2858 = vmatprep.subr.mxu0 0.0
    %2859 = vmatpush1.msra.mxu0 0.0
    %2860 = vmatprep.subr.mxu0 0.0
    %2861 = vmatpush1.msra.mxu0 0.0
    %2862 = vmatprep.subr.mxu0 0.0
    %2863 = vmatpush1.msra.mxu0 0.0
    %2864 = vmatprep.subr.mxu0 0.0
    %2865 = vmatpush1.msra.mxu0 0.0
    %2866 = vmatprep.subr.mxu0 0.0
    %2867 = vmatpush1.msra.mxu0 0.0
    %2868 = vmatprep.subr.mxu0 0.0
    %2869 = vmatpush1.msra.mxu0 0.0
    %2870 = vmatprep.subr.mxu0 0.0
    %2871 = vmatpush1.msra.mxu0 0.0
    %2872 = vmatprep.subr.mxu0 0.0
    %2873 = vmatpush1.msra.mxu0 0.0
    %2874 = vmatprep.subr.mxu0 0.0
    %2875 = vmatpush1.msra.mxu0 0.0
    %2876 = vmatprep.subr.mxu0 0.0
    %2877 = vmatpush1.msra.mxu0 0.0
    %2878 = vmatprep.subr.mxu0 0.0
    %2879 = vmatpush1.msra.mxu0 0.0
    %2880 = vmatprep.subr.mxu0 0.0
    %2881 = vmatpush1.msra.mxu0 0.0
    %2882 = vmatprep.subr.mxu0 0.0
    %2883 = vmatpush1.msra.mxu0 0.0
    %2884 = vmatprep.subr.mxu0 0.0
    %2885 = vmatpush1.msra.mxu0 0.0
    %2886 = vmatprep.subr.mxu0 0.0
    %2887 = vmatpush1.msra.mxu0 0.0
    %2888 = vmatprep.subr.mxu0 0.0
    %2889 = vmatpush1.msra.mxu0 0.0
    %2890 = vmatprep.subr.mxu0 0.0
    %2891 = vmatpush1.msra.mxu0 0.0
    %2892 = vmatprep.subr.mxu0 0.0
    %2893 = vmatpush1.msra.mxu0 0.0
    %2894 = vmatprep.subr.mxu0 0.0
    %2895 = vmatpush1.msra.mxu0 0.0
    %2896 = vmatprep.subr.mxu0 0.0
    %2897 = vmatpush1.msra.mxu0 0.0
    %2898 = vmatprep.mubr.f32.mxu0 0.0
    %2899 = vmatmul.mubr.f32.gmra.mrb[0].mxu0 %v2762
    %v2900 = vpop.f32.mrb[0].mxu0
    %v2901 = vadd.f32 0.0, %v2900
    %v2902 = vpop.f32.mrb[0].mxu0
    %2903 = vdwg.mxu0
    %2904 = vmatprep.subr.mxu0 0.0
    %2905 = vmatpush1.msra.mxu0 %v54
    %2906 = vmatprep.subr.mxu0 0.0
    %2907 = vmatpush1.msra.mxu0 %v55
    %2908 = vmatprep.subr.mxu0 0.0
    %2909 = vmatpush1.msra.mxu0 %v56
    %2910 = vmatprep.subr.mxu0 0.0
    %2911 = vmatpush1.msra.mxu0 %v57
    %2912 = vmatprep.subr.mxu0 0.0
    %2913 = vmatpush1.msra.mxu0 0.0
    %2914 = vmatprep.subr.mxu0 0.0
    %2915 = vmatpush1.msra.mxu0 0.0
    %2916 = vmatprep.subr.mxu0 0.0
    %2917 = vmatpush1.msra.mxu0 0.0
    %2918 = vmatprep.subr.mxu0 0.0
    %2919 = vmatpush1.msra.mxu0 0.0
    %2920 = vmatprep.subr.mxu0 0.0
    %2921 = vmatpush1.msra.mxu0 0.0
    %2922 = vmatprep.subr.mxu0 0.0
    %2923 = vmatpush1.msra.mxu0 0.0
    %2924 = vmatprep.subr.mxu0 0.0
    %2925 = vmatpush1.msra.mxu0 0.0
    %2926 = vmatprep.subr.mxu0 0.0
    %2927 = vmatpush1.msra.mxu0 0.0
    %2928 = vmatprep.subr.mxu0 0.0
    %2929 = vmatpush1.msra.mxu0 0.0
    %2930 = vmatprep.subr.mxu0 0.0
    %2931 = vmatpush1.msra.mxu0 0.0
    %2932 = vmatprep.subr.mxu0 0.0
    %2933 = vmatpush1.msra.mxu0 0.0
    %2934 = vmatprep.subr.mxu0 0.0
    %2935 = vmatpush1.msra.mxu0 0.0
    %2936 = vmatprep.subr.mxu0 0.0
    %2937 = vmatpush1.msra.mxu0 0.0
    %2938 = vmatprep.subr.mxu0 0.0
    %2939 = vmatpush1.msra.mxu0 0.0
    %2940 = vmatprep.subr.mxu0 0.0
    %2941 = vmatpush1.msra.mxu0 0.0
    %2942 = vmatprep.subr.mxu0 0.0
    %2943 = vmatpush1.msra.mxu0 0.0
    %2944 = vmatprep.subr.mxu0 0.0
    %2945 = vmatpush1.msra.mxu0 0.0
    %2946 = vmatprep.subr.mxu0 0.0
    %2947 = vmatpush1.msra.mxu0 0.0
    %2948 = vmatprep.subr.mxu0 0.0
    %2949 = vmatpush1.msra.mxu0 0.0
    %2950 = vmatprep.subr.mxu0 0.0
    %2951 = vmatpush1.msra.mxu0 0.0
    %2952 = vmatprep.subr.mxu0 0.0
    %2953 = vmatpush1.msra.mxu0 0.0
    %2954 = vmatprep.subr.mxu0 0.0
    %2955 = vmatpush1.msra.mxu0 0.0
    %2956 = vmatprep.subr.mxu0 0.0
    %2957 = vmatpush1.msra.mxu0 0.0
    %2958 = vmatprep.subr.mxu0 0.0
    %2959 = vmatpush1.msra.mxu0 0.0
    %2960 = vmatprep.subr.mxu0 0.0
    %2961 = vmatpush1.msra.mxu0 0.0
    %2962 = vmatprep.subr.mxu0 0.0
    %2963 = vmatpush1.msra.mxu0 0.0
    %2964 = vmatprep.subr.mxu0 0.0
    %2965 = vmatpush1.msra.mxu0 0.0
    %2966 = vmatprep.subr.mxu0 0.0
    %2967 = vmatpush1.msra.mxu0 0.0
    %2968 = vmatprep.mubr.f32.mxu0 0.0
    %2969 = vmatmul.mubr.f32.gmra.mrb[0].mxu0 %v2649
    %v2970 = vpop.f32.mrb[0].mxu0
    %v2971 = vadd.f32 %v2901, %v2970
    %v2972 = vpop.f32.mrb[0].mxu0
    %2973 = vdwg.mxu0
    %v2974 = vadd.f32 %v2971, %v2622
    %v2975 = vmul.f32 %v2974, %v80
    %v2976 = vtanh.pop %v2975
    %v2977 = vmul.f32 %v2976, %v80
    %v2978 = vadd.f32 %v2977, %v81
    %v2979 = vmul.f32 %v2978, %v2639
    %2981 = vrot.lane.b32.xlu0 %v2978, 64
    %v2982 = vpop.permute.xlu0 %2981
    %v2984 = vmul.f32 %v2978, %v2982
    %2986 = vrot.lane.b32.xlu0 %v2984, 32
    %v2987 = vpop.permute.xlu0 %2986
    %v2989 = vadd.f32 %v2979, %v2987
    %v2990 = vtanh.pop %v2989
    %2992 = vrot.lane.b32.xlu0 %v2990, 64
    %v2993 = vpop.permute.xlu0 %2992
    %v2995 = vmul.f32 %v2978, %v2993
    %2997 = vrot.lane.b32.xlu0 %v2995, 32
    %v2998 = vpop.permute.xlu0 %2997
    %v2999 = vsel %vm144, %v2998, 0
    %3001 = vmatprep.subr.mxu0 0.0
    %3002 = vmatpush1.msra.mxu0 %v59
    %3003 = vmatprep.subr.mxu0 0.0
    %3004 = vmatpush1.msra.mxu0 %v60
    %3005 = vmatprep.subr.mxu0 0.0
    %3006 = vmatpush1.msra.mxu0 %v61
    %3007 = vmatprep.subr.mxu0 0.0
    %3008 = vmatpush1.msra.mxu0 %v62
    %3009 = vmatprep.subr.mxu0 0.0
    %3010 = vmatpush1.msra.mxu0 0.0
    %3011 = vmatprep.subr.mxu0 0.0
    %3012 = vmatpush1.msra.mxu0 0.0
    %3013 = vmatprep.subr.mxu0 0.0
    %3014 = vmatpush1.msra.mxu0 0.0
    %3015 = vmatprep.subr.mxu0 0.0
    %3016 = vmatpush1.msra.mxu0 0.0
    %3017 = vmatprep.subr.mxu0 0.0
    %3018 = vmatpush1.msra.mxu0 0.0
    %3019 = vmatprep.subr.mxu0 0.0
    %3020 = vmatpush1.msra.mxu0 0.0
    %3021 = vmatprep.subr.mxu0 0.0
    %3022 = vmatpush1.msra.mxu0 0.0
    %3023 = vmatprep.subr.mxu0 0.0
    %3024 = vmatpush1.msra.mxu0 0.0
    %3025 = vmatprep.subr.mxu0 0.0
    %3026 = vmatpush1.msra.mxu0 0.0
    %3027 = vmatprep.subr.mxu0 0.0
    %3028 = vmatpush1.msra.mxu0 0.0
    %3029 = vmatprep.subr.mxu0 0.0
    %3030 = vmatpush1.msra.mxu0 0.0
    %3031 = vmatprep.subr.mxu0 0.0
    %3032 = vmatpush1.msra.mxu0 0.0
    %3033 = vmatprep.subr.mxu0 0.0
    %3034 = vmatpush1.msra.mxu0 0.0
    %3035 = vmatprep.subr.mxu0 0.0
    %3036 = vmatpush1.msra.mxu0 0.0
    %3037 = vmatprep.subr.mxu0 0.0
    %3038 = vmatpush1.msra.mxu0 0.0
    %3039 = vmatprep.subr.mxu0 0.0
    %3040 = vmatpush1.msra.mxu0 0.0
    %3041 = vmatprep.subr.mxu0 0.0
    %3042 = vmatpush1.msra.mxu0 0.0
    %3043 = vmatprep.subr.mxu0 0.0
    %3044 = vmatpush1.msra.mxu0 0.0
    %3045 = vmatprep.subr.mxu0 0.0
    %3046 = vmatpush1.msra.mxu0 0.0
    %3047 = vmatprep.subr.mxu0 0.0
    %3048 = vmatpush1.msra.mxu0 0.0
    %3049 = vmatprep.subr.mxu0 0.0
    %3050 = vmatpush1.msra.mxu0 0.0
    %3051 = vmatprep.subr.mxu0 0.0
    %3052 = vmatpush1.msra.mxu0 0.0
    %3053 = vmatprep.subr.mxu0 0.0
    %3054 = vmatpush1.msra.mxu0 0.0
    %3055 = vmatprep.subr.mxu0 0.0
    %3056 = vmatpush1.msra.mxu0 0.0
    %3057 = vmatprep.subr.mxu0 0.0
    %3058 = vmatpush1.msra.mxu0 0.0
    %3059 = vmatprep.subr.mxu0 0.0
    %3060 = vmatpush1.msra.mxu0 0.0
    %3061 = vmatprep.subr.mxu0 0.0
    %3062 = vmatpush1.msra.mxu0 0.0
    %3063 = vmatprep.subr.mxu0 0.0
    %3064 = vmatpush1.msra.mxu0 0.0
    %3065 = vmatprep.mubr.f32.mxu0 0.0
    %3066 = vmatmul.mubr.f32.gmra.mrb[0].mxu0 %v2999
    %v3067 = vpop.f32.mrb[0].mxu0
    %v3068 = vadd.f32 %v2831, %v3067
    %v3069 = vpop.f32.mrb[0].mxu0
    %3070 = vdwg.mxu0
    %v3071 = vadd.f32 %v3068, %v389
    %v3072 = vmul.f32 %v3071, %v80
    %v3073 = vtanh.pop %v3072
    %v3074 = vmul.f32 %v3073, %v80
    %v3075 = vadd.f32 %v3074, %v81
    %v3076 = vmul.f32 %v3075, %v2736
    %3078 = vrot.lane.b32.xlu0 %v3075, 64
    %v3079 = vpop.permute.xlu0 %3078
    %v3081 = vmul.f32 %v3075, %v3079
    %3083 = vrot.lane.b32.xlu0 %v3081, 32
    %v3084 = vpop.permute.xlu0 %3083
    %v3086 = vadd.f32 %v3076, %v3084
    %v3087 = vtanh.pop %v3086
    %3089 = vrot.lane.b32.xlu0 %v3087, 64
    %v3090 = vpop.permute.xlu0 %3089
    %v3092 = vmul.f32 %v3075, %v3090
    %v3093 = vmul.f32 %v3092, %v419
    %3095 = vrot.lane.b32.xlu0 %v3093, 32
    %v3096 = vpop.permute.xlu0 %3095
    %v3098 = vsel %vm144, %v3096, 0.0
    %3099 = vadd.xlane.f32.xlu0 %v3098
    %v3100 = vpop.xlane.xlu0 %3099
    %v3101 = vadd.f32 %v3100, %v433
    %vm3102 = vcmp.eq.s32.totalorder %v76, 9
    %3104 = vset.pattern.permute.xlu0 0
    %3105 = vperm.xlu0 %3104, %v3101
    %v3106 = vpop.permute.xlu0 %3105
    %v3108 = vsel %vm3102, %v3106, %v2758
    %3110 = vrot.lane.b32.xlu0 %v3092, 32
    %v3111 = vpop.permute.xlu0 %3110
    %v3112 = vsel %vm144, %v3111, 0
    %3114 = vmatprep.subr.mxu0 0.0
    %3115 = vmatpush1.msra.mxu0 %v63
    %3116 = vmatprep.subr.mxu0 0.0
    %3117 = vmatpush1.msra.mxu0 %v64
    %3118 = vmatprep.subr.mxu0 0.0
    %3119 = vmatpush1.msra.mxu0 %v65
    %3120 = vmatprep.subr.mxu0 0.0
    %3121 = vmatpush1.msra.mxu0 %v66
    %3122 = vmatprep.subr.mxu0 0.0
    %3123 = vmatpush1.msra.mxu0 0.0
    %3124 = vmatprep.subr.mxu0 0.0
    %3125 = vmatpush1.msra.mxu0 0.0
    %3126 = vmatprep.subr.mxu0 0.0
    %3127 = vmatpush1.msra.mxu0 0.0
    %3128 = vmatprep.subr.mxu0 0.0
    %3129 = vmatpush1.msra.mxu0 0.0
    %3130 = vmatprep.subr.mxu0 0.0
    %3131 = vmatpush1.msra.mxu0 0.0
    %3132 = vmatprep.subr.mxu0 0.0
    %3133 = vmatpush1.msra.mxu0 0.0
    %3134 = vmatprep.subr.mxu0 0.0
    %3135 = vmatpush1.msra.mxu0 0.0
    %3136 = vmatprep.subr.mxu0 0.0
    %3137 = vmatpush1.msra.mxu0 0.0
    %3138 = vmatprep.subr.mxu0 0.0
    %3139 = vmatpush1.msra.mxu0 0.0
    %3140 = vmatprep.subr.mxu0 0.0
    %3141 = vmatpush1.msra.mxu0 0.0
    %3142 = vmatprep.subr.mxu0 0.0
    %3143 = vmatpush1.msra.mxu0 0.0
    %3144 = vmatprep.subr.mxu0 0.0
    %3145 = vmatpush1.msra.mxu0 0.0
    %3146 = vmatprep.subr.mxu0 0.0
    %3147 = vmatpush1.msra.mxu0 0.0
    %3148 = vmatprep.subr.mxu0 0.0
    %3149 = vmatpush1.msra.mxu0 0.0
    %3150 = vmatprep.subr.mxu0 0.0
    %3151 = vmatpush1.msra.mxu0 0.0
    %3152 = vmatprep.subr.mxu0 0.0
    %3153 = vmatpush1.msra.mxu0 0.0
    %3154 = vmatprep.subr.mxu0 0.0
    %3155 = vmatpush1.msra.mxu0 0.0
    %3156 = vmatprep.subr.mxu0 0.0
    %3157 = vmatpush1.msra.mxu0 0.0
    %3158 = vmatprep.subr.mxu0 0.0
    %3159 = vmatpush1.msra.mxu0 0.0
    %3160 = vmatprep.subr.mxu0 0.0
    %3161 = vmatpush1.msra.mxu0 0.0
    %3162 = vmatprep.subr.mxu0 0.0
    %3163 = vmatpush1.msra.mxu0 0.0
    %3164 = vmatprep.subr.mxu0 0.0
    %3165 = vmatpush1.msra.mxu0 0.0
    %3166 = vmatprep.subr.mxu0 0.0
    %3167 = vmatpush1.msra.mxu0 0.0
    %3168 = vmatprep.subr.mxu0 0.0
    %3169 = vmatpush1.msra.mxu0 0.0
    %3170 = vmatprep.subr.mxu0 0.0
    %3171 = vmatpush1.msra.mxu0 0.0
    %3172 = vmatprep.subr.mxu0 0.0
    %3173 = vmatpush1.msra.mxu0 0.0
    %3174 = vmatprep.subr.mxu0 0.0
    %3175 = vmatpush1.msra.mxu0 0.0
    %3176 = vmatprep.subr.mxu0 0.0
    %3177 = vmatpush1.msra.mxu0 0.0
    %3178 = vmatprep.mubr.f32.mxu0 0.0
    %3179 = vmatmul.mubr.f32.gmra.mrb[0].mxu0 %v3112
    %v3180 = vpop.f32.mrb[0].mxu0
    %v3181 = vadd.f32 0.0, %v3180
    %v3182 = vpop.f32.mrb[0].mxu0
    %3183 = vdwg.mxu0
    %3184 = vmatprep.subr.mxu0 0.0
    %3185 = vmatpush1.msra.mxu0 %v68
    %3186 = vmatprep.subr.mxu0 0.0
    %3187 = vmatpush1.msra.mxu0 %v69
    %3188 = vmatprep.subr.mxu0 0.0
    %3189 = vmatpush1.msra.mxu0 %v70
    %3190 = vmatprep.subr.mxu0 0.0
    %3191 = vmatpush1.msra.mxu0 %v71
    %3192 = vmatprep.subr.mxu0 0.0
    %3193 = vmatpush1.msra.mxu0 0.0
    %3194 = vmatprep.subr.mxu0 0.0
    %3195 = vmatpush1.msra.mxu0 0.0
    %3196 = vmatprep.subr.mxu0 0.0
    %3197 = vmatpush1.msra.mxu0 0.0
    %3198 = vmatprep.subr.mxu0 0.0
    %3199 = vmatpush1.msra.mxu0 0.0
    %3200 = vmatprep.subr.mxu0 0.0
    %3201 = vmatpush1.msra.mxu0 0.0
    %3202 = vmatprep.subr.mxu0 0.0
    %3203 = vmatpush1.msra.mxu0 0.0
    %3204 = vmatprep.subr.mxu0 0.0
    %3205 = vmatpush1.msra.mxu0 0.0
    %3206 = vmatprep.subr.mxu0 0.0
    %3207 = vmatpush1.msra.mxu0 0.0
    %3208 = vmatprep.subr.mxu0 0.0
    %3209 = vmatpush1.msra.mxu0 0.0
    %3210 = vmatprep.subr.mxu0 0.0
    %3211 = vmatpush1.msra.mxu0 0.0
    %3212 = vmatprep.subr.mxu0 0.0
    %3213 = vmatpush1.msra.mxu0 0.0
    %3214 = vmatprep.subr.mxu0 0.0
    %3215 = vmatpush1.msra.mxu0 0.0
    %3216 = vmatprep.subr.mxu0 0.0
    %3217 = vmatpush1.msra.mxu0 0.0
    %3218 = vmatprep.subr.mxu0 0.0
    %3219 = vmatpush1.msra.mxu0 0.0
    %3220 = vmatprep.subr.mxu0 0.0
    %3221 = vmatpush1.msra.mxu0 0.0
    %3222 = vmatprep.subr.mxu0 0.0
    %3223 = vmatpush1.msra.mxu0 0.0
    %3224 = vmatprep.subr.mxu0 0.0
    %3225 = vmatpush1.msra.mxu0 0.0
    %3226 = vmatprep.subr.mxu0 0.0
    %3227 = vmatpush1.msra.mxu0 0.0
    %3228 = vmatprep.subr.mxu0 0.0
    %3229 = vmatpush1.msra.mxu0 0.0
    %3230 = vmatprep.subr.mxu0 0.0
    %3231 = vmatpush1.msra.mxu0 0.0
    %3232 = vmatprep.subr.mxu0 0.0
    %3233 = vmatpush1.msra.mxu0 0.0
    %3234 = vmatprep.subr.mxu0 0.0
    %3235 = vmatpush1.msra.mxu0 0.0
    %3236 = vmatprep.subr.mxu0 0.0
    %3237 = vmatpush1.msra.mxu0 0.0
    %3238 = vmatprep.subr.mxu0 0.0
    %3239 = vmatpush1.msra.mxu0 0.0
    %3240 = vmatprep.subr.mxu0 0.0
    %3241 = vmatpush1.msra.mxu0 0.0
    %3242 = vmatprep.subr.mxu0 0.0
    %3243 = vmatpush1.msra.mxu0 0.0
    %3244 = vmatprep.subr.mxu0 0.0
    %3245 = vmatpush1.msra.mxu0 0.0
    %3246 = vmatprep.subr.mxu0 0.0
    %3247 = vmatpush1.msra.mxu0 0.0
    %3248 = vmatprep.mubr.f32.mxu0 0.0
    %3249 = vmatmul.mubr.f32.gmra.mrb[0].mxu0 %v3112
    %v3250 = vpop.f32.mrb[0].mxu0
    %v3251 = vadd.f32 0.0, %v3250
    %v3252 = vpop.f32.mrb[0].mxu0
    %3253 = vdwg.mxu0
    %3254 = vmatprep.subr.mxu0 0.0
    %3255 = vmatpush1.msra.mxu0 %v54
    %3256 = vmatprep.subr.mxu0 0.0
    %3257 = vmatpush1.msra.mxu0 %v55
    %3258 = vmatprep.subr.mxu0 0.0
    %3259 = vmatpush1.msra.mxu0 %v56
    %3260 = vmatprep.subr.mxu0 0.0
    %3261 = vmatpush1.msra.mxu0 %v57
    %3262 = vmatprep.subr.mxu0 0.0
    %3263 = vmatpush1.msra.mxu0 0.0
    %3264 = vmatprep.subr.mxu0 0.0
    %3265 = vmatpush1.msra.mxu0 0.0
    %3266 = vmatprep.subr.mxu0 0.0
    %3267 = vmatpush1.msra.mxu0 0.0
    %3268 = vmatprep.subr.mxu0 0.0
    %3269 = vmatpush1.msra.mxu0 0.0
    %3270 = vmatprep.subr.mxu0 0.0
    %3271 = vmatpush1.msra.mxu0 0.0
    %3272 = vmatprep.subr.mxu0 0.0
    %3273 = vmatpush1.msra.mxu0 0.0
    %3274 = vmatprep.subr.mxu0 0.0
    %3275 = vmatpush1.msra.mxu0 0.0
    %3276 = vmatprep.subr.mxu0 0.0
    %3277 = vmatpush1.msra.mxu0 0.0
    %3278 = vmatprep.subr.mxu0 0.0
    %3279 = vmatpush1.msra.mxu0 0.0
    %3280 = vmatprep.subr.mxu0 0.0
    %3281 = vmatpush1.msra.mxu0 0.0
    %3282 = vmatprep.subr.mxu0 0.0
    %3283 = vmatpush1.msra.mxu0 0.0
    %3284 = vmatprep.subr.mxu0 0.0
    %3285 = vmatpush1.msra.mxu0 0.0
    %3286 = vmatprep.subr.mxu0 0.0
    %3287 = vmatpush1.msra.mxu0 0.0
    %3288 = vmatprep.subr.mxu0 0.0
    %3289 = vmatpush1.msra.mxu0 0.0
    %3290 = vmatprep.subr.mxu0 0.0
    %3291 = vmatpush1.msra.mxu0 0.0
    %3292 = vmatprep.subr.mxu0 0.0
    %3293 = vmatpush1.msra.mxu0 0.0
    %3294 = vmatprep.subr.mxu0 0.0
    %3295 = vmatpush1.msra.mxu0 0.0
    %3296 = vmatprep.subr.mxu0 0.0
    %3297 = vmatpush1.msra.mxu0 0.0
    %3298 = vmatprep.subr.mxu0 0.0
    %3299 = vmatpush1.msra.mxu0 0.0
    %3300 = vmatprep.subr.mxu0 0.0
    %3301 = vmatpush1.msra.mxu0 0.0
    %3302 = vmatprep.subr.mxu0 0.0
    %3303 = vmatpush1.msra.mxu0 0.0
    %3304 = vmatprep.subr.mxu0 0.0
    %3305 = vmatpush1.msra.mxu0 0.0
    %3306 = vmatprep.subr.mxu0 0.0
    %3307 = vmatpush1.msra.mxu0 0.0
    %3308 = vmatprep.subr.mxu0 0.0
    %3309 = vmatpush1.msra.mxu0 0.0
    %3310 = vmatprep.subr.mxu0 0.0
    %3311 = vmatpush1.msra.mxu0 0.0
    %3312 = vmatprep.subr.mxu0 0.0
    %3313 = vmatpush1.msra.mxu0 0.0
    %3314 = vmatprep.subr.mxu0 0.0
    %3315 = vmatpush1.msra.mxu0 0.0
    %3316 = vmatprep.subr.mxu0 0.0
    %3317 = vmatpush1.msra.mxu0 0.0
    %3318 = vmatprep.mubr.f32.mxu0 0.0
    %3319 = vmatmul.mubr.f32.gmra.mrb[0].mxu0 %v2999
    %v3320 = vpop.f32.mrb[0].mxu0
    %v3321 = vadd.f32 %v3251, %v3320
    %v3322 = vpop.f32.mrb[0].mxu0
    %3323 = vdwg.mxu0
    %v3324 = vadd.f32 %v3321, %v2622
    %v3325 = vmul.f32 %v3324, %v80
    %v3326 = vtanh.pop %v3325
    %v3327 = vmul.f32 %v3326, %v80
    %v3328 = vadd.f32 %v3327, %v81
    %v3329 = vmul.f32 %v3328, %v2989
    %3331 = vrot.lane.b32.xlu0 %v3328, 64
    %v3332 = vpop.permute.xlu0 %3331
    %v3334 = vmul.f32 %v3328, %v3332
    %3336 = vrot.lane.b32.xlu0 %v3334, 32
    %v3337 = vpop.permute.xlu0 %3336
    %v3339 = vadd.f32 %v3329, %v3337
    %v3340 = vtanh.pop %v3339
    %3342 = vrot.lane.b32.xlu0 %v3340, 64
    %v3343 = vpop.permute.xlu0 %3342
    %v3345 = vmul.f32 %v3328, %v3343
    %3347 = vrot.lane.b32.xlu0 %v3345, 32
    %v3348 = vpop.permute.xlu0 %3347
    %v3349 = vsel %vm144, %v3348, 0
    %3351 = vmatprep.subr.mxu0 0.0
    %3352 = vmatpush1.msra.mxu0 %v59
    %3353 = vmatprep.subr.mxu0 0.0
    %3354 = vmatpush1.msra.mxu0 %v60
    %3355 = vmatprep.subr.mxu0 0.0
    %3356 = vmatpush1.msra.mxu0 %v61
    %3357 = vmatprep.subr.mxu0 0.0
    %3358 = vmatpush1.msra.mxu0 %v62
    %3359 = vmatprep.subr.mxu0 0.0
    %3360 = vmatpush1.msra.mxu0 0.0
    %3361 = vmatprep.subr.mxu0 0.0
    %3362 = vmatpush1.msra.mxu0 0.0
    %3363 = vmatprep.subr.mxu0 0.0
    %3364 = vmatpush1.msra.mxu0 0.0
    %3365 = vmatprep.subr.mxu0 0.0
    %3366 = vmatpush1.msra.mxu0 0.0
    %3367 = vmatprep.subr.mxu0 0.0
    %3368 = vmatpush1.msra.mxu0 0.0
    %3369 = vmatprep.subr.mxu0 0.0
    %3370 = vmatpush1.msra.mxu0 0.0
    %3371 = vmatprep.subr.mxu0 0.0
    %3372 = vmatpush1.msra.mxu0 0.0
    %3373 = vmatprep.subr.mxu0 0.0
    %3374 = vmatpush1.msra.mxu0 0.0
    %3375 = vmatprep.subr.mxu0 0.0
    %3376 = vmatpush1.msra.mxu0 0.0
    %3377 = vmatprep.subr.mxu0 0.0
    %3378 = vmatpush1.msra.mxu0 0.0
    %3379 = vmatprep.subr.mxu0 0.0
    %3380 = vmatpush1.msra.mxu0 0.0
    %3381 = vmatprep.subr.mxu0 0.0
    %3382 = vmatpush1.msra.mxu0 0.0
    %3383 = vmatprep.subr.mxu0 0.0
    %3384 = vmatpush1.msra.mxu0 0.0
    %3385 = vmatprep.subr.mxu0 0.0
    %3386 = vmatpush1.msra.mxu0 0.0
    %3387 = vmatprep.subr.mxu0 0.0
    %3388 = vmatpush1.msra.mxu0 0.0
    %3389 = vmatprep.subr.mxu0 0.0
    %3390 = vmatpush1.msra.mxu0 0.0
    %3391 = vmatprep.subr.mxu0 0.0
    %3392 = vmatpush1.msra.mxu0 0.0
    %3393 = vmatprep.subr.mxu0 0.0
    %3394 = vmatpush1.msra.mxu0 0.0
    %3395 = vmatprep.subr.mxu0 0.0
    %3396 = vmatpush1.msra.mxu0 0.0
    %3397 = vmatprep.subr.mxu0 0.0
    %3398 = vmatpush1.msra.mxu0 0.0
    %3399 = vmatprep.subr.mxu0 0.0
    %3400 = vmatpush1.msra.mxu0 0.0
    %3401 = vmatprep.subr.mxu0 0.0
    %3402 = vmatpush1.msra.mxu0 0.0
    %3403 = vmatprep.subr.mxu0 0.0
    %3404 = vmatpush1.msra.mxu0 0.0
    %3405 = vmatprep.subr.mxu0 0.0
    %3406 = vmatpush1.msra.mxu0 0.0
    %3407 = vmatprep.subr.mxu0 0.0
    %3408 = vmatpush1.msra.mxu0 0.0
    %3409 = vmatprep.subr.mxu0 0.0
    %3410 = vmatpush1.msra.mxu0 0.0
    %3411 = vmatprep.subr.mxu0 0.0
    %3412 = vmatpush1.msra.mxu0 0.0
    %3413 = vmatprep.subr.mxu0 0.0
    %3414 = vmatpush1.msra.mxu0 0.0
    %3415 = vmatprep.mubr.f32.mxu0 0.0
    %3416 = vmatmul.mubr.f32.gmra.mrb[0].mxu0 %v3349
    %v3417 = vpop.f32.mrb[0].mxu0
    %v3418 = vadd.f32 %v3181, %v3417
    %v3419 = vpop.f32.mrb[0].mxu0
    %3420 = vdwg.mxu0
    %v3421 = vadd.f32 %v3418, %v389
    %v3422 = vmul.f32 %v3421, %v80
    %v3423 = vtanh.pop %v3422
    %v3424 = vmul.f32 %v3423, %v80
    %v3425 = vadd.f32 %v3424, %v81
    %v3426 = vmul.f32 %v3425, %v3086
    %3428 = vrot.lane.b32.xlu0 %v3425, 64
    %v3429 = vpop.permute.xlu0 %3428
    %v3431 = vmul.f32 %v3425, %v3429
    %3433 = vrot.lane.b32.xlu0 %v3431, 32
    %v3434 = vpop.permute.xlu0 %3433
    %v3436 = vadd.f32 %v3426, %v3434
    %v3437 = vtanh.pop %v3436
    %3439 = vrot.lane.b32.xlu0 %v3437, 64
    %v3440 = vpop.permute.xlu0 %3439
    %v3442 = vmul.f32 %v3425, %v3440
    %v3443 = vmul.f32 %v3442, %v419
    %3445 = vrot.lane.b32.xlu0 %v3443, 32
    %v3446 = vpop.permute.xlu0 %3445
    %v3448 = vsel %vm144, %v3446, 0.0
    %3449 = vadd.xlane.f32.xlu0 %v3448
    %v3450 = vpop.xlane.xlu0 %3449
    %v3451 = vadd.f32 %v3450, %v433
    %vm3452 = vcmp.eq.s32.totalorder %v76, 10
    %3454 = vset.pattern.permute.xlu0 0
    %3455 = vperm.xlu0 %3454, %v3451
    %v3456 = vpop.permute.xlu0 %3455
    %v3458 = vsel %vm3452, %v3456, %v3108
    %3460 = vrot.lane.b32.xlu0 %v3442, 32
    %v3461 = vpop.permute.xlu0 %3460
    %v3462 = vsel %vm144, %v3461, 0
    %3464 = vmatprep.subr.mxu0 0.0
    %3465 = vmatpush1.msra.mxu0 %v63
    %3466 = vmatprep.subr.mxu0 0.0
    %3467 = vmatpush1.msra.mxu0 %v64
    %3468 = vmatprep.subr.mxu0 0.0
    %3469 = vmatpush1.msra.mxu0 %v65
    %3470 = vmatprep.subr.mxu0 0.0
    %3471 = vmatpush1.msra.mxu0 %v66
    %3472 = vmatprep.subr.mxu0 0.0
    %3473 = vmatpush1.msra.mxu0 0.0
    %3474 = vmatprep.subr.mxu0 0.0
    %3475 = vmatpush1.msra.mxu0 0.0
    %3476 = vmatprep.subr.mxu0 0.0
    %3477 = vmatpush1.msra.mxu0 0.0
    %3478 = vmatprep.subr.mxu0 0.0
    %3479 = vmatpush1.msra.mxu0 0.0
    %3480 = vmatprep.subr.mxu0 0.0
    %3481 = vmatpush1.msra.mxu0 0.0
    %3482 = vmatprep.subr.mxu0 0.0
    %3483 = vmatpush1.msra.mxu0 0.0
    %3484 = vmatprep.subr.mxu0 0.0
    %3485 = vmatpush1.msra.mxu0 0.0
    %3486 = vmatprep.subr.mxu0 0.0
    %3487 = vmatpush1.msra.mxu0 0.0
    %3488 = vmatprep.subr.mxu0 0.0
    %3489 = vmatpush1.msra.mxu0 0.0
    %3490 = vmatprep.subr.mxu0 0.0
    %3491 = vmatpush1.msra.mxu0 0.0
    %3492 = vmatprep.subr.mxu0 0.0
    %3493 = vmatpush1.msra.mxu0 0.0
    %3494 = vmatprep.subr.mxu0 0.0
    %3495 = vmatpush1.msra.mxu0 0.0
    %3496 = vmatprep.subr.mxu0 0.0
    %3497 = vmatpush1.msra.mxu0 0.0
    %3498 = vmatprep.subr.mxu0 0.0
    %3499 = vmatpush1.msra.mxu0 0.0
    %3500 = vmatprep.subr.mxu0 0.0
    %3501 = vmatpush1.msra.mxu0 0.0
    %3502 = vmatprep.subr.mxu0 0.0
    %3503 = vmatpush1.msra.mxu0 0.0
    %3504 = vmatprep.subr.mxu0 0.0
    %3505 = vmatpush1.msra.mxu0 0.0
    %3506 = vmatprep.subr.mxu0 0.0
    %3507 = vmatpush1.msra.mxu0 0.0
    %3508 = vmatprep.subr.mxu0 0.0
    %3509 = vmatpush1.msra.mxu0 0.0
    %3510 = vmatprep.subr.mxu0 0.0
    %3511 = vmatpush1.msra.mxu0 0.0
    %3512 = vmatprep.subr.mxu0 0.0
    %3513 = vmatpush1.msra.mxu0 0.0
    %3514 = vmatprep.subr.mxu0 0.0
    %3515 = vmatpush1.msra.mxu0 0.0
    %3516 = vmatprep.subr.mxu0 0.0
    %3517 = vmatpush1.msra.mxu0 0.0
    %3518 = vmatprep.subr.mxu0 0.0
    %3519 = vmatpush1.msra.mxu0 0.0
    %3520 = vmatprep.subr.mxu0 0.0
    %3521 = vmatpush1.msra.mxu0 0.0
    %3522 = vmatprep.subr.mxu0 0.0
    %3523 = vmatpush1.msra.mxu0 0.0
    %3524 = vmatprep.subr.mxu0 0.0
    %3525 = vmatpush1.msra.mxu0 0.0
    %3526 = vmatprep.subr.mxu0 0.0
    %3527 = vmatpush1.msra.mxu0 0.0
    %3528 = vmatprep.mubr.f32.mxu0 0.0
    %3529 = vmatmul.mubr.f32.gmra.mrb[0].mxu0 %v3462
    %v3530 = vpop.f32.mrb[0].mxu0
    %v3531 = vadd.f32 0.0, %v3530
    %v3532 = vpop.f32.mrb[0].mxu0
    %3533 = vdwg.mxu0
    %3534 = vmatprep.subr.mxu0 0.0
    %3535 = vmatpush1.msra.mxu0 %v68
    %3536 = vmatprep.subr.mxu0 0.0
    %3537 = vmatpush1.msra.mxu0 %v69
    %3538 = vmatprep.subr.mxu0 0.0
    %3539 = vmatpush1.msra.mxu0 %v70
    %3540 = vmatprep.subr.mxu0 0.0
    %3541 = vmatpush1.msra.mxu0 %v71
    %3542 = vmatprep.subr.mxu0 0.0
    %3543 = vmatpush1.msra.mxu0 0.0
    %3544 = vmatprep.subr.mxu0 0.0
    %3545 = vmatpush1.msra.mxu0 0.0
    %3546 = vmatprep.subr.mxu0 0.0
    %3547 = vmatpush1.msra.mxu0 0.0
    %3548 = vmatprep.subr.mxu0 0.0
    %3549 = vmatpush1.msra.mxu0 0.0
    %3550 = vmatprep.subr.mxu0 0.0
    %3551 = vmatpush1.msra.mxu0 0.0
    %3552 = vmatprep.subr.mxu0 0.0
    %3553 = vmatpush1.msra.mxu0 0.0
    %3554 = vmatprep.subr.mxu0 0.0
    %3555 = vmatpush1.msra.mxu0 0.0
    %3556 = vmatprep.subr.mxu0 0.0
    %3557 = vmatpush1.msra.mxu0 0.0
    %3558 = vmatprep.subr.mxu0 0.0
    %3559 = vmatpush1.msra.mxu0 0.0
    %3560 = vmatprep.subr.mxu0 0.0
    %3561 = vmatpush1.msra.mxu0 0.0
    %3562 = vmatprep.subr.mxu0 0.0
    %3563 = vmatpush1.msra.mxu0 0.0
    %3564 = vmatprep.subr.mxu0 0.0
    %3565 = vmatpush1.msra.mxu0 0.0
    %3566 = vmatprep.subr.mxu0 0.0
    %3567 = vmatpush1.msra.mxu0 0.0
    %3568 = vmatprep.subr.mxu0 0.0
    %3569 = vmatpush1.msra.mxu0 0.0
    %3570 = vmatprep.subr.mxu0 0.0
    %3571 = vmatpush1.msra.mxu0 0.0
    %3572 = vmatprep.subr.mxu0 0.0
    %3573 = vmatpush1.msra.mxu0 0.0
    %3574 = vmatprep.subr.mxu0 0.0
    %3575 = vmatpush1.msra.mxu0 0.0
    %3576 = vmatprep.subr.mxu0 0.0
    %3577 = vmatpush1.msra.mxu0 0.0
    %3578 = vmatprep.subr.mxu0 0.0
    %3579 = vmatpush1.msra.mxu0 0.0
    %3580 = vmatprep.subr.mxu0 0.0
    %3581 = vmatpush1.msra.mxu0 0.0
    %3582 = vmatprep.subr.mxu0 0.0
    %3583 = vmatpush1.msra.mxu0 0.0
    %3584 = vmatprep.subr.mxu0 0.0
    %3585 = vmatpush1.msra.mxu0 0.0
    %3586 = vmatprep.subr.mxu0 0.0
    %3587 = vmatpush1.msra.mxu0 0.0
    %3588 = vmatprep.subr.mxu0 0.0
    %3589 = vmatpush1.msra.mxu0 0.0
    %3590 = vmatprep.subr.mxu0 0.0
    %3591 = vmatpush1.msra.mxu0 0.0
    %3592 = vmatprep.subr.mxu0 0.0
    %3593 = vmatpush1.msra.mxu0 0.0
    %3594 = vmatprep.subr.mxu0 0.0
    %3595 = vmatpush1.msra.mxu0 0.0
    %3596 = vmatprep.subr.mxu0 0.0
    %3597 = vmatpush1.msra.mxu0 0.0
    %3598 = vmatprep.mubr.f32.mxu0 0.0
    %3599 = vmatmul.mubr.f32.gmra.mrb[0].mxu0 %v3462
    %v3600 = vpop.f32.mrb[0].mxu0
    %v3601 = vadd.f32 0.0, %v3600
    %v3602 = vpop.f32.mrb[0].mxu0
    %3603 = vdwg.mxu0
    %3604 = vmatprep.subr.mxu0 0.0
    %3605 = vmatpush1.msra.mxu0 %v54
    %3606 = vmatprep.subr.mxu0 0.0
    %3607 = vmatpush1.msra.mxu0 %v55
    %3608 = vmatprep.subr.mxu0 0.0
    %3609 = vmatpush1.msra.mxu0 %v56
    %3610 = vmatprep.subr.mxu0 0.0
    %3611 = vmatpush1.msra.mxu0 %v57
    %3612 = vmatprep.subr.mxu0 0.0
    %3613 = vmatpush1.msra.mxu0 0.0
    %3614 = vmatprep.subr.mxu0 0.0
    %3615 = vmatpush1.msra.mxu0 0.0
    %3616 = vmatprep.subr.mxu0 0.0
    %3617 = vmatpush1.msra.mxu0 0.0
    %3618 = vmatprep.subr.mxu0 0.0
    %3619 = vmatpush1.msra.mxu0 0.0
    %3620 = vmatprep.subr.mxu0 0.0
    %3621 = vmatpush1.msra.mxu0 0.0
    %3622 = vmatprep.subr.mxu0 0.0
    %3623 = vmatpush1.msra.mxu0 0.0
    %3624 = vmatprep.subr.mxu0 0.0
    %3625 = vmatpush1.msra.mxu0 0.0
    %3626 = vmatprep.subr.mxu0 0.0
    %3627 = vmatpush1.msra.mxu0 0.0
    %3628 = vmatprep.subr.mxu0 0.0
    %3629 = vmatpush1.msra.mxu0 0.0
    %3630 = vmatprep.subr.mxu0 0.0
    %3631 = vmatpush1.msra.mxu0 0.0
    %3632 = vmatprep.subr.mxu0 0.0
    %3633 = vmatpush1.msra.mxu0 0.0
    %3634 = vmatprep.subr.mxu0 0.0
    %3635 = vmatpush1.msra.mxu0 0.0
    %3636 = vmatprep.subr.mxu0 0.0
    %3637 = vmatpush1.msra.mxu0 0.0
    %3638 = vmatprep.subr.mxu0 0.0
    %3639 = vmatpush1.msra.mxu0 0.0
    %3640 = vmatprep.subr.mxu0 0.0
    %3641 = vmatpush1.msra.mxu0 0.0
    %3642 = vmatprep.subr.mxu0 0.0
    %3643 = vmatpush1.msra.mxu0 0.0
    %3644 = vmatprep.subr.mxu0 0.0
    %3645 = vmatpush1.msra.mxu0 0.0
    %3646 = vmatprep.subr.mxu0 0.0
    %3647 = vmatpush1.msra.mxu0 0.0
    %3648 = vmatprep.subr.mxu0 0.0
    %3649 = vmatpush1.msra.mxu0 0.0
    %3650 = vmatprep.subr.mxu0 0.0
    %3651 = vmatpush1.msra.mxu0 0.0
    %3652 = vmatprep.subr.mxu0 0.0
    %3653 = vmatpush1.msra.mxu0 0.0
    %3654 = vmatprep.subr.mxu0 0.0
    %3655 = vmatpush1.msra.mxu0 0.0
    %3656 = vmatprep.subr.mxu0 0.0
    %3657 = vmatpush1.msra.mxu0 0.0
    %3658 = vmatprep.subr.mxu0 0.0
    %3659 = vmatpush1.msra.mxu0 0.0
    %3660 = vmatprep.subr.mxu0 0.0
    %3661 = vmatpush1.msra.mxu0 0.0
    %3662 = vmatprep.subr.mxu0 0.0
    %3663 = vmatpush1.msra.mxu0 0.0
    %3664 = vmatprep.subr.mxu0 0.0
    %3665 = vmatpush1.msra.mxu0 0.0
    %3666 = vmatprep.subr.mxu0 0.0
    %3667 = vmatpush1.msra.mxu0 0.0
    %3668 = vmatprep.mubr.f32.mxu0 0.0
    %3669 = vmatmul.mubr.f32.gmra.mrb[0].mxu0 %v3349
    %v3670 = vpop.f32.mrb[0].mxu0
    %v3671 = vadd.f32 %v3601, %v3670
    %v3672 = vpop.f32.mrb[0].mxu0
    %3673 = vdwg.mxu0
    %v3674 = vadd.f32 %v3671, %v2622
    %v3675 = vmul.f32 %v3674, %v80
    %v3676 = vtanh.pop %v3675
    %v3677 = vmul.f32 %v3676, %v80
    %v3678 = vadd.f32 %v3677, %v81
    %v3679 = vmul.f32 %v3678, %v3339
    %3681 = vrot.lane.b32.xlu0 %v3678, 64
    %v3682 = vpop.permute.xlu0 %3681
    %v3684 = vmul.f32 %v3678, %v3682
    %3686 = vrot.lane.b32.xlu0 %v3684, 32
    %v3687 = vpop.permute.xlu0 %3686
    %v3689 = vadd.f32 %v3679, %v3687
    %v3690 = vtanh.pop %v3689
    %3692 = vrot.lane.b32.xlu0 %v3690, 64
    %v3693 = vpop.permute.xlu0 %3692
    %v3695 = vmul.f32 %v3678, %v3693
    %3697 = vrot.lane.b32.xlu0 %v3695, 32
    %v3698 = vpop.permute.xlu0 %3697
    %v3699 = vsel %vm144, %v3698, 0
    %3701 = vmatprep.subr.mxu0 0.0
    %3702 = vmatpush1.msra.mxu0 %v59
    %3703 = vmatprep.subr.mxu0 0.0
    %3704 = vmatpush1.msra.mxu0 %v60
    %3705 = vmatprep.subr.mxu0 0.0
    %3706 = vmatpush1.msra.mxu0 %v61
    %3707 = vmatprep.subr.mxu0 0.0
    %3708 = vmatpush1.msra.mxu0 %v62
    %3709 = vmatprep.subr.mxu0 0.0
    %3710 = vmatpush1.msra.mxu0 0.0
    %3711 = vmatprep.subr.mxu0 0.0
    %3712 = vmatpush1.msra.mxu0 0.0
    %3713 = vmatprep.subr.mxu0 0.0
    %3714 = vmatpush1.msra.mxu0 0.0
    %3715 = vmatprep.subr.mxu0 0.0
    %3716 = vmatpush1.msra.mxu0 0.0
    %3717 = vmatprep.subr.mxu0 0.0
    %3718 = vmatpush1.msra.mxu0 0.0
    %3719 = vmatprep.subr.mxu0 0.0
    %3720 = vmatpush1.msra.mxu0 0.0
    %3721 = vmatprep.subr.mxu0 0.0
    %3722 = vmatpush1.msra.mxu0 0.0
    %3723 = vmatprep.subr.mxu0 0.0
    %3724 = vmatpush1.msra.mxu0 0.0
    %3725 = vmatprep.subr.mxu0 0.0
    %3726 = vmatpush1.msra.mxu0 0.0
    %3727 = vmatprep.subr.mxu0 0.0
    %3728 = vmatpush1.msra.mxu0 0.0
    %3729 = vmatprep.subr.mxu0 0.0
    %3730 = vmatpush1.msra.mxu0 0.0
    %3731 = vmatprep.subr.mxu0 0.0
    %3732 = vmatpush1.msra.mxu0 0.0
    %3733 = vmatprep.subr.mxu0 0.0
    %3734 = vmatpush1.msra.mxu0 0.0
    %3735 = vmatprep.subr.mxu0 0.0
    %3736 = vmatpush1.msra.mxu0 0.0
    %3737 = vmatprep.subr.mxu0 0.0
    %3738 = vmatpush1.msra.mxu0 0.0
    %3739 = vmatprep.subr.mxu0 0.0
    %3740 = vmatpush1.msra.mxu0 0.0
    %3741 = vmatprep.subr.mxu0 0.0
    %3742 = vmatpush1.msra.mxu0 0.0
    %3743 = vmatprep.subr.mxu0 0.0
    %3744 = vmatpush1.msra.mxu0 0.0
    %3745 = vmatprep.subr.mxu0 0.0
    %3746 = vmatpush1.msra.mxu0 0.0
    %3747 = vmatprep.subr.mxu0 0.0
    %3748 = vmatpush1.msra.mxu0 0.0
    %3749 = vmatprep.subr.mxu0 0.0
    %3750 = vmatpush1.msra.mxu0 0.0
    %3751 = vmatprep.subr.mxu0 0.0
    %3752 = vmatpush1.msra.mxu0 0.0
    %3753 = vmatprep.subr.mxu0 0.0
    %3754 = vmatpush1.msra.mxu0 0.0
    %3755 = vmatprep.subr.mxu0 0.0
    %3756 = vmatpush1.msra.mxu0 0.0
    %3757 = vmatprep.subr.mxu0 0.0
    %3758 = vmatpush1.msra.mxu0 0.0
    %3759 = vmatprep.subr.mxu0 0.0
    %3760 = vmatpush1.msra.mxu0 0.0
    %3761 = vmatprep.subr.mxu0 0.0
    %3762 = vmatpush1.msra.mxu0 0.0
    %3763 = vmatprep.subr.mxu0 0.0
    %3764 = vmatpush1.msra.mxu0 0.0
    %3765 = vmatprep.mubr.f32.mxu0 0.0
    %3766 = vmatmul.mubr.f32.gmra.mrb[0].mxu0 %v3699
    %v3767 = vpop.f32.mrb[0].mxu0
    %v3768 = vadd.f32 %v3531, %v3767
    %v3769 = vpop.f32.mrb[0].mxu0
    %3770 = vdwg.mxu0
    %v3771 = vadd.f32 %v3768, %v389
    %v3772 = vmul.f32 %v3771, %v80
    %v3773 = vtanh.pop %v3772
    %v3774 = vmul.f32 %v3773, %v80
    %v3775 = vadd.f32 %v3774, %v81
    %v3776 = vmul.f32 %v3775, %v3436
    %3778 = vrot.lane.b32.xlu0 %v3775, 64
    %v3779 = vpop.permute.xlu0 %3778
    %v3781 = vmul.f32 %v3775, %v3779
    %3783 = vrot.lane.b32.xlu0 %v3781, 32
    %v3784 = vpop.permute.xlu0 %3783
    %v3786 = vadd.f32 %v3776, %v3784
    %v3787 = vtanh.pop %v3786
    %3789 = vrot.lane.b32.xlu0 %v3787, 64
    %v3790 = vpop.permute.xlu0 %3789
    %v3792 = vmul.f32 %v3775, %v3790
    %v3793 = vmul.f32 %v3792, %v419
    %3795 = vrot.lane.b32.xlu0 %v3793, 32
    %v3796 = vpop.permute.xlu0 %3795
    %v3798 = vsel %vm144, %v3796, 0.0
    %3799 = vadd.xlane.f32.xlu0 %v3798
    %v3800 = vpop.xlane.xlu0 %3799
    %v3801 = vadd.f32 %v3800, %v433
    %vm3802 = vcmp.eq.s32.totalorder %v76, 11
    %3804 = vset.pattern.permute.xlu0 0
    %3805 = vperm.xlu0 %3804, %v3801
    %v3806 = vpop.permute.xlu0 %3805
    %v3808 = vsel %vm3802, %v3806, %v3458
    %vm3809 = vcmask 97280
    %3810 = vst.msk [vmem:[#allocation6] sm:$0xff] %vm3809, %v3808
    // Predicated region
    $region50: #{lstm_forward.1} parent=1 // pred_check
      _
    $region51: #{lstm_forward.1} parent=1 // pred_check_branch
      %3812 = sbr.rel (0) target = $region53
    $region52: #{lstm_forward.1} parent=1 // pred_region
      %s3814 = ssub.s32 128, 128
      %3815 = vsyncadd [#allocation5], %s3814
      %s3817 = sshll.u32 [#allocation6], 4
      %s3818 = int_to_ptr.vmem [resolvable:$true] %s3817
      %3820 = dma.vmem_to_hbm [thread:$0]  %s3818, 128, %s11, [#allocation5]
    $region53: #{lstm_forward.1} parent=1 // pred_fallthru
      _
    // Predicated region
    $region54: #{lstm_forward.1} parent=1 // pred_check
      _
    $region55: #{lstm_forward.1} parent=1 // pred_check_branch
      %3822 = sbr.rel (0) target = $region57
    $region56: #{lstm_forward.1} parent=1 // pred_region
      %3823 = dma.done [#allocation5], 128
    $region57: #{lstm_forward.1} parent=1 // pred_fallthru
      _
    %3824 = vsyncpa [#allocation4], 1
    %3825 = vsyncpa [#allocation5], 1

</llo_original>
